<compile_context>
chip_gen: v7x
topology: tpu7x:2x2x1
jax: 0.10.0
libtpu: 0.0.40
codegen_flags: <defaults>
</compile_context>

<pallas_src>
import functools

import jax
import jax.numpy as jnp
from jax.experimental import pallas as pl
from jax.experimental.pallas import tpu as pltpu


def _deblur_fused_kernel(p1_ref, w1_ref, b1_ref, w2_ref, b2_ref, w3_ref, b3_ref,
                         o_ref, *, H, W, C1, C2, C3, K3):
    """Fused conv1(9x9,p2)+ReLU -> conv2(1x1,p2)+ReLU -> conv3(5x5,p2).

    p1_ref: (1, H1*W1, KCpad)  im2col of conv1 input (lane-dense, zero-padded depth)
    w1_ref: (KCpad, C1)        conv1 weights, rows ordered (ky, kx, cin)
    w2_ref: (C1, C2)           conv2 1x1 weights (cin, cout)
    w3_ref: (K3*K3*C2, C3)     conv3 weights, rows ordered (ky, kx, cin)
    b*_ref: (1, C*)            biases
    o_ref : (1, C3, H*W)       lane-dense output (already NCHW order)
    """
    f32 = jnp.float32
    H1, W1 = H - 4, W - 4  # conv1 output spatial size (k=9, p=2)

    # ---- conv1: single im2col matmul, contraction depth KCpad (=256) ----
    h1 = jnp.dot(p1_ref[0], w1_ref[...], preferred_element_type=f32)   # (H1*W1, C1)
    h1 = jnp.maximum(h1 + b1_ref[...], 0.0)

    # ---- conv2 (1x1, pad=2): zero-pad spatially, then pointwise matmul ----
    # Padding must happen BEFORE the 1x1 conv so the border becomes relu(b2).
    h1 = h1.reshape(H1, W1, C1)
    zr = jnp.zeros((2, W1, C1), f32)
    zc = jnp.zeros((H, 2, C1), f32)
    h1p = jnp.concatenate([zr, h1, zr], axis=0)          # (H, W1, C1)
    h1p = jnp.concatenate([zc, h1p, zc], axis=1)         # (H, W, C1)
    h1p = h1p.reshape(H * W, C1)
    h2 = jnp.dot(h1p, w2_ref[...], preferred_element_type=f32)         # (H*W, C2)
    h2 = jnp.maximum(h2 + b2_ref[...], 0.0)

    # ---- conv3 (5x5, pad=2): in-kernel im2col -> single 800-deep matmul ----
    h2 = h2.reshape(H, W, C2)
    zr = jnp.zeros((2, W, C2), f32)
    zc = jnp.zeros((H + 4, 2, C2), f32)
    h2p = jnp.concatenate([zr, h2, zr], axis=0)          # (H+4, W, C2)
    h2p = jnp.concatenate([zc, h2p, zc], axis=1)         # (H+4, W+4, C2)
    cols = [h2p[ky:ky + H, kx:kx + W, :].reshape(H * W, C2)
            for ky in range(K3) for kx in range(K3)]
    p3 = jnp.concatenate(cols, axis=-1)                  # (H*W, K3*K3*C2)
    out = jnp.dot(p3, w3_ref[...], preferred_element_type=f32) + b3_ref[...]  # (H*W, C3)

    # Lane-dense store: (C3, H*W) with H*W (=256) on the lane axis.
    o_ref[0] = out.T.astype(o_ref.dtype)


def deblur_cnn_forward(x_nchw, params):
    """Forward pass matching the PyTorch DeblurCNN module. Input/output NCHW."""
    N, Cin, H, W = x_nchw.shape
    K1, K3 = 9, 5
    C1, C2, C3 = 64, 32, 3
    H1, W1 = H - 4, W - 4  # conv1 output size

    # ----- conv1 im2col built in the wrapper: lane-dense patch slab -----
    x = jnp.transpose(x_nchw, (0, 2, 3, 1))                          # NHWC
    xp = jnp.pad(x, ((0, 0), (2, 2), (2, 2), (0, 0)))                # (N, H+4, W+4, Cin)
    cols = [xp[:, ky:ky + H1, kx:kx + W1, :]
            for ky in range(K1) for kx in range(K1)]
    p1 = jnp.concatenate(cols, axis=-1)                              # (N, H1, W1, K1*K1*Cin)
    KC = K1 * K1 * Cin                                               # 243
    p1 = p1.reshape(N, H1 * W1, KC)
    KCpad = ((KC + 127) // 128) * 128                                # 243 -> 256
    p1 = jnp.pad(p1, ((0, 0), (0, 0), (0, KCpad - KC)))              # (N, 144, 256)

    # ----- weights reshaped for the im2col matmuls -----
    # conv1: OIHW -> (ky, kx, cin, cout) -> (KC, C1), zero-padded rows to KCpad
    w1 = jnp.transpose(params["conv1_w"], (2, 3, 1, 0)).reshape(KC, C1)
    w1 = jnp.pad(w1, ((0, KCpad - KC), (0, 0)))                      # (256, 64)
    b1 = params["conv1_b"].reshape(1, C1)
    # conv2: 1x1 -> (cin, cout)
    w2 = params["conv2_w"].reshape(C2, C1).T                         # (64, 32)
    b2 = params["conv2_b"].reshape(1, C2)
    # conv3: OIHW -> (ky, kx, cin, cout) -> (K3*K3*C2, C3)
    w3 = jnp.transpose(params["conv3_w"], (2, 3, 1, 0)).reshape(K3 * K3 * C2, C3)
    b3 = params["conv3_b"].reshape(1, C3)

    kernel = functools.partial(_deblur_fused_kernel,
                               H=H, W=W, C1=C1, C2=C2, C3=C3, K3=K3)
    out = pl.pallas_call(
        kernel,
        out_shape=jax.ShapeDtypeStruct((N, C3, H * W), x_nchw.dtype),
        grid=(N,),
        in_specs=[
            pl.BlockSpec((1, H1 * W1, KCpad), lambda n: (n, 0, 0)),
            pl.BlockSpec((KCpad, C1), lambda n: (0, 0)),
            pl.BlockSpec((1, C1), lambda n: (0, 0)),
            pl.BlockSpec((C1, C2), lambda n: (0, 0)),
            pl.BlockSpec((1, C2), lambda n: (0, 0)),
            pl.BlockSpec((K3 * K3 * C2, C3), lambda n: (0, 0)),
            pl.BlockSpec((1, C3), lambda n: (0, 0)),
        ],
        out_specs=pl.BlockSpec((1, C3, H * W), lambda n: (n, 0, 0)),
        compiler_params=pltpu.CompilerParams(
            dimension_semantics=("parallel",)),
    )(p1, w1, b1, w2, b2, w3, b3)

    # (N, C3, H*W) lane-dense output is already channel-major: reshape to NCHW.
    return out.reshape(N, C3, H, W)


def init_params(key):
    """Deterministic synthetic parameters, PyTorch Conv2d shapes (Cout,Cin,K,K)."""
    keys = jax.random.split(key, 6)

    def mk(k, shape, scale):
        return jax.random.normal(k, shape, jnp.float32) * scale

    return {
        "conv1_w": mk(keys[0], (64, 3, 9, 9), 0.05),
        "conv1_b": mk(keys[1], (64,), 0.05),
        "conv2_w": mk(keys[2], (32, 64, 1, 1), 0.05),
        "conv2_b": mk(keys[3], (32,), 0.05),
        "conv3_w": mk(keys[4], (3, 32, 5, 5), 0.05),
        "conv3_b": mk(keys[5], (3,), 0.05),
    }


def _reference_forward(x_nchw, params):
    """Pure-JAX reference (lax.conv) for correctness check."""
    def conv(x, w, b, pad, relu):
        y = jax.lax.conv_general_dilated(
            x, w, window_strides=(1, 1), padding=[(pad, pad), (pad, pad)],
            dimension_numbers=("NCHW", "OIHW", "NCHW"))
        y = y + b.reshape(1, -1, 1, 1)
        return jnp.maximum(y, 0.0) if relu else y
    x = conv(x_nchw, params["conv1_w"], params["conv1_b"], 2, True)
    x = conv(x, params["conv2_w"], params["conv2_b"], 2, True)
    x = conv(x, params["conv3_w"], params["conv3_b"], 2, False)
    return x


if __name__ == "__main__":
    key = jax.random.PRNGKey(0)
    k_params, k_x = jax.random.split(key)
    params = init_params(k_params)

    # Small input consistent with the module: NCHW, 3 input channels.
    x = jax.random.normal(k_x, (2, 3, 16, 16), jnp.float32)

    out = deblur_cnn_forward(x, params)
    out = jax.block_until_ready(out)
    assert out.shape == (2, 3, 16, 16), out.shape

    ref = jax.block_until_ready(_reference_forward(x, params))
    assert jnp.allclose(out, ref, rtol=1e-4, atol=2e-4), float(
        jnp.max(jnp.abs(out - ref)))

    print("KERNEL_OK")
</pallas_src>

<mosaic_0001>
module attributes {stable_mosaic.version = 11 : i64} {
  func.func @_deblur_fused_kernel(%arg0: i32, %arg1: memref<1x144x256xf32, #tpu.memory_space<vmem>>, %arg2: memref<256x64xf32, #tpu.memory_space<vmem>>, %arg3: memref<1x64xf32, #tpu.memory_space<vmem>>, %arg4: memref<64x32xf32, #tpu.memory_space<vmem>>, %arg5: memref<1x32xf32, #tpu.memory_space<vmem>>, %arg6: memref<800x3xf32, #tpu.memory_space<vmem>>, %arg7: memref<1x3xf32, #tpu.memory_space<vmem>>, %arg8: memref<1x3x256xf32, #tpu.memory_space<vmem>>) attributes {dimension_semantics = [#tpu.dimension_semantics<parallel>], iteration_bounds = array<i64: 2>, scalar_prefetch = 0 : i64, scratch_operands = 0 : i64, tpu.core_type = #tpu.core_type<tc>, window_params = [{transform_indices = @transform_0, window_bounds = array<i64: 1, 144, 256>}, {pipeline_mode = #tpu.pipeline_mode<synchronous>, transform_indices = @transform_1, window_bounds = array<i64: 256, 64>}, {pipeline_mode = #tpu.pipeline_mode<synchronous>, transform_indices = @transform_2, window_bounds = array<i64: 1, 64>}, {pipeline_mode = #tpu.pipeline_mode<synchronous>, transform_indices = @transform_3, window_bounds = array<i64: 64, 32>}, {pipeline_mode = #tpu.pipeline_mode<synchronous>, transform_indices = @transform_4, window_bounds = array<i64: 1, 32>}, {pipeline_mode = #tpu.pipeline_mode<synchronous>, transform_indices = @transform_5, window_bounds = array<i64: 800, 3>}, {pipeline_mode = #tpu.pipeline_mode<synchronous>, transform_indices = @transform_6, window_bounds = array<i64: 1, 3>}, {transform_indices = @transform_7, window_bounds = array<i64: 1, 3, 256>}]} {
    %c0 = arith.constant 0 : index
    %c0_0 = arith.constant 0 : index
    %c0_1 = arith.constant 0 : index
    %0 = vector.load %arg1[%c0, %c0_0, %c0_1] : memref<1x144x256xf32, #tpu.memory_space<vmem>>, vector<1x144x256xf32>
    %1 = vector.shape_cast %0 : vector<1x144x256xf32> to vector<144x256xf32>
    %c0_2 = arith.constant 0 : index
    %c0_3 = arith.constant 0 : index
    %2 = vector.load %arg2[%c0_2, %c0_3] : memref<256x64xf32, #tpu.memory_space<vmem>>, vector<256x64xf32>
    %cst = arith.constant dense<0.000000e+00> : vector<144x64xf32>
    %3 = tpu.matmul %1, %2, %cst {dimension_numbers = #tpu.dot_dimension_numbers<[1], [0], [0], [1], [0, 0, 1, 1], [], []>} : vector<144x256xf32>, vector<256x64xf32>, vector<144x64xf32> -> vector<144x64xf32>
    %c0_4 = arith.constant 0 : index
    %c0_5 = arith.constant 0 : index
    %4 = vector.load %arg3[%c0_4, %c0_5] : memref<1x64xf32, #tpu.memory_space<vmem>>, vector<1x64xf32>
    %5 = vector.broadcast %4 : vector<1x64xf32> to vector<144x64xf32>
    %6 = arith.addf %3, %5 : vector<144x64xf32>
    %cst_6 = arith.constant 0.000000e+00 : f32
    %7 = vector.broadcast %cst_6 : f32 to vector<144x64xf32>
    %8 = arith.maximumf %6, %7 : vector<144x64xf32>
    %9 = vector.shape_cast %8 : vector<144x64xf32> to vector<12x12x64xf32>
    %cst_7 = arith.constant 0.000000e+00 : f32
    %10 = vector.broadcast %cst_7 : f32 to vector<2x12x64xf32>
    %cst_8 = arith.constant 0.000000e+00 : f32
    %11 = vector.broadcast %cst_8 : f32 to vector<16x2x64xf32>
    %12 = tpu.concatenate %10, %9, %10 in 0 : vector<2x12x64xf32>, vector<12x12x64xf32>, vector<2x12x64xf32> -> vector<16x12x64xf32>
    %13 = tpu.concatenate %11, %12, %11 in 1 : vector<16x2x64xf32>, vector<16x12x64xf32>, vector<16x2x64xf32> -> vector<16x16x64xf32>
    %14 = vector.shape_cast %13 : vector<16x16x64xf32> to vector<256x64xf32>
    %c0_9 = arith.constant 0 : index
    %c0_10 = arith.constant 0 : index
    %15 = vector.load %arg4[%c0_9, %c0_10] : memref<64x32xf32, #tpu.memory_space<vmem>>, vector<64x32xf32>
    %cst_11 = arith.constant dense<0.000000e+00> : vector<256x32xf32>
    %16 = tpu.matmul %14, %15, %cst_11 {dimension_numbers = #tpu.dot_dimension_numbers<[1], [0], [0], [1], [0, 0, 1, 1], [], []>} : vector<256x64xf32>, vector<64x32xf32>, vector<256x32xf32> -> vector<256x32xf32>
    %c0_12 = arith.constant 0 : index
    %c0_13 = arith.constant 0 : index
    %17 = vector.load %arg5[%c0_12, %c0_13] : memref<1x32xf32, #tpu.memory_space<vmem>>, vector<1x32xf32>
    %18 = vector.broadcast %17 : vector<1x32xf32> to vector<256x32xf32>
    %19 = arith.addf %16, %18 : vector<256x32xf32>
    %cst_14 = arith.constant 0.000000e+00 : f32
    %20 = vector.broadcast %cst_14 : f32 to vector<256x32xf32>
    %21 = arith.maximumf %19, %20 : vector<256x32xf32>
    %22 = vector.shape_cast %21 : vector<256x32xf32> to vector<16x16x32xf32>
    %cst_15 = arith.constant 0.000000e+00 : f32
    %23 = vector.broadcast %cst_15 : f32 to vector<2x16x32xf32>
    %cst_16 = arith.constant 0.000000e+00 : f32
    %24 = vector.broadcast %cst_16 : f32 to vector<20x2x32xf32>
    %25 = tpu.concatenate %23, %22, %23 in 0 : vector<2x16x32xf32>, vector<16x16x32xf32>, vector<2x16x32xf32> -> vector<20x16x32xf32>
    %26 = tpu.concatenate %24, %25, %24 in 1 : vector<20x2x32xf32>, vector<20x16x32xf32>, vector<20x2x32xf32> -> vector<20x20x32xf32>
    %27 = vector.extract_strided_slice %26 {offsets = [0, 0, 0], sizes = [16, 16, 32], strides = [1, 1, 1]} : vector<20x20x32xf32> to vector<16x16x32xf32>
    %28 = vector.shape_cast %27 : vector<16x16x32xf32> to vector<256x32xf32>
    %29 = vector.extract_strided_slice %26 {offsets = [0, 1, 0], sizes = [16, 16, 32], strides = [1, 1, 1]} : vector<20x20x32xf32> to vector<16x16x32xf32>
    %30 = vector.shape_cast %29 : vector<16x16x32xf32> to vector<256x32xf32>
    %31 = vector.extract_strided_slice %26 {offsets = [0, 2, 0], sizes = [16, 16, 32], strides = [1, 1, 1]} : vector<20x20x32xf32> to vector<16x16x32xf32>
    %32 = vector.shape_cast %31 : vector<16x16x32xf32> to vector<256x32xf32>
    %33 = vector.extract_strided_slice %26 {offsets = [0, 3, 0], sizes = [16, 16, 32], strides = [1, 1, 1]} : vector<20x20x32xf32> to vector<16x16x32xf32>
    %34 = vector.shape_cast %33 : vector<16x16x32xf32> to vector<256x32xf32>
    %35 = vector.extract_strided_slice %26 {offsets = [0, 4, 0], sizes = [16, 16, 32], strides = [1, 1, 1]} : vector<20x20x32xf32> to vector<16x16x32xf32>
    %36 = vector.shape_cast %35 : vector<16x16x32xf32> to vector<256x32xf32>
    %37 = vector.extract_strided_slice %26 {offsets = [1, 0, 0], sizes = [16, 16, 32], strides = [1, 1, 1]} : vector<20x20x32xf32> to vector<16x16x32xf32>
    %38 = vector.shape_cast %37 : vector<16x16x32xf32> to vector<256x32xf32>
    %39 = vector.extract_strided_slice %26 {offsets = [1, 1, 0], sizes = [16, 16, 32], strides = [1, 1, 1]} : vector<20x20x32xf32> to vector<16x16x32xf32>
    %40 = vector.shape_cast %39 : vector<16x16x32xf32> to vector<256x32xf32>
    %41 = vector.extract_strided_slice %26 {offsets = [1, 2, 0], sizes = [16, 16, 32], strides = [1, 1, 1]} : vector<20x20x32xf32> to vector<16x16x32xf32>
    %42 = vector.shape_cast %41 : vector<16x16x32xf32> to vector<256x32xf32>
    %43 = vector.extract_strided_slice %26 {offsets = [1, 3, 0], sizes = [16, 16, 32], strides = [1, 1, 1]} : vector<20x20x32xf32> to vector<16x16x32xf32>
    %44 = vector.shape_cast %43 : vector<16x16x32xf32> to vector<256x32xf32>
    %45 = vector.extract_strided_slice %26 {offsets = [1, 4, 0], sizes = [16, 16, 32], strides = [1, 1, 1]} : vector<20x20x32xf32> to vector<16x16x32xf32>
    %46 = vector.shape_cast %45 : vector<16x16x32xf32> to vector<256x32xf32>
    %47 = vector.extract_strided_slice %26 {offsets = [2, 0, 0], sizes = [16, 16, 32], strides = [1, 1, 1]} : vector<20x20x32xf32> to vector<16x16x32xf32>
    %48 = vector.shape_cast %47 : vector<16x16x32xf32> to vector<256x32xf32>
    %49 = vector.extract_strided_slice %26 {offsets = [2, 1, 0], sizes = [16, 16, 32], strides = [1, 1, 1]} : vector<20x20x32xf32> to vector<16x16x32xf32>
    %50 = vector.shape_cast %49 : vector<16x16x32xf32> to vector<256x32xf32>
    %51 = vector.extract_strided_slice %26 {offsets = [2, 2, 0], sizes = [16, 16, 32], strides = [1, 1, 1]} : vector<20x20x32xf32> to vector<16x16x32xf32>
    %52 = vector.shape_cast %51 : vector<16x16x32xf32> to vector<256x32xf32>
    %53 = vector.extract_strided_slice %26 {offsets = [2, 3, 0], sizes = [16, 16, 32], strides = [1, 1, 1]} : vector<20x20x32xf32> to vector<16x16x32xf32>
    %54 = vector.shape_cast %53 : vector<16x16x32xf32> to vector<256x32xf32>
    %55 = vector.extract_strided_slice %26 {offsets = [2, 4, 0], sizes = [16, 16, 32], strides = [1, 1, 1]} : vector<20x20x32xf32> to vector<16x16x32xf32>
    %56 = vector.shape_cast %55 : vector<16x16x32xf32> to vector<256x32xf32>
    %57 = vector.extract_strided_slice %26 {offsets = [3, 0, 0], sizes = [16, 16, 32], strides = [1, 1, 1]} : vector<20x20x32xf32> to vector<16x16x32xf32>
    %58 = vector.shape_cast %57 : vector<16x16x32xf32> to vector<256x32xf32>
    %59 = vector.extract_strided_slice %26 {offsets = [3, 1, 0], sizes = [16, 16, 32], strides = [1, 1, 1]} : vector<20x20x32xf32> to vector<16x16x32xf32>
    %60 = vector.shape_cast %59 : vector<16x16x32xf32> to vector<256x32xf32>
    %61 = vector.extract_strided_slice %26 {offsets = [3, 2, 0], sizes = [16, 16, 32], strides = [1, 1, 1]} : vector<20x20x32xf32> to vector<16x16x32xf32>
    %62 = vector.shape_cast %61 : vector<16x16x32xf32> to vector<256x32xf32>
    %63 = vector.extract_strided_slice %26 {offsets = [3, 3, 0], sizes = [16, 16, 32], strides = [1, 1, 1]} : vector<20x20x32xf32> to vector<16x16x32xf32>
    %64 = vector.shape_cast %63 : vector<16x16x32xf32> to vector<256x32xf32>
    %65 = vector.extract_strided_slice %26 {offsets = [3, 4, 0], sizes = [16, 16, 32], strides = [1, 1, 1]} : vector<20x20x32xf32> to vector<16x16x32xf32>
    %66 = vector.shape_cast %65 : vector<16x16x32xf32> to vector<256x32xf32>
    %67 = vector.extract_strided_slice %26 {offsets = [4, 0, 0], sizes = [16, 16, 32], strides = [1, 1, 1]} : vector<20x20x32xf32> to vector<16x16x32xf32>
    %68 = vector.shape_cast %67 : vector<16x16x32xf32> to vector<256x32xf32>
    %69 = vector.extract_strided_slice %26 {offsets = [4, 1, 0], sizes = [16, 16, 32], strides = [1, 1, 1]} : vector<20x20x32xf32> to vector<16x16x32xf32>
    %70 = vector.shape_cast %69 : vector<16x16x32xf32> to vector<256x32xf32>
    %71 = vector.extract_strided_slice %26 {offsets = [4, 2, 0], sizes = [16, 16, 32], strides = [1, 1, 1]} : vector<20x20x32xf32> to vector<16x16x32xf32>
    %72 = vector.shape_cast %71 : vector<16x16x32xf32> to vector<256x32xf32>
    %73 = vector.extract_strided_slice %26 {offsets = [4, 3, 0], sizes = [16, 16, 32], strides = [1, 1, 1]} : vector<20x20x32xf32> to vector<16x16x32xf32>
    %74 = vector.shape_cast %73 : vector<16x16x32xf32> to vector<256x32xf32>
    %75 = vector.extract_strided_slice %26 {offsets = [4, 4, 0], sizes = [16, 16, 32], strides = [1, 1, 1]} : vector<20x20x32xf32> to vector<16x16x32xf32>
    %76 = vector.shape_cast %75 : vector<16x16x32xf32> to vector<256x32xf32>
    %77 = tpu.concatenate %28, %30, %32, %34, %36, %38, %40, %42, %44, %46, %48, %50, %52, %54, %56, %58 in 1 : vector<256x32xf32>, vector<256x32xf32>, vector<256x32xf32>, vector<256x32xf32>, vector<256x32xf32>, vector<256x32xf32>, vector<256x32xf32>, vector<256x32xf32>, vector<256x32xf32>, vector<256x32xf32>, vector<256x32xf32>, vector<256x32xf32>, vector<256x32xf32>, vector<256x32xf32>, vector<256x32xf32>, vector<256x32xf32> -> vector<256x512xf32>
    %78 = tpu.concatenate %60, %62, %64, %66, %68, %70, %72, %74, %76 in 1 : vector<256x32xf32>, vector<256x32xf32>, vector<256x32xf32>, vector<256x32xf32>, vector<256x32xf32>, vector<256x32xf32>, vector<256x32xf32>, vector<256x32xf32>, vector<256x32xf32> -> vector<256x288xf32>
    %79 = tpu.concatenate %77, %78 in 1 : vector<256x512xf32>, vector<256x288xf32> -> vector<256x800xf32>
    %c0_17 = arith.constant 0 : index
    %c0_18 = arith.constant 0 : index
    %80 = vector.load %arg6[%c0_17, %c0_18] : memref<800x3xf32, #tpu.memory_space<vmem>>, vector<800x3xf32>
    %cst_19 = arith.constant dense<0.000000e+00> : vector<256x3xf32>
    %81 = tpu.matmul %79, %80, %cst_19 {dimension_numbers = #tpu.dot_dimension_numbers<[1], [0], [0], [1], [0, 0, 1, 1], [], []>} : vector<256x800xf32>, vector<800x3xf32>, vector<256x3xf32> -> vector<256x3xf32>
    %c0_20 = arith.constant 0 : index
    %c0_21 = arith.constant 0 : index
    %82 = vector.load %arg7[%c0_20, %c0_21] : memref<1x3xf32, #tpu.memory_space<vmem>>, vector<1x3xf32>
    %83 = vector.broadcast %82 : vector<1x3xf32> to vector<256x3xf32>
    %84 = arith.addf %81, %83 : vector<256x3xf32>
    %85 = tpu.transpose %84, [1, 0] : vector<256x3xf32> -> vector<3x256xf32>
    %c0_22 = arith.constant 0 : index
    %c0_23 = arith.constant 0 : index
    %c0_24 = arith.constant 0 : index
    %86 = vector.load %arg8[%c0_22, %c0_23, %c0_24] : memref<1x3x256xf32, #tpu.memory_space<vmem>>, vector<1x3x256xf32>
    %87 = vector.shape_cast %86 : vector<1x3x256xf32> to vector<3x256xf32>
    %88 = vector.shape_cast %85 : vector<3x256xf32> to vector<1x3x256xf32>
    tpu.vector_store %arg8[%c0_22, %c0_23, %c0_24], %88 {strides = array<i32>} : memref<1x3x256xf32, #tpu.memory_space<vmem>>, vector<1x3x256xf32>,
    return
  }
  func.func @transform_0(%arg0: i32) -> (i32, i32, i32) {
    %c0_i32 = arith.constant 0 : i32
    %c0_i32_0 = arith.constant 0 : i32
    %c0_i32_1 = arith.constant 0 : i32
    return %arg0, %c0_i32, %c0_i32_0 : i32, i32, i32
  }
  func.func @transform_1(%arg0: i32) -> (i32, i32) {
    %c0_i32 = arith.constant 0 : i32
    %c0_i32_0 = arith.constant 0 : i32
    %c0_i32_1 = arith.constant 0 : i32
    return %c0_i32, %c0_i32_0 : i32, i32
  }
  func.func @transform_2(%arg0: i32) -> (i32, i32) {
    %c0_i32 = arith.constant 0 : i32
    %c0_i32_0 = arith.constant 0 : i32
    %c0_i32_1 = arith.constant 0 : i32
    return %c0_i32, %c0_i32_0 : i32, i32
  }
  func.func @transform_3(%arg0: i32) -> (i32, i32) {
    %c0_i32 = arith.constant 0 : i32
    %c0_i32_0 = arith.constant 0 : i32
    %c0_i32_1 = arith.constant 0 : i32
    return %c0_i32, %c0_i32_0 : i32, i32
  }
  func.func @transform_4(%arg0: i32) -> (i32, i32) {
    %c0_i32 = arith.constant 0 : i32
    %c0_i32_0 = arith.constant 0 : i32
    %c0_i32_1 = arith.constant 0 : i32
    return %c0_i32, %c0_i32_0 : i32, i32
  }
  func.func @transform_5(%arg0: i32) -> (i32, i32) {
    %c0_i32 = arith.constant 0 : i32
    %c0_i32_0 = arith.constant 0 : i32
    %c0_i32_1 = arith.constant 0 : i32
    return %c0_i32, %c0_i32_0 : i32, i32
  }
  func.func @transform_6(%arg0: i32) -> (i32, i32) {
    %c0_i32 = arith.constant 0 : i32
    %c0_i32_0 = arith.constant 0 : i32
    %c0_i32_1 = arith.constant 0 : i32
    return %c0_i32, %c0_i32_0 : i32, i32
  }
  func.func @transform_7(%arg0: i32) -> (i32, i32, i32) {
    %c0_i32 = arith.constant 0 : i32
    %c0_i32_0 = arith.constant 0 : i32
    %c0_i32_1 = arith.constant 0 : i32
    return %arg0, %c0_i32, %c0_i32_0 : i32, i32, i32
  }
}

</mosaic_0001>

<llo_original>
// kernel: tpu_custom_call.1
$region0: #{tpu_custom_call.1}
  #allocation0 [shape = 'u32[]', space=smem, size = 0x4, offset = 0x4, fixed_abs, tag = 'smem constant byte address 0x4 - core index']
  #allocation1 [shape = 'u32[144,128]{1,0:T(1,128)}', space=vmem, size = 0x12000, scoped, tag = 'internal scratch']
  %s0 = inlined_call_operand.vmem [shape: f32[2,144,256], index: 0, kind: input, shape index: {}]
  %s1 = inlined_call_operand.vmem [shape: f32[256,64], index: 1, kind: input, shape index: {}]
  %s2 = inlined_call_operand.vmem [shape: f32[1,64], index: 2, kind: input, shape index: {}]
  %s3 = inlined_call_operand.vmem [shape: f32[64,32], index: 3, kind: input, shape index: {}]
  %s4 = inlined_call_operand.vmem [shape: f32[1,32], index: 4, kind: input, shape index: {}]
  %s5 = inlined_call_operand.vmem [shape: f32[800,3], index: 5, kind: input, shape index: {}]
  %s6 = inlined_call_operand.vmem [shape: f32[1,3], index: 6, kind: input, shape index: {}]
  %s7 = inlined_call_operand.vmem [shape: f32[2,3,256], index: 7, kind: output, shape index: {}]
  %s8 = sld [smem:[#allocation0]]
  $region61: #{tpu_custom_call.1} parent=0
    _
  %s10 = ssub.s32 1, %s8
  %s11 = scalar_select 0, %s10, %s8
  loop: start=0, step=1, limit=4
  $region2: #{tpu_custom_call.1} parent=0 // loop_pre_header
    _
  $region3: #{tpu_custom_call.1} parent=0 // loop_header
    %s13 = sphi 0, %s17
    %p14 = scmp.ge.s32.totalorder %s13, 4
    %s23 = sphi 0, %s25
    %s26 = sphi 0, %s23
    %s27 = sphi 0, %s26
    %s43 = sphi 0, %s27
    %s47 = sphi 0, %s47
    %s49 = sphi 0, %s47
    %s50 = sphi 0, %s49
    %s64 = sphi 0, %s50
    %s68 = sphi 0, %s68
    %s70 = sphi 0, %s68
    %s71 = sphi 0, %s70
    %s85 = sphi 0, %s71
    %s89 = sphi 0, %s89
    %s91 = sphi 0, %s89
    %s92 = sphi 0, %s91
    %s106 = sphi 0, %s92
    %s110 = sphi 0, %s110
    %s112 = sphi 0, %s110
    %s113 = sphi 0, %s112
    %s127 = sphi 0, %s113
    %s131 = sphi 0, %s131
    %s133 = sphi 0, %s131
    %s134 = sphi 0, %s133
    %s148 = sphi 0, %s134
    %s152 = sphi 0, %s152
    %s154 = sphi 0, %s152
    %s155 = sphi 0, %s154
    %s169 = sphi 0, %s155
    %s175 = sphi 0, %s177
    %s178 = sphi 0, %s175
    %s179 = sphi 0, %s178
    %s195 = sphi 0, %s179
  $region4: #{tpu_custom_call.1} parent=0 // loop_header_branch
    %16 = sbr.rel (%p14) target = $region8
  $region5: #{tpu_custom_call.1} parent=0 // loop_body
    %s18 = ssub.s32 %s13, 1
    %s19 = ssub.s32 %s13, 2
    %s20 = sadd.s32 %s13, 1
    %s21 = ssub.s32 %s13, %s20
    %p22 = scmp.eq.s32.totalorder %s21, 0
    %s24 = sadd.s32 %s23, 1
    %s25 = scalar_select %p22, %s23, %s24
    %p28 = pneg %p22
    %p29 = scmp.eq.s32.totalorder %s13, 1
    %p30 = por %p28, %p29
    %p31 = scmp.ne.s32.totalorder %s23, %s26
    %p32 = scmp.eq.s32.totalorder %s13, 0
    %p33 = por %p31, %p32
    %p34 = scmp.ne.s32.totalorder %s23, %s26
    %p35 = scmp.eq.s32.totalorder %s18, 1
    %p36 = por %p34, %p35
    %p37 = scmp.ne.s32.totalorder %s26, %s27
    %p38 = scmp.eq.s32.totalorder %s18, 0
    %p39 = por %p37, %p38
    %p40 = scmp.ne.s32.totalorder %s26, %s27
    %p41 = scmp.eq.s32.totalorder %s19, 1
    %p42 = por %p40, %p41
    %p44 = scmp.ne.s32.totalorder %s27, %s43
    %p45 = scmp.eq.s32.totalorder %s19, 0
    %p46 = por %p44, %p45
    %s48 = sadd.s32 %s47, 1
    %p51 = scmp.eq.s32.totalorder %s13, 1
    %p52 = scmp.ne.s32.totalorder %s47, %s49
    %p53 = scmp.eq.s32.totalorder %s13, 0
    %p54 = por %p52, %p53
    %p55 = scmp.ne.s32.totalorder %s47, %s49
    %p56 = scmp.eq.s32.totalorder %s18, 1
    %p57 = por %p55, %p56
    %p58 = scmp.ne.s32.totalorder %s49, %s50
    %p59 = scmp.eq.s32.totalorder %s18, 0
    %p60 = por %p58, %p59
    %p61 = scmp.ne.s32.totalorder %s49, %s50
    %p62 = scmp.eq.s32.totalorder %s19, 1
    %p63 = por %p61, %p62
    %p65 = scmp.ne.s32.totalorder %s50, %s64
    %p66 = scmp.eq.s32.totalorder %s19, 0
    %p67 = por %p65, %p66
    %s69 = sadd.s32 %s68, 1
    %p72 = scmp.eq.s32.totalorder %s13, 1
    %p73 = scmp.ne.s32.totalorder %s68, %s70
    %p74 = scmp.eq.s32.totalorder %s13, 0
    %p75 = por %p73, %p74
    %p76 = scmp.ne.s32.totalorder %s68, %s70
    %p77 = scmp.eq.s32.totalorder %s18, 1
    %p78 = por %p76, %p77
    %p79 = scmp.ne.s32.totalorder %s70, %s71
    %p80 = scmp.eq.s32.totalorder %s18, 0
    %p81 = por %p79, %p80
    %p82 = scmp.ne.s32.totalorder %s70, %s71
    %p83 = scmp.eq.s32.totalorder %s19, 1
    %p84 = por %p82, %p83
    %p86 = scmp.ne.s32.totalorder %s71, %s85
    %p87 = scmp.eq.s32.totalorder %s19, 0
    %p88 = por %p86, %p87
    %s90 = sadd.s32 %s89, 1
    %p93 = scmp.eq.s32.totalorder %s13, 1
    %p94 = scmp.ne.s32.totalorder %s89, %s91
    %p95 = scmp.eq.s32.totalorder %s13, 0
    %p96 = por %p94, %p95
    %p97 = scmp.ne.s32.totalorder %s89, %s91
    %p98 = scmp.eq.s32.totalorder %s18, 1
    %p99 = por %p97, %p98
    %p100 = scmp.ne.s32.totalorder %s91, %s92
    %p101 = scmp.eq.s32.totalorder %s18, 0
    %p102 = por %p100, %p101
    %p103 = scmp.ne.s32.totalorder %s91, %s92
    %p104 = scmp.eq.s32.totalorder %s19, 1
    %p105 = por %p103, %p104
    %p107 = scmp.ne.s32.totalorder %s92, %s106
    %p108 = scmp.eq.s32.totalorder %s19, 0
    %p109 = por %p107, %p108
    %s111 = sadd.s32 %s110, 1
    %p114 = scmp.eq.s32.totalorder %s13, 1
    %p115 = scmp.ne.s32.totalorder %s110, %s112
    %p116 = scmp.eq.s32.totalorder %s13, 0
    %p117 = por %p115, %p116
    %p118 = scmp.ne.s32.totalorder %s110, %s112
    %p119 = scmp.eq.s32.totalorder %s18, 1
    %p120 = por %p118, %p119
    %p121 = scmp.ne.s32.totalorder %s112, %s113
    %p122 = scmp.eq.s32.totalorder %s18, 0
    %p123 = por %p121, %p122
    %p124 = scmp.ne.s32.totalorder %s112, %s113
    %p125 = scmp.eq.s32.totalorder %s19, 1
    %p126 = por %p124, %p125
    %p128 = scmp.ne.s32.totalorder %s113, %s127
    %p129 = scmp.eq.s32.totalorder %s19, 0
    %p130 = por %p128, %p129
    %s132 = sadd.s32 %s131, 1
    %p135 = scmp.eq.s32.totalorder %s13, 1
    %p136 = scmp.ne.s32.totalorder %s131, %s133
    %p137 = scmp.eq.s32.totalorder %s13, 0
    %p138 = por %p136, %p137
    %p139 = scmp.ne.s32.totalorder %s131, %s133
    %p140 = scmp.eq.s32.totalorder %s18, 1
    %p141 = por %p139, %p140
    %p142 = scmp.ne.s32.totalorder %s133, %s134
    %p143 = scmp.eq.s32.totalorder %s18, 0
    %p144 = por %p142, %p143
    %p145 = scmp.ne.s32.totalorder %s133, %s134
    %p146 = scmp.eq.s32.totalorder %s19, 1
    %p147 = por %p145, %p146
    %p149 = scmp.ne.s32.totalorder %s134, %s148
    %p150 = scmp.eq.s32.totalorder %s19, 0
    %p151 = por %p149, %p150
    %s153 = sadd.s32 %s152, 1
    %p156 = scmp.eq.s32.totalorder %s13, 1
    %p157 = scmp.ne.s32.totalorder %s152, %s154
    %p158 = scmp.eq.s32.totalorder %s13, 0
    %p159 = por %p157, %p158
    %p160 = scmp.ne.s32.totalorder %s152, %s154
    %p161 = scmp.eq.s32.totalorder %s18, 1
    %p162 = por %p160, %p161
    %p163 = scmp.ne.s32.totalorder %s154, %s155
    %p164 = scmp.eq.s32.totalorder %s18, 0
    %p165 = por %p163, %p164
    %p166 = scmp.ne.s32.totalorder %s154, %s155
    %p167 = scmp.eq.s32.totalorder %s19, 1
    %p168 = por %p166, %p167
    %p170 = scmp.ne.s32.totalorder %s155, %s169
    %p171 = scmp.eq.s32.totalorder %s19, 0
    %p172 = por %p170, %p171
    %s173 = ssub.s32 %s13, %s20
    %p174 = scmp.eq.s32.totalorder %s173, 0
    %s176 = sadd.s32 %s175, 1
    %s177 = scalar_select %p174, %s175, %s176
    %p180 = pneg %p174
    %p181 = scmp.eq.s32.totalorder %s13, 1
    %p182 = por %p180, %p181
    %p183 = scmp.ne.s32.totalorder %s175, %s178
    %p184 = scmp.eq.s32.totalorder %s13, 0
    %p185 = por %p183, %p184
    %p186 = scmp.ne.s32.totalorder %s175, %s178
    %p187 = scmp.eq.s32.totalorder %s18, 1
    %p188 = por %p186, %p187
    %p189 = scmp.ne.s32.totalorder %s178, %s179
    %p190 = scmp.eq.s32.totalorder %s18, 0
    %p191 = por %p189, %p190
    %p192 = scmp.ne.s32.totalorder %s178, %s179
    %p193 = scmp.eq.s32.totalorder %s19, 1
    %p194 = por %p192, %p193
    %p196 = scmp.ne.s32.totalorder %s179, %s195
    %p197 = scmp.eq.s32.totalorder %s19, 0
    %p198 = por %p196, %p197
    %p199 = scmp.le.s32.totalorder 1, %s13
    %p200 = scmp.lt.s32.totalorder %s13, 3
    %p201 = pnand %p199, %p200
    %p202 = pneg %p201
    // Predicated region
    $region9: #{tpu_custom_call.1} parent=5 // pred_check
      _
    $region10: #{tpu_custom_call.1} parent=5 // pred_check_branch
      %204 = sbr.rel (%p201) target = $region12
    $region11: #{tpu_custom_call.1} parent=5 // pred_region
      %s205 = ssub.s32 %s13, 1
      // Predicated region
      $region13: #{tpu_custom_call.1} parent=11 // pred_check
        %p206 = pneg %p60
      $region14: #{tpu_custom_call.1} parent=11 // pred_check_branch
        %208 = sbr.rel (%p206) target = $region16
      $region15: #{tpu_custom_call.1} parent=11 // pred_region
        _
      $region16: #{tpu_custom_call.1} parent=11 // pred_fallthru
        _
      // Predicated region
      $region17: #{tpu_custom_call.1} parent=11 // pred_check
        %p209 = pneg %p81
      $region18: #{tpu_custom_call.1} parent=11 // pred_check_branch
        %211 = sbr.rel (%p209) target = $region20
      $region19: #{tpu_custom_call.1} parent=11 // pred_region
        _
      $region20: #{tpu_custom_call.1} parent=11 // pred_fallthru
        _
      // Predicated region
      $region21: #{tpu_custom_call.1} parent=11 // pred_check
        %p212 = pneg %p102
      $region22: #{tpu_custom_call.1} parent=11 // pred_check_branch
        %214 = sbr.rel (%p212) target = $region24
      $region23: #{tpu_custom_call.1} parent=11 // pred_region
        _
      $region24: #{tpu_custom_call.1} parent=11 // pred_fallthru
        _
      // Predicated region
      $region25: #{tpu_custom_call.1} parent=11 // pred_check
        %p215 = pneg %p123
      $region26: #{tpu_custom_call.1} parent=11 // pred_check_branch
        %217 = sbr.rel (%p215) target = $region28
      $region27: #{tpu_custom_call.1} parent=11 // pred_region
        _
      $region28: #{tpu_custom_call.1} parent=11 // pred_fallthru
        _
      // Predicated region
      $region29: #{tpu_custom_call.1} parent=11 // pred_check
        %p218 = pneg %p144
      $region30: #{tpu_custom_call.1} parent=11 // pred_check_branch
        %220 = sbr.rel (%p218) target = $region32
      $region31: #{tpu_custom_call.1} parent=11 // pred_region
        _
      $region32: #{tpu_custom_call.1} parent=11 // pred_fallthru
        _
      // Predicated region
      $region33: #{tpu_custom_call.1} parent=11 // pred_check
        %p221 = pneg %p165
      $region34: #{tpu_custom_call.1} parent=11 // pred_check_branch
        %223 = sbr.rel (%p221) target = $region36
      $region35: #{tpu_custom_call.1} parent=11 // pred_region
        _
      $region36: #{tpu_custom_call.1} parent=11 // pred_fallthru
        _
    $region12: #{tpu_custom_call.1} parent=5 // pred_fallthru
      _
    %p224 = scmp.lt.s32.totalorder %s13, 2
    // Predicated region
    $region37: #{tpu_custom_call.1} parent=5 // pred_check
      %p225 = pneg %p224
    $region38: #{tpu_custom_call.1} parent=5 // pred_check_branch
      %227 = sbr.rel (%p225) target = $region40
    $region39: #{tpu_custom_call.1} parent=5 // pred_region
      // Predicated region
      $region41: #{tpu_custom_call.1} parent=39 // pred_check
        %p228 = pneg %p33
      $region42: #{tpu_custom_call.1} parent=39 // pred_check_branch
        %230 = sbr.rel (%p228) target = $region44
      $region43: #{tpu_custom_call.1} parent=39 // pred_region
        %p231 = scmp.lt.s32.totalorder %s13, 1
        %s232 = scalar_select %p231, %s13, 1
        %s233 = smul.addr %s232, 36
        %s234 = smul.addr %s233, 8
        %s235 = scalar_lea.vmem %s0, %s234
      $region44: #{tpu_custom_call.1} parent=39 // pred_fallthru
        _
    $region40: #{tpu_custom_call.1} parent=5 // pred_fallthru
      _
    %p236 = scmp.le.s32.totalorder 1, %s13
    %p237 = scmp.lt.s32.totalorder %s13, 3
    %p238 = pnand %p236, %p237
    %p239 = pneg %p238
    // Predicated region
    $region45: #{tpu_custom_call.1} parent=5 // pred_check
      _
    $region46: #{tpu_custom_call.1} parent=5 // pred_check_branch
      %241 = sbr.rel (%p238) target = $region48
    $region47: #{tpu_custom_call.1} parent=5 // pred_region
      %s242 = ssub.s32 %s13, 1
      %p243 = scmp.lt.s32.totalorder %s18, 1
      %s244 = scalar_select %p243, %s18, 1
      %s245 = smul.addr %s244, 36
      %s246 = smul.addr %s245, 8
      %s247 = scalar_lea.vmem %s0, %s246
      %p248 = pneg %p39
      %p249 = pneg %p36
      %p250 = pneg %p60
      %p251 = pneg %p57
      %p252 = pneg %p81
      %p253 = pneg %p78
      %p254 = pneg %p102
      %p255 = pneg %p99
      %p256 = pneg %p123
      %p257 = pneg %p120
      %p258 = pneg %p144
      %p259 = pneg %p141
      %p260 = pneg %p165
      %p261 = pneg %p162
      %p262 = pneg %p191
      %p263 = pneg %p188
      %p264 = scmp.lt.s32.totalorder %s18, 1
      %s265 = scalar_select %p264, %s18, 1
      %s266 = smul.addr %s265, 2
      %s267 = smul.addr %s266, 4
      %s268 = scalar_lea.vmem %s7, %s267
      %p269 = scmp.lt.s32.totalorder %s18, 1
      %s270 = scalar_select %p269, %s18, 1
      %s271 = smul.addr %s270, 36
      %s272 = smul.addr %s271, 8
      %s273 = scalar_lea.vmem %s0, %s272
      %p274 = scmp.lt.s32.totalorder %s18, 1
      %s275 = scalar_select %p274, %s18, 1
      %s276 = smul.addr %s275, 2
      %s277 = smul.addr %s276, 4
      %s278 = scalar_lea.vmem %s7, %s277
      %v279 = vld [vmem:[%s273] sm:$0xff]
      %v280 = vld [vmem:[%s273 + $0x8] sm:$0xff]
      %v281 = vld [vmem:[%s273 + $0x10] sm:$0xff]
      %v282 = vld [vmem:[%s273 + $0x18] sm:$0xff]
      %v283 = vld [vmem:[%s273 + $0x20] sm:$0xff]
      %v284 = vld [vmem:[%s273 + $0x28] sm:$0xff]
      %v285 = vld [vmem:[%s273 + $0x30] sm:$0xff]
      %v286 = vld [vmem:[%s273 + $0x38] sm:$0xff]
      %v287 = vld [vmem:[%s273 + $0x40] sm:$0xff]
      %v288 = vld [vmem:[%s273 + $0x48] sm:$0xff]
      %v289 = vld [vmem:[%s273 + $0x50] sm:$0xff]
      %v290 = vld [vmem:[%s273 + $0x58] sm:$0xff]
      %v291 = vld [vmem:[%s273 + $0x60] sm:$0xff]
      %v292 = vld [vmem:[%s273 + $0x68] sm:$0xff]
      %v293 = vld [vmem:[%s273 + $0x70] sm:$0xff]
      %v294 = vld [vmem:[%s273 + $0x78] sm:$0xff]
      %v295 = vld [vmem:[%s273 + $0x80] sm:$0xff]
      %v296 = vld [vmem:[%s273 + $0x88] sm:$0xff]
      %v297 = vld [vmem:[%s273 + $0x90] sm:$0xff]
      %v298 = vld [vmem:[%s273 + $0x98] sm:$0xff]
      %v299 = vld [vmem:[%s273 + $0xa0] sm:$0xff]
      %v300 = vld [vmem:[%s273 + $0xa8] sm:$0xff]
      %v301 = vld [vmem:[%s273 + $0xb0] sm:$0xff]
      %v302 = vld [vmem:[%s273 + $0xb8] sm:$0xff]
      %v303 = vld [vmem:[%s273 + $0xc0] sm:$0xff]
      %v304 = vld [vmem:[%s273 + $0xc8] sm:$0xff]
      %v305 = vld [vmem:[%s273 + $0xd0] sm:$0xff]
      %v306 = vld [vmem:[%s273 + $0xd8] sm:$0xff]
      %v307 = vld [vmem:[%s273 + $0xe0] sm:$0xff]
      %v308 = vld [vmem:[%s273 + $0xe8] sm:$0xff]
      %v309 = vld [vmem:[%s273 + $0xf0] sm:$0xff]
      %v310 = vld [vmem:[%s273 + $0xf8] sm:$0xff]
      %v311 = vld [vmem:[%s273 + $0x100] sm:$0xff]
      %v312 = vld [vmem:[%s273 + $0x108] sm:$0xff]
      %v313 = vld [vmem:[%s273 + $0x110] sm:$0xff]
      %v314 = vld [vmem:[%s273 + $0x118] sm:$0xff]
      %v315 = vld [vmem:[%s1] sm:$0xff]
      %v316 = vld [vmem:[%s1 + $0x8] sm:$0xff]
      %v317 = vld [vmem:[%s1 + $0x10] sm:$0xff]
      %v318 = vld [vmem:[%s1 + $0x18] sm:$0xff]
      %v319 = vld [vmem:[%s1 + $0x20] sm:$0xff]
      %v320 = vld [vmem:[%s1 + $0x28] sm:$0xff]
      %v321 = vld [vmem:[%s1 + $0x30] sm:$0xff]
      %v322 = vld [vmem:[%s1 + $0x38] sm:$0xff]
      %v323 = vld [vmem:[%s1 + $0x40] sm:$0xff]
      %v324 = vld [vmem:[%s1 + $0x48] sm:$0xff]
      %v325 = vld [vmem:[%s1 + $0x50] sm:$0xff]
      %v326 = vld [vmem:[%s1 + $0x58] sm:$0xff]
      %v327 = vld [vmem:[%s1 + $0x60] sm:$0xff]
      %v328 = vld [vmem:[%s1 + $0x68] sm:$0xff]
      %v329 = vld [vmem:[%s1 + $0x70] sm:$0xff]
      %v330 = vld [vmem:[%s1 + $0x78] sm:$0xff]
      %v331 = vld [vmem:[%s1 + $0x80] sm:$0xff]
      %v332 = vld [vmem:[%s1 + $0x88] sm:$0xff]
      %v333 = vld [vmem:[%s1 + $0x90] sm:$0xff]
      %v334 = vld [vmem:[%s1 + $0x98] sm:$0xff]
      %v335 = vld [vmem:[%s1 + $0xa0] sm:$0xff]
      %v336 = vld [vmem:[%s1 + $0xa8] sm:$0xff]
      %v337 = vld [vmem:[%s1 + $0xb0] sm:$0xff]
      %v338 = vld [vmem:[%s1 + $0xb8] sm:$0xff]
      %v339 = vld [vmem:[%s1 + $0xc0] sm:$0xff]
      %v340 = vld [vmem:[%s1 + $0xc8] sm:$0xff]
      %v341 = vld [vmem:[%s1 + $0xd0] sm:$0xff]
      %v342 = vld [vmem:[%s1 + $0xd8] sm:$0xff]
      %v343 = vld [vmem:[%s1 + $0xe0] sm:$0xff]
      %v344 = vld [vmem:[%s1 + $0xe8] sm:$0xff]
      %v345 = vld [vmem:[%s1 + $0xf0] sm:$0xff]
      %v346 = vld [vmem:[%s1 + $0xf8] sm:$0xff]
      %v347 = vld [vmem:[%s2] sm:$0x1]
      %v349 = vlaneseq
      %v350 = vshrl.u32 %v349, 7
      %v351 = vsub.s32 0, %v350
      %v352 = vrot.slane %v347, %v351
      %354 = vmatprep.subr.mxu0 0.0
      %355 = vmatpush1.msra.mxu0 %v315
      %356 = vmatprep.subr.mxu0 0.0
      %357 = vmatpush1.msra.mxu0 %v316
      %358 = vmatprep.subr.mxu0 0.0
      %359 = vmatpush1.msra.mxu0 %v317
      %360 = vmatprep.subr.mxu0 0.0
      %361 = vmatpush1.msra.mxu0 %v318
      %362 = vmatprep.subr.mxu0 0.0
      %363 = vmatpush1.msra.mxu0 %v319
      %364 = vmatprep.subr.mxu0 0.0
      %365 = vmatpush1.msra.mxu0 %v320
      %366 = vmatprep.subr.mxu0 0.0
      %367 = vmatpush1.msra.mxu0 %v321
      %368 = vmatprep.subr.mxu0 0.0
      %369 = vmatpush1.msra.mxu0 %v322
      %370 = vmatprep.subr.mxu0 0.0
      %371 = vmatpush1.msra.mxu0 %v323
      %372 = vmatprep.subr.mxu0 0.0
      %373 = vmatpush1.msra.mxu0 %v324
      %374 = vmatprep.subr.mxu0 0.0
      %375 = vmatpush1.msra.mxu0 %v325
      %376 = vmatprep.subr.mxu0 0.0
      %377 = vmatpush1.msra.mxu0 %v326
      %378 = vmatprep.subr.mxu0 0.0
      %379 = vmatpush1.msra.mxu0 %v327
      %380 = vmatprep.subr.mxu0 0.0
      %381 = vmatpush1.msra.mxu0 %v328
      %382 = vmatprep.subr.mxu0 0.0
      %383 = vmatpush1.msra.mxu0 %v329
      %384 = vmatprep.subr.mxu0 0.0
      %385 = vmatpush1.msra.mxu0 %v330
      %386 = vmatprep.subr.mxu0 0.0
      %387 = vmatpush1.msra.mxu0 %v331
      %388 = vmatprep.subr.mxu0 0.0
      %389 = vmatpush1.msra.mxu0 %v332
      %390 = vmatprep.subr.mxu0 0.0
      %391 = vmatpush1.msra.mxu0 %v333
      %392 = vmatprep.subr.mxu0 0.0
      %393 = vmatpush1.msra.mxu0 %v334
      %394 = vmatprep.subr.mxu0 0.0
      %395 = vmatpush1.msra.mxu0 %v335
      %396 = vmatprep.subr.mxu0 0.0
      %397 = vmatpush1.msra.mxu0 %v336
      %398 = vmatprep.subr.mxu0 0.0
      %399 = vmatpush1.msra.mxu0 %v337
      %400 = vmatprep.subr.mxu0 0.0
      %401 = vmatpush1.msra.mxu0 %v338
      %402 = vmatprep.subr.mxu0 0.0
      %403 = vmatpush1.msra.mxu0 %v339
      %404 = vmatprep.subr.mxu0 0.0
      %405 = vmatpush1.msra.mxu0 %v340
      %406 = vmatprep.subr.mxu0 0.0
      %407 = vmatpush1.msra.mxu0 %v341
      %408 = vmatprep.subr.mxu0 0.0
      %409 = vmatpush1.msra.mxu0 %v342
      %410 = vmatprep.subr.mxu0 0.0
      %411 = vmatpush1.msra.mxu0 %v343
      %412 = vmatprep.subr.mxu0 0.0
      %413 = vmatpush1.msra.mxu0 %v344
      %414 = vmatprep.subr.mxu0 0.0
      %415 = vmatpush1.msra.mxu0 %v345
      %416 = vmatprep.subr.mxu0 0.0
      %417 = vmatpush1.msra.mxu0 %v346
      %418 = vmatprep.mubr.f32.mxu0 %v280
      %419 = vmatmul.mubr.f32.gmra.mrb[0].mxu0 %v279
      %v420 = vpop.f32.mrb[0].mxu0
      %v421 = vadd.f32 %v352, %v420
      %v422 = vpop.f32.mrb[0].mxu0
      %423 = vmatprep.mubr.f32.mxu0 %v282
      %424 = vmatmul.mubr.f32.gmra.mrb[0].mxu0 %v281
      %v425 = vpop.f32.mrb[0].mxu0
      %v426 = vadd.f32 %v352, %v425
      %v427 = vpop.f32.mrb[0].mxu0
      %428 = vmatprep.mubr.f32.mxu0 %v284
      %429 = vmatmul.mubr.f32.gmra.mrb[0].mxu0 %v283
      %v430 = vpop.f32.mrb[0].mxu0
      %v431 = vadd.f32 %v352, %v430
      %v432 = vpop.f32.mrb[0].mxu0
      %433 = vmatprep.mubr.f32.mxu0 %v286
      %434 = vmatmul.mubr.f32.gmra.mrb[0].mxu0 %v285
      %v435 = vpop.f32.mrb[0].mxu0
      %v436 = vadd.f32 %v352, %v435
      %v437 = vpop.f32.mrb[0].mxu0
      %438 = vmatprep.mubr.f32.mxu0 %v288
      %439 = vmatmul.mubr.f32.gmra.mrb[0].mxu0 %v287
      %v440 = vpop.f32.mrb[0].mxu0
      %v441 = vadd.f32 %v352, %v440
      %v442 = vpop.f32.mrb[0].mxu0
      %443 = vmatprep.mubr.f32.mxu0 %v290
      %444 = vmatmul.mubr.f32.gmra.mrb[0].mxu0 %v289
      %v445 = vpop.f32.mrb[0].mxu0
      %v446 = vadd.f32 %v352, %v445
      %v447 = vpop.f32.mrb[0].mxu0
      %448 = vmatprep.mubr.f32.mxu0 %v292
      %449 = vmatmul.mubr.f32.gmra.mrb[0].mxu0 %v291
      %v450 = vpop.f32.mrb[0].mxu0
      %v451 = vadd.f32 %v352, %v450
      %v452 = vpop.f32.mrb[0].mxu0
      %453 = vmatprep.mubr.f32.mxu0 %v294
      %454 = vmatmul.mubr.f32.gmra.mrb[0].mxu0 %v293
      %v455 = vpop.f32.mrb[0].mxu0
      %v456 = vadd.f32 %v352, %v455
      %v457 = vpop.f32.mrb[0].mxu0
      %458 = vmatprep.mubr.f32.mxu0 %v296
      %459 = vmatmul.mubr.f32.gmra.mrb[0].mxu0 %v295
      %v460 = vpop.f32.mrb[0].mxu0
      %v461 = vadd.f32 %v352, %v460
      %v462 = vpop.f32.mrb[0].mxu0
      %463 = vmatprep.mubr.f32.mxu0 %v298
      %464 = vmatmul.mubr.f32.gmra.mrb[0].mxu0 %v297
      %v465 = vpop.f32.mrb[0].mxu0
      %v466 = vadd.f32 %v352, %v465
      %v467 = vpop.f32.mrb[0].mxu0
      %468 = vmatprep.mubr.f32.mxu0 %v300
      %469 = vmatmul.mubr.f32.gmra.mrb[0].mxu0 %v299
      %v470 = vpop.f32.mrb[0].mxu0
      %v471 = vadd.f32 %v352, %v470
      %v472 = vpop.f32.mrb[0].mxu0
      %473 = vmatprep.mubr.f32.mxu0 %v302
      %474 = vmatmul.mubr.f32.gmra.mrb[0].mxu0 %v301
      %v475 = vpop.f32.mrb[0].mxu0
      %v476 = vadd.f32 %v352, %v475
      %v477 = vpop.f32.mrb[0].mxu0
      %478 = vmatprep.mubr.f32.mxu0 %v304
      %479 = vmatmul.mubr.f32.gmra.mrb[0].mxu0 %v303
      %v480 = vpop.f32.mrb[0].mxu0
      %v481 = vadd.f32 %v352, %v480
      %v482 = vpop.f32.mrb[0].mxu0
      %483 = vmatprep.mubr.f32.mxu0 %v306
      %484 = vmatmul.mubr.f32.gmra.mrb[0].mxu0 %v305
      %v485 = vpop.f32.mrb[0].mxu0
      %v486 = vadd.f32 %v352, %v485
      %v487 = vpop.f32.mrb[0].mxu0
      %488 = vmatprep.mubr.f32.mxu0 %v308
      %489 = vmatmul.mubr.f32.gmra.mrb[0].mxu0 %v307
      %v490 = vpop.f32.mrb[0].mxu0
      %v491 = vadd.f32 %v352, %v490
      %v492 = vpop.f32.mrb[0].mxu0
      %493 = vmatprep.mubr.f32.mxu0 %v310
      %494 = vmatmul.mubr.f32.gmra.mrb[0].mxu0 %v309
      %v495 = vpop.f32.mrb[0].mxu0
      %v496 = vadd.f32 %v352, %v495
      %v497 = vpop.f32.mrb[0].mxu0
      %498 = vmatprep.mubr.f32.mxu0 %v312
      %499 = vmatmul.mubr.f32.gmra.mrb[0].mxu0 %v311
      %v500 = vpop.f32.mrb[0].mxu0
      %v501 = vadd.f32 %v352, %v500
      %v502 = vpop.f32.mrb[0].mxu0
      %503 = vmatprep.mubr.f32.mxu0 %v314
      %504 = vmatmul.mubr.f32.gmra.mrb[0].mxu0 %v313
      %v505 = vpop.f32.mrb[0].mxu0
      %v506 = vadd.f32 %v352, %v505
      %v507 = vpop.f32.mrb[0].mxu0
      %508 = vdwg.mxu0
      %v509 = vmax.f32 %v421, 0.0
      %v510 = vmax.f32 %v426, 0.0
      %v511 = vmax.f32 %v431, 0.0
      %v512 = vmax.f32 %v436, 0.0
      %v513 = vmax.f32 %v441, 0.0
      %v514 = vmax.f32 %v446, 0.0
      %v515 = vmax.f32 %v451, 0.0
      %v516 = vmax.f32 %v456, 0.0
      %v517 = vmax.f32 %v461, 0.0
      %v518 = vmax.f32 %v466, 0.0
      %v519 = vmax.f32 %v471, 0.0
      %v520 = vmax.f32 %v476, 0.0
      %v521 = vmax.f32 %v481, 0.0
      %v522 = vmax.f32 %v486, 0.0
      %v523 = vmax.f32 %v491, 0.0
      %v524 = vmax.f32 %v496, 0.0
      %v525 = vmax.f32 %v501, 0.0
      %v526 = vmax.f32 %v506, 0.0
      %v545 = vcombine.high %v509, %v509
      %v546 = vcombine.high %v510, %v510
      %v547 = vcombine.high %v511, %v511
      %v548 = vcombine.high %v512, %v512
      %v549 = vcombine.high %v513, %v513
      %v550 = vcombine.high %v514, %v514
      %v551 = vcombine.high %v515, %v515
      %v552 = vcombine.high %v516, %v516
      %v553 = vcombine.high %v517, %v517
      %v554 = vcombine.high %v518, %v518
      %v555 = vcombine.high %v519, %v519
      %v556 = vcombine.high %v520, %v520
      %v557 = vcombine.high %v521, %v521
      %v558 = vcombine.high %v522, %v522
      %v559 = vcombine.high %v523, %v523
      %v560 = vcombine.high %v524, %v524
      %v561 = vcombine.high %v525, %v525
      %v562 = vcombine.high %v526, %v526
      %v563 = vcombine.low %v509, %v545
      %v564 = vcombine.low %v546, %v511
      %v565 = vcombine.low %v512, %v548
      %v566 = vcombine.low %v549, %v514
      %v567 = vcombine.low %v515, %v551
      %v568 = vcombine.low %v552, %v517
      %v569 = vcombine.low %v518, %v554
      %v570 = vcombine.low %v555, %v520
      %v571 = vcombine.low %v521, %v557
      %v572 = vcombine.low %v558, %v523
      %v573 = vcombine.low %v524, %v560
      %v574 = vcombine.low %v561, %v526
      %vm576 = vcmask 1041408
      %v577 = vrot.slane 0.0, 6
      %v578 = vsel %vm576, %v577, %v577
      %v579 = vrot.slane %v563, 6
      %v580 = vrot.slane %v510, 6
      %v581 = vsel %vm576, %v579, %v580
      %v582 = vrot.slane %v564, 6
      %v583 = vrot.slane %v547, 6
      %v584 = vsel %vm576, %v582, %v583
      %v585 = vrot.slane %v565, 6
      %v586 = vrot.slane %v513, 6
      %v587 = vsel %vm576, %v585, %v586
      %v588 = vrot.slane %v566, 6
      %v589 = vrot.slane %v550, 6
      %v590 = vsel %vm576, %v588, %v589
      %v591 = vrot.slane %v567, 6
      %v592 = vrot.slane %v516, 6
      %v593 = vsel %vm576, %v591, %v592
      %v594 = vrot.slane %v568, 6
      %v595 = vrot.slane %v553, 6
      %v596 = vsel %vm576, %v594, %v595
      %v597 = vrot.slane %v569, 6
      %v598 = vrot.slane %v519, 6
      %v599 = vsel %vm576, %v597, %v598
      %v600 = vrot.slane %v570, 6
      %v601 = vrot.slane %v556, 6
      %v602 = vsel %vm576, %v600, %v601
      %v603 = vrot.slane %v571, 6
      %v604 = vrot.slane %v522, 6
      %v605 = vsel %vm576, %v603, %v604
      %v606 = vrot.slane %v572, 6
      %v607 = vrot.slane %v559, 6
      %v608 = vsel %vm576, %v606, %v607
      %v609 = vrot.slane %v573, 6
      %v610 = vrot.slane %v525, 6
      %v611 = vsel %vm576, %v609, %v610
      %v612 = vrot.slane %v574, 6
      %v613 = vrot.slane %v562, 6
      %v614 = vsel %vm576, %v612, %v613
      %v641 = vsel %vm576, 0.0, %v577
      %v642 = vsel %vm576, 0.0, %v579
      %v643 = vsel %vm576, 0.0, %v582
      %v644 = vsel %vm576, 0.0, %v585
      %v645 = vsel %vm576, 0.0, %v588
      %v646 = vsel %vm576, 0.0, %v591
      %v647 = vsel %vm576, 0.0, %v594
      %v648 = vsel %vm576, 0.0, %v597
      %v649 = vsel %vm576, 0.0, %v600
      %v650 = vsel %vm576, 0.0, %v603
      %v651 = vsel %vm576, 0.0, %v606
      %v652 = vsel %vm576, 0.0, %v609
      %v653 = vsel %vm576, 0.0, %v612
      %vm654 = vcmask 1045504
      %v655 = vsel %vm654, %v578, 0.0
      %v656 = vsel %vm654, %v581, 0.0
      %v657 = vsel %vm654, %v584, 0.0
      %v658 = vsel %vm654, %v587, 0.0
      %v659 = vsel %vm654, %v590, 0.0
      %v660 = vsel %vm654, %v593, 0.0
      %v661 = vsel %vm654, %v596, 0.0
      %v662 = vsel %vm654, %v599, 0.0
      %v663 = vsel %vm654, %v602, 0.0
      %v664 = vsel %vm654, %v605, 0.0
      %v665 = vsel %vm654, %v608, 0.0
      %v666 = vsel %vm654, %v611, 0.0
      %v667 = vsel %vm654, %v614, 0.0
      %v668 = vld [vmem:[%s3] sm:$0xff]
      %v669 = vld [vmem:[%s3 + $0x8] sm:$0xff]
      %v670 = vld [vmem:[%s3 + $0x10] sm:$0xff]
      %v671 = vld [vmem:[%s3 + $0x18] sm:$0xff]
      %v672 = vld [vmem:[%s3 + $0x20] sm:$0xff]
      %v673 = vld [vmem:[%s3 + $0x28] sm:$0xff]
      %v674 = vld [vmem:[%s3 + $0x30] sm:$0xff]
      %v675 = vld [vmem:[%s3 + $0x38] sm:$0xff]
      %v676 = vld [vmem:[%s4] sm:$0x1]
      %v678 = vlaneseq
      %v679 = vshrl.u32 %v678, 7
      %v680 = vsub.s32 0, %v679
      %v681 = vrot.slane %v676, %v680
      %vm683 = vcmask 523264
      %v685 = vsel %vm683, %v641, 0
      %v688 = vsel %vm683, %v655, 0
      %v691 = vsel %vm683, %v642, 0
      %v694 = vsel %vm683, %v656, 0
      %v697 = vsel %vm683, %v643, 0
      %v700 = vsel %vm683, %v657, 0
      %v703 = vsel %vm683, %v644, 0
      %v706 = vsel %vm683, %v658, 0
      %v709 = vsel %vm683, %v645, 0
      %v712 = vsel %vm683, %v659, 0
      %v715 = vsel %vm683, %v646, 0
      %v718 = vsel %vm683, %v660, 0
      %v721 = vsel %vm683, %v647, 0
      %v724 = vsel %vm683, %v661, 0
      %v727 = vsel %vm683, %v648, 0
      %v730 = vsel %vm683, %v662, 0
      %v733 = vsel %vm683, %v649, 0
      %v736 = vsel %vm683, %v663, 0
      %v739 = vsel %vm683, %v650, 0
      %v742 = vsel %vm683, %v664, 0
      %v745 = vsel %vm683, %v651, 0
      %v748 = vsel %vm683, %v665, 0
      %v751 = vsel %vm683, %v652, 0
      %v754 = vsel %vm683, %v666, 0
      %v757 = vsel %vm683, %v653, 0
      %v760 = vsel %vm683, %v667, 0
      %762 = vmatprep.subr.mxu0 0.0
      %763 = vmatpush1.msra.mxu0 %v668
      %764 = vmatprep.subr.mxu0 0.0
      %765 = vmatpush1.msra.mxu0 %v669
      %766 = vmatprep.subr.mxu0 0.0
      %767 = vmatpush1.msra.mxu0 %v670
      %768 = vmatprep.subr.mxu0 0.0
      %769 = vmatpush1.msra.mxu0 %v671
      %770 = vmatprep.subr.mxu0 0.0
      %771 = vmatpush1.msra.mxu0 %v672
      %772 = vmatprep.subr.mxu0 0.0
      %773 = vmatpush1.msra.mxu0 %v673
      %774 = vmatprep.subr.mxu0 0.0
      %775 = vmatpush1.msra.mxu0 %v674
      %776 = vmatprep.subr.mxu0 0.0
      %777 = vmatpush1.msra.mxu0 %v675
      %778 = vmatprep.subr.mxu0 0.0
      %779 = vmatpush1.msra.mxu0 0.0
      %780 = vmatprep.subr.mxu0 0.0
      %781 = vmatpush1.msra.mxu0 0.0
      %782 = vmatprep.subr.mxu0 0.0
      %783 = vmatpush1.msra.mxu0 0.0
      %784 = vmatprep.subr.mxu0 0.0
      %785 = vmatpush1.msra.mxu0 0.0
      %786 = vmatprep.subr.mxu0 0.0
      %787 = vmatpush1.msra.mxu0 0.0
      %788 = vmatprep.subr.mxu0 0.0
      %789 = vmatpush1.msra.mxu0 0.0
      %790 = vmatprep.subr.mxu0 0.0
      %791 = vmatpush1.msra.mxu0 0.0
      %792 = vmatprep.subr.mxu0 0.0
      %793 = vmatpush1.msra.mxu0 0.0
      %794 = vmatprep.subr.mxu0 0.0
      %795 = vmatpush1.msra.mxu0 0.0
      %796 = vmatprep.subr.mxu0 0.0
      %797 = vmatpush1.msra.mxu0 0.0
      %798 = vmatprep.subr.mxu0 0.0
      %799 = vmatpush1.msra.mxu0 0.0
      %800 = vmatprep.subr.mxu0 0.0
      %801 = vmatpush1.msra.mxu0 0.0
      %802 = vmatprep.subr.mxu0 0.0
      %803 = vmatpush1.msra.mxu0 0.0
      %804 = vmatprep.subr.mxu0 0.0
      %805 = vmatpush1.msra.mxu0 0.0
      %806 = vmatprep.subr.mxu0 0.0
      %807 = vmatpush1.msra.mxu0 0.0
      %808 = vmatprep.subr.mxu0 0.0
      %809 = vmatpush1.msra.mxu0 0.0
      %810 = vmatprep.subr.mxu0 0.0
      %811 = vmatpush1.msra.mxu0 0.0
      %812 = vmatprep.subr.mxu0 0.0
      %813 = vmatpush1.msra.mxu0 0.0
      %814 = vmatprep.subr.mxu0 0.0
      %815 = vmatpush1.msra.mxu0 0.0
      %816 = vmatprep.subr.mxu0 0.0
      %817 = vmatpush1.msra.mxu0 0.0
      %818 = vmatprep.subr.mxu0 0.0
      %819 = vmatpush1.msra.mxu0 0.0
      %820 = vmatprep.subr.mxu0 0.0
      %821 = vmatpush1.msra.mxu0 0.0
      %822 = vmatprep.subr.mxu0 0.0
      %823 = vmatpush1.msra.mxu0 0.0
      %824 = vmatprep.subr.mxu0 0.0
      %825 = vmatpush1.msra.mxu0 0.0
      %826 = vmatprep.mubr.f32.mxu0 0.0
      %827 = vmatmul.mubr.f32.gmra.mrb[0].mxu0 %v685
      %v828 = vpop.f32.mrb[0].mxu0
      %v829 = vadd.f32 %v681, %v828
      %v830 = vpop.f32.mrb[0].mxu0
      %831 = vmatprep.mubr.f32.mxu0 0.0
      %832 = vmatmul.mubr.f32.gmra.mrb[0].mxu0 %v688
      %v833 = vpop.f32.mrb[0].mxu0
      %v834 = vadd.f32 %v681, %v833
      %v835 = vpop.f32.mrb[0].mxu0
      %836 = vmatprep.mubr.f32.mxu0 0.0
      %837 = vmatmul.mubr.f32.gmra.mrb[0].mxu0 %v685
      %v838 = vpop.f32.mrb[0].mxu0
      %v839 = vadd.f32 %v681, %v838
      %v840 = vpop.f32.mrb[0].mxu0
      %841 = vmatprep.mubr.f32.mxu0 0.0
      %842 = vmatmul.mubr.f32.gmra.mrb[0].mxu0 %v688
      %v843 = vpop.f32.mrb[0].mxu0
      %v844 = vadd.f32 %v681, %v843
      %v845 = vpop.f32.mrb[0].mxu0
      %846 = vmatprep.mubr.f32.mxu0 0.0
      %847 = vmatmul.mubr.f32.gmra.mrb[0].mxu0 %v691
      %v848 = vpop.f32.mrb[0].mxu0
      %v849 = vadd.f32 %v681, %v848
      %v850 = vpop.f32.mrb[0].mxu0
      %851 = vmatprep.mubr.f32.mxu0 0.0
      %852 = vmatmul.mubr.f32.gmra.mrb[0].mxu0 %v694
      %v853 = vpop.f32.mrb[0].mxu0
      %v854 = vadd.f32 %v681, %v853
      %v855 = vpop.f32.mrb[0].mxu0
      %856 = vmatprep.mubr.f32.mxu0 0.0
      %857 = vmatmul.mubr.f32.gmra.mrb[0].mxu0 %v697
      %v858 = vpop.f32.mrb[0].mxu0
      %v859 = vadd.f32 %v681, %v858
      %v860 = vpop.f32.mrb[0].mxu0
      %861 = vmatprep.mubr.f32.mxu0 0.0
      %862 = vmatmul.mubr.f32.gmra.mrb[0].mxu0 %v700
      %v863 = vpop.f32.mrb[0].mxu0
      %v864 = vadd.f32 %v681, %v863
      %v865 = vpop.f32.mrb[0].mxu0
      %866 = vmatprep.mubr.f32.mxu0 0.0
      %867 = vmatmul.mubr.f32.gmra.mrb[0].mxu0 %v703
      %v868 = vpop.f32.mrb[0].mxu0
      %v869 = vadd.f32 %v681, %v868
      %v870 = vpop.f32.mrb[0].mxu0
      %871 = vmatprep.mubr.f32.mxu0 0.0
      %872 = vmatmul.mubr.f32.gmra.mrb[0].mxu0 %v706
      %v873 = vpop.f32.mrb[0].mxu0
      %v874 = vadd.f32 %v681, %v873
      %v875 = vpop.f32.mrb[0].mxu0
      %876 = vmatprep.mubr.f32.mxu0 0.0
      %877 = vmatmul.mubr.f32.gmra.mrb[0].mxu0 %v709
      %v878 = vpop.f32.mrb[0].mxu0
      %v879 = vadd.f32 %v681, %v878
      %v880 = vpop.f32.mrb[0].mxu0
      %881 = vmatprep.mubr.f32.mxu0 0.0
      %882 = vmatmul.mubr.f32.gmra.mrb[0].mxu0 %v712
      %v883 = vpop.f32.mrb[0].mxu0
      %v884 = vadd.f32 %v681, %v883
      %v885 = vpop.f32.mrb[0].mxu0
      %886 = vmatprep.mubr.f32.mxu0 0.0
      %887 = vmatmul.mubr.f32.gmra.mrb[0].mxu0 %v715
      %v888 = vpop.f32.mrb[0].mxu0
      %v889 = vadd.f32 %v681, %v888
      %v890 = vpop.f32.mrb[0].mxu0
      %891 = vmatprep.mubr.f32.mxu0 0.0
      %892 = vmatmul.mubr.f32.gmra.mrb[0].mxu0 %v718
      %v893 = vpop.f32.mrb[0].mxu0
      %v894 = vadd.f32 %v681, %v893
      %v895 = vpop.f32.mrb[0].mxu0
      %896 = vmatprep.mubr.f32.mxu0 0.0
      %897 = vmatmul.mubr.f32.gmra.mrb[0].mxu0 %v721
      %v898 = vpop.f32.mrb[0].mxu0
      %v899 = vadd.f32 %v681, %v898
      %v900 = vpop.f32.mrb[0].mxu0
      %901 = vmatprep.mubr.f32.mxu0 0.0
      %902 = vmatmul.mubr.f32.gmra.mrb[0].mxu0 %v724
      %v903 = vpop.f32.mrb[0].mxu0
      %v904 = vadd.f32 %v681, %v903
      %v905 = vpop.f32.mrb[0].mxu0
      %906 = vmatprep.mubr.f32.mxu0 0.0
      %907 = vmatmul.mubr.f32.gmra.mrb[0].mxu0 %v727
      %v908 = vpop.f32.mrb[0].mxu0
      %v909 = vadd.f32 %v681, %v908
      %v910 = vpop.f32.mrb[0].mxu0
      %911 = vmatprep.mubr.f32.mxu0 0.0
      %912 = vmatmul.mubr.f32.gmra.mrb[0].mxu0 %v730
      %v913 = vpop.f32.mrb[0].mxu0
      %v914 = vadd.f32 %v681, %v913
      %v915 = vpop.f32.mrb[0].mxu0
      %916 = vmatprep.mubr.f32.mxu0 0.0
      %917 = vmatmul.mubr.f32.gmra.mrb[0].mxu0 %v733
      %v918 = vpop.f32.mrb[0].mxu0
      %v919 = vadd.f32 %v681, %v918
      %v920 = vpop.f32.mrb[0].mxu0
      %921 = vmatprep.mubr.f32.mxu0 0.0
      %922 = vmatmul.mubr.f32.gmra.mrb[0].mxu0 %v736
      %v923 = vpop.f32.mrb[0].mxu0
      %v924 = vadd.f32 %v681, %v923
      %v925 = vpop.f32.mrb[0].mxu0
      %926 = vmatprep.mubr.f32.mxu0 0.0
      %927 = vmatmul.mubr.f32.gmra.mrb[0].mxu0 %v739
      %v928 = vpop.f32.mrb[0].mxu0
      %v929 = vadd.f32 %v681, %v928
      %v930 = vpop.f32.mrb[0].mxu0
      %931 = vmatprep.mubr.f32.mxu0 0.0
      %932 = vmatmul.mubr.f32.gmra.mrb[0].mxu0 %v742
      %v933 = vpop.f32.mrb[0].mxu0
      %v934 = vadd.f32 %v681, %v933
      %v935 = vpop.f32.mrb[0].mxu0
      %936 = vmatprep.mubr.f32.mxu0 0.0
      %937 = vmatmul.mubr.f32.gmra.mrb[0].mxu0 %v745
      %v938 = vpop.f32.mrb[0].mxu0
      %v939 = vadd.f32 %v681, %v938
      %v940 = vpop.f32.mrb[0].mxu0
      %941 = vmatprep.mubr.f32.mxu0 0.0
      %942 = vmatmul.mubr.f32.gmra.mrb[0].mxu0 %v748
      %v943 = vpop.f32.mrb[0].mxu0
      %v944 = vadd.f32 %v681, %v943
      %v945 = vpop.f32.mrb[0].mxu0
      %946 = vmatprep.mubr.f32.mxu0 0.0
      %947 = vmatmul.mubr.f32.gmra.mrb[0].mxu0 %v751
      %v948 = vpop.f32.mrb[0].mxu0
      %v949 = vadd.f32 %v681, %v948
      %v950 = vpop.f32.mrb[0].mxu0
      %951 = vmatprep.mubr.f32.mxu0 0.0
      %952 = vmatmul.mubr.f32.gmra.mrb[0].mxu0 %v754
      %v953 = vpop.f32.mrb[0].mxu0
      %v954 = vadd.f32 %v681, %v953
      %v955 = vpop.f32.mrb[0].mxu0
      %956 = vmatprep.mubr.f32.mxu0 0.0
      %957 = vmatmul.mubr.f32.gmra.mrb[0].mxu0 %v757
      %v958 = vpop.f32.mrb[0].mxu0
      %v959 = vadd.f32 %v681, %v958
      %v960 = vpop.f32.mrb[0].mxu0
      %961 = vmatprep.mubr.f32.mxu0 0.0
      %962 = vmatmul.mubr.f32.gmra.mrb[0].mxu0 %v760
      %v963 = vpop.f32.mrb[0].mxu0
      %v964 = vadd.f32 %v681, %v963
      %v965 = vpop.f32.mrb[0].mxu0
      %966 = vmatprep.mubr.f32.mxu0 0.0
      %967 = vmatmul.mubr.f32.gmra.mrb[0].mxu0 %v685
      %v968 = vpop.f32.mrb[0].mxu0
      %v969 = vadd.f32 %v681, %v968
      %v970 = vpop.f32.mrb[0].mxu0
      %971 = vmatprep.mubr.f32.mxu0 0.0
      %972 = vmatmul.mubr.f32.gmra.mrb[0].mxu0 %v688
      %v973 = vpop.f32.mrb[0].mxu0
      %v974 = vadd.f32 %v681, %v973
      %v975 = vpop.f32.mrb[0].mxu0
      %976 = vmatprep.mubr.f32.mxu0 0.0
      %977 = vmatmul.mubr.f32.gmra.mrb[0].mxu0 %v685
      %v978 = vpop.f32.mrb[0].mxu0
      %v979 = vadd.f32 %v681, %v978
      %v980 = vpop.f32.mrb[0].mxu0
      %981 = vmatprep.mubr.f32.mxu0 0.0
      %982 = vmatmul.mubr.f32.gmra.mrb[0].mxu0 %v688
      %v983 = vpop.f32.mrb[0].mxu0
      %v984 = vadd.f32 %v681, %v983
      %v985 = vpop.f32.mrb[0].mxu0
      %986 = vdwg.mxu0
      %v987 = vmax.f32 %v829, 0.0
      %v988 = vmax.f32 %v834, 0.0
      %v989 = vmax.f32 %v839, 0.0
      %v990 = vmax.f32 %v844, 0.0
      %v991 = vmax.f32 %v849, 0.0
      %v992 = vmax.f32 %v854, 0.0
      %v993 = vmax.f32 %v859, 0.0
      %v994 = vmax.f32 %v864, 0.0
      %v995 = vmax.f32 %v869, 0.0
      %v996 = vmax.f32 %v874, 0.0
      %v997 = vmax.f32 %v879, 0.0
      %v998 = vmax.f32 %v884, 0.0
      %v999 = vmax.f32 %v889, 0.0
      %v1000 = vmax.f32 %v894, 0.0
      %v1001 = vmax.f32 %v899, 0.0
      %v1002 = vmax.f32 %v904, 0.0
      %v1003 = vmax.f32 %v909, 0.0
      %v1004 = vmax.f32 %v914, 0.0
      %v1005 = vmax.f32 %v919, 0.0
      %v1006 = vmax.f32 %v924, 0.0
      %v1007 = vmax.f32 %v929, 0.0
      %v1008 = vmax.f32 %v934, 0.0
      %v1009 = vmax.f32 %v939, 0.0
      %v1010 = vmax.f32 %v944, 0.0
      %v1011 = vmax.f32 %v949, 0.0
      %v1012 = vmax.f32 %v954, 0.0
      %v1013 = vmax.f32 %v959, 0.0
      %v1014 = vmax.f32 %v964, 0.0
      %v1015 = vmax.f32 %v969, 0.0
      %v1016 = vmax.f32 %v974, 0.0
      %v1017 = vmax.f32 %v979, 0.0
      %v1018 = vmax.f32 %v984, 0.0
      %v1051 = vrot.slane %v987, 6
      %v1052 = vrot.slane %v988, 6
      %v1053 = vsel %vm576, %v1051, %v1052
      %v1054 = vrot.slane %v989, 6
      %v1055 = vrot.slane %v990, 6
      %v1056 = vsel %vm576, %v1054, %v1055
      %v1057 = vrot.slane %v991, 6
      %v1058 = vrot.slane %v992, 6
      %v1059 = vsel %vm576, %v1057, %v1058
      %v1060 = vrot.slane %v993, 6
      %v1061 = vrot.slane %v994, 6
      %v1062 = vsel %vm576, %v1060, %v1061
      %v1063 = vrot.slane %v995, 6
      %v1064 = vrot.slane %v996, 6
      %v1065 = vsel %vm576, %v1063, %v1064
      %v1066 = vrot.slane %v997, 6
      %v1067 = vrot.slane %v998, 6
      %v1068 = vsel %vm576, %v1066, %v1067
      %v1069 = vrot.slane %v999, 6
      %v1070 = vrot.slane %v1000, 6
      %v1071 = vsel %vm576, %v1069, %v1070
      %v1072 = vrot.slane %v1001, 6
      %v1073 = vrot.slane %v1002, 6
      %v1074 = vsel %vm576, %v1072, %v1073
      %v1075 = vrot.slane %v1003, 6
      %v1076 = vrot.slane %v1004, 6
      %v1077 = vsel %vm576, %v1075, %v1076
      %v1078 = vrot.slane %v1005, 6
      %v1079 = vrot.slane %v1006, 6
      %v1080 = vsel %vm576, %v1078, %v1079
      %v1081 = vrot.slane %v1007, 6
      %v1082 = vrot.slane %v1008, 6
      %v1083 = vsel %vm576, %v1081, %v1082
      %v1084 = vrot.slane %v1009, 6
      %v1085 = vrot.slane %v1010, 6
      %v1086 = vsel %vm576, %v1084, %v1085
      %v1087 = vrot.slane %v1011, 6
      %v1088 = vrot.slane %v1012, 6
      %v1089 = vsel %vm576, %v1087, %v1088
      %v1090 = vrot.slane %v1013, 6
      %v1091 = vrot.slane %v1014, 6
      %v1092 = vsel %vm576, %v1090, %v1091
      %v1093 = vrot.slane %v1015, 6
      %v1094 = vrot.slane %v1016, 6
      %v1095 = vsel %vm576, %v1093, %v1094
      %v1096 = vrot.slane %v1017, 6
      %v1097 = vrot.slane %v1018, 6
      %v1098 = vsel %vm576, %v1096, %v1097
      %v1147 = vsel %vm576, 0.0, %v1051
      %v1148 = vsel %vm576, 0.0, %v1054
      %v1149 = vsel %vm576, 0.0, %v1057
      %v1150 = vsel %vm576, 0.0, %v1060
      %v1151 = vsel %vm576, 0.0, %v1063
      %v1152 = vsel %vm576, 0.0, %v1066
      %v1153 = vsel %vm576, 0.0, %v1069
      %v1154 = vsel %vm576, 0.0, %v1072
      %v1155 = vsel %vm576, 0.0, %v1075
      %v1156 = vsel %vm576, 0.0, %v1078
      %v1157 = vsel %vm576, 0.0, %v1081
      %v1158 = vsel %vm576, 0.0, %v1084
      %v1159 = vsel %vm576, 0.0, %v1087
      %v1160 = vsel %vm576, 0.0, %v1090
      %v1161 = vsel %vm576, 0.0, %v1093
      %v1162 = vsel %vm576, 0.0, %v1096
      %v1163 = vsel %vm576, %v577, 0.0
      %v1164 = vsel %vm576, %v1052, 0.0
      %v1165 = vsel %vm576, %v1055, 0.0
      %v1166 = vsel %vm576, %v1058, 0.0
      %v1167 = vsel %vm576, %v1061, 0.0
      %v1168 = vsel %vm576, %v1064, 0.0
      %v1169 = vsel %vm576, %v1067, 0.0
      %v1170 = vsel %vm576, %v1070, 0.0
      %v1171 = vsel %vm576, %v1073, 0.0
      %v1172 = vsel %vm576, %v1076, 0.0
      %v1173 = vsel %vm576, %v1079, 0.0
      %v1174 = vsel %vm576, %v1082, 0.0
      %v1175 = vsel %vm576, %v1085, 0.0
      %v1176 = vsel %vm576, %v1088, 0.0
      %v1177 = vsel %vm576, %v1091, 0.0
      %v1178 = vsel %vm576, %v1094, 0.0
      %v1179 = vsel %vm576, %v1097, 0.0
      %vm1209 = vcmask 1046528
      %v1210 = vrot.slane %v641, 1
      %v1211 = vrot.slane %v578, 1
      %v1212 = vsel %vm1209, %v1210, %v1211
      %v1213 = vrot.slane %v1163, 1
      %v1214 = vsel %vm1209, %v1211, %v1213
      %v1215 = vrot.slane %v1147, 1
      %v1216 = vrot.slane %v1053, 1
      %v1217 = vsel %vm1209, %v1215, %v1216
      %v1218 = vrot.slane %v1164, 1
      %v1219 = vsel %vm1209, %v1216, %v1218
      %v1220 = vrot.slane %v1148, 1
      %v1221 = vrot.slane %v1056, 1
      %v1222 = vsel %vm1209, %v1220, %v1221
      %v1223 = vrot.slane %v1165, 1
      %v1224 = vsel %vm1209, %v1221, %v1223
      %v1225 = vrot.slane %v1149, 1
      %v1226 = vrot.slane %v1059, 1
      %v1227 = vsel %vm1209, %v1225, %v1226
      %v1228 = vrot.slane %v1166, 1
      %v1229 = vsel %vm1209, %v1226, %v1228
      %v1230 = vrot.slane %v1150, 1
      %v1231 = vrot.slane %v1062, 1
      %v1232 = vsel %vm1209, %v1230, %v1231
      %v1233 = vrot.slane %v1167, 1
      %v1234 = vsel %vm1209, %v1231, %v1233
      %v1235 = vrot.slane %v1151, 1
      %v1236 = vrot.slane %v1065, 1
      %v1237 = vsel %vm1209, %v1235, %v1236
      %v1238 = vrot.slane %v1168, 1
      %v1239 = vsel %vm1209, %v1236, %v1238
      %v1240 = vrot.slane %v1152, 1
      %v1241 = vrot.slane %v1068, 1
      %v1242 = vsel %vm1209, %v1240, %v1241
      %v1243 = vrot.slane %v1169, 1
      %v1244 = vsel %vm1209, %v1241, %v1243
      %v1245 = vrot.slane %v1153, 1
      %v1246 = vrot.slane %v1071, 1
      %v1247 = vsel %vm1209, %v1245, %v1246
      %v1248 = vrot.slane %v1170, 1
      %v1249 = vsel %vm1209, %v1246, %v1248
      %v1250 = vrot.slane %v1154, 1
      %v1251 = vrot.slane %v1074, 1
      %v1252 = vsel %vm1209, %v1250, %v1251
      %v1253 = vrot.slane %v1171, 1
      %v1254 = vsel %vm1209, %v1251, %v1253
      %v1255 = vrot.slane %v1155, 1
      %v1256 = vrot.slane %v1077, 1
      %v1257 = vsel %vm1209, %v1255, %v1256
      %v1258 = vrot.slane %v1172, 1
      %v1259 = vsel %vm1209, %v1256, %v1258
      %v1260 = vrot.slane %v1156, 1
      %v1261 = vrot.slane %v1080, 1
      %v1262 = vsel %vm1209, %v1260, %v1261
      %v1263 = vrot.slane %v1173, 1
      %v1264 = vsel %vm1209, %v1261, %v1263
      %v1265 = vrot.slane %v1157, 1
      %v1266 = vrot.slane %v1083, 1
      %v1267 = vsel %vm1209, %v1265, %v1266
      %v1268 = vrot.slane %v1174, 1
      %v1269 = vsel %vm1209, %v1266, %v1268
      %v1270 = vrot.slane %v1158, 1
      %v1271 = vrot.slane %v1086, 1
      %v1272 = vsel %vm1209, %v1270, %v1271
      %v1273 = vrot.slane %v1175, 1
      %v1274 = vsel %vm1209, %v1271, %v1273
      %v1275 = vrot.slane %v1159, 1
      %v1276 = vrot.slane %v1089, 1
      %v1277 = vsel %vm1209, %v1275, %v1276
      %v1278 = vrot.slane %v1176, 1
      %v1279 = vsel %vm1209, %v1276, %v1278
      %v1280 = vrot.slane %v1160, 1
      %v1281 = vrot.slane %v1092, 1
      %v1282 = vsel %vm1209, %v1280, %v1281
      %v1283 = vrot.slane %v1177, 1
      %v1284 = vsel %vm1209, %v1281, %v1283
      %v1285 = vrot.slane %v641, 2
      %v1286 = vrot.slane %v578, 2
      %v1287 = vsel %vm654, %v1285, %v1286
      %v1288 = vrot.slane %v1163, 2
      %v1289 = vsel %vm654, %v1286, %v1288
      %v1290 = vrot.slane %v1147, 2
      %v1291 = vrot.slane %v1053, 2
      %v1292 = vsel %vm654, %v1290, %v1291
      %v1293 = vrot.slane %v1164, 2
      %v1294 = vsel %vm654, %v1291, %v1293
      %v1295 = vrot.slane %v1148, 2
      %v1296 = vrot.slane %v1056, 2
      %v1297 = vsel %vm654, %v1295, %v1296
      %v1298 = vrot.slane %v1165, 2
      %v1299 = vsel %vm654, %v1296, %v1298
      %v1300 = vrot.slane %v1149, 2
      %v1301 = vrot.slane %v1059, 2
      %v1302 = vsel %vm654, %v1300, %v1301
      %v1303 = vrot.slane %v1166, 2
      %v1304 = vsel %vm654, %v1301, %v1303
      %v1305 = vrot.slane %v1150, 2
      %v1306 = vrot.slane %v1062, 2
      %v1307 = vsel %vm654, %v1305, %v1306
      %v1308 = vrot.slane %v1167, 2
      %v1309 = vsel %vm654, %v1306, %v1308
      %v1310 = vrot.slane %v1151, 2
      %v1311 = vrot.slane %v1065, 2
      %v1312 = vsel %vm654, %v1310, %v1311
      %v1313 = vrot.slane %v1168, 2
      %v1314 = vsel %vm654, %v1311, %v1313
      %v1315 = vrot.slane %v1152, 2
      %v1316 = vrot.slane %v1068, 2
      %v1317 = vsel %vm654, %v1315, %v1316
      %v1318 = vrot.slane %v1169, 2
      %v1319 = vsel %vm654, %v1316, %v1318
      %v1320 = vrot.slane %v1153, 2
      %v1321 = vrot.slane %v1071, 2
      %v1322 = vsel %vm654, %v1320, %v1321
      %v1323 = vrot.slane %v1170, 2
      %v1324 = vsel %vm654, %v1321, %v1323
      %v1325 = vrot.slane %v1154, 2
      %v1326 = vrot.slane %v1074, 2
      %v1327 = vsel %vm654, %v1325, %v1326
      %v1328 = vrot.slane %v1171, 2
      %v1329 = vsel %vm654, %v1326, %v1328
      %v1330 = vrot.slane %v1155, 2
      %v1331 = vrot.slane %v1077, 2
      %v1332 = vsel %vm654, %v1330, %v1331
      %v1333 = vrot.slane %v1172, 2
      %v1334 = vsel %vm654, %v1331, %v1333
      %v1335 = vrot.slane %v1156, 2
      %v1336 = vrot.slane %v1080, 2
      %v1337 = vsel %vm654, %v1335, %v1336
      %v1338 = vrot.slane %v1173, 2
      %v1339 = vsel %vm654, %v1336, %v1338
      %v1340 = vrot.slane %v1157, 2
      %v1341 = vrot.slane %v1083, 2
      %v1342 = vsel %vm654, %v1340, %v1341
      %v1343 = vrot.slane %v1174, 2
      %v1344 = vsel %vm654, %v1341, %v1343
      %v1345 = vrot.slane %v1158, 2
      %v1346 = vrot.slane %v1086, 2
      %v1347 = vsel %vm654, %v1345, %v1346
      %v1348 = vrot.slane %v1175, 2
      %v1349 = vsel %vm654, %v1346, %v1348
      %v1350 = vrot.slane %v1159, 2
      %v1351 = vrot.slane %v1089, 2
      %v1352 = vsel %vm654, %v1350, %v1351
      %v1353 = vrot.slane %v1176, 2
      %v1354 = vsel %vm654, %v1351, %v1353
      %v1355 = vrot.slane %v1160, 2
      %v1356 = vrot.slane %v1092, 2
      %v1357 = vsel %vm654, %v1355, %v1356
      %v1358 = vrot.slane %v1177, 2
      %v1359 = vsel %vm654, %v1356, %v1358
      %vm1360 = vcmask 1044480
      %v1361 = vrot.slane %v641, 3
      %v1362 = vrot.slane %v578, 3
      %v1363 = vsel %vm1360, %v1361, %v1362
      %v1364 = vrot.slane %v1163, 3
      %v1365 = vsel %vm1360, %v1362, %v1364
      %v1366 = vrot.slane %v1147, 3
      %v1367 = vrot.slane %v1053, 3
      %v1368 = vsel %vm1360, %v1366, %v1367
      %v1369 = vrot.slane %v1164, 3
      %v1370 = vsel %vm1360, %v1367, %v1369
      %v1371 = vrot.slane %v1148, 3
      %v1372 = vrot.slane %v1056, 3
      %v1373 = vsel %vm1360, %v1371, %v1372
      %v1374 = vrot.slane %v1165, 3
      %v1375 = vsel %vm1360, %v1372, %v1374
      %v1376 = vrot.slane %v1149, 3
      %v1377 = vrot.slane %v1059, 3
      %v1378 = vsel %vm1360, %v1376, %v1377
      %v1379 = vrot.slane %v1166, 3
      %v1380 = vsel %vm1360, %v1377, %v1379
      %v1381 = vrot.slane %v1150, 3
      %v1382 = vrot.slane %v1062, 3
      %v1383 = vsel %vm1360, %v1381, %v1382
      %v1384 = vrot.slane %v1167, 3
      %v1385 = vsel %vm1360, %v1382, %v1384
      %v1386 = vrot.slane %v1151, 3
      %v1387 = vrot.slane %v1065, 3
      %v1388 = vsel %vm1360, %v1386, %v1387
      %v1389 = vrot.slane %v1168, 3
      %v1390 = vsel %vm1360, %v1387, %v1389
      %v1391 = vrot.slane %v1152, 3
      %v1392 = vrot.slane %v1068, 3
      %v1393 = vsel %vm1360, %v1391, %v1392
      %v1394 = vrot.slane %v1169, 3
      %v1395 = vsel %vm1360, %v1392, %v1394
      %v1396 = vrot.slane %v1153, 3
      %v1397 = vrot.slane %v1071, 3
      %v1398 = vsel %vm1360, %v1396, %v1397
      %v1399 = vrot.slane %v1170, 3
      %v1400 = vsel %vm1360, %v1397, %v1399
      %v1401 = vrot.slane %v1154, 3
      %v1402 = vrot.slane %v1074, 3
      %v1403 = vsel %vm1360, %v1401, %v1402
      %v1404 = vrot.slane %v1171, 3
      %v1405 = vsel %vm1360, %v1402, %v1404
      %v1406 = vrot.slane %v1155, 3
      %v1407 = vrot.slane %v1077, 3
      %v1408 = vsel %vm1360, %v1406, %v1407
      %v1409 = vrot.slane %v1172, 3
      %v1410 = vsel %vm1360, %v1407, %v1409
      %v1411 = vrot.slane %v1156, 3
      %v1412 = vrot.slane %v1080, 3
      %v1413 = vsel %vm1360, %v1411, %v1412
      %v1414 = vrot.slane %v1173, 3
      %v1415 = vsel %vm1360, %v1412, %v1414
      %v1416 = vrot.slane %v1157, 3
      %v1417 = vrot.slane %v1083, 3
      %v1418 = vsel %vm1360, %v1416, %v1417
      %v1419 = vrot.slane %v1174, 3
      %v1420 = vsel %vm1360, %v1417, %v1419
      %v1421 = vrot.slane %v1158, 3
      %v1422 = vrot.slane %v1086, 3
      %v1423 = vsel %vm1360, %v1421, %v1422
      %v1424 = vrot.slane %v1175, 3
      %v1425 = vsel %vm1360, %v1422, %v1424
      %v1426 = vrot.slane %v1159, 3
      %v1427 = vrot.slane %v1089, 3
      %v1428 = vsel %vm1360, %v1426, %v1427
      %v1429 = vrot.slane %v1176, 3
      %v1430 = vsel %vm1360, %v1427, %v1429
      %v1431 = vrot.slane %v1160, 3
      %v1432 = vrot.slane %v1092, 3
      %v1433 = vsel %vm1360, %v1431, %v1432
      %v1434 = vrot.slane %v1177, 3
      %v1435 = vsel %vm1360, %v1432, %v1434
      %vm1436 = vcmask 1043456
      %v1437 = vrot.slane %v641, 4
      %v1438 = vrot.slane %v578, 4
      %v1439 = vsel %vm1436, %v1437, %v1438
      %v1440 = vrot.slane %v1163, 4
      %v1441 = vsel %vm1436, %v1438, %v1440
      %v1442 = vrot.slane %v1147, 4
      %v1443 = vrot.slane %v1053, 4
      %v1444 = vsel %vm1436, %v1442, %v1443
      %v1445 = vrot.slane %v1164, 4
      %v1446 = vsel %vm1436, %v1443, %v1445
      %v1447 = vrot.slane %v1148, 4
      %v1448 = vrot.slane %v1056, 4
      %v1449 = vsel %vm1436, %v1447, %v1448
      %v1450 = vrot.slane %v1165, 4
      %v1451 = vsel %vm1436, %v1448, %v1450
      %v1452 = vrot.slane %v1149, 4
      %v1453 = vrot.slane %v1059, 4
      %v1454 = vsel %vm1436, %v1452, %v1453
      %v1455 = vrot.slane %v1166, 4
      %v1456 = vsel %vm1436, %v1453, %v1455
      %v1457 = vrot.slane %v1150, 4
      %v1458 = vrot.slane %v1062, 4
      %v1459 = vsel %vm1436, %v1457, %v1458
      %v1460 = vrot.slane %v1167, 4
      %v1461 = vsel %vm1436, %v1458, %v1460
      %v1462 = vrot.slane %v1151, 4
      %v1463 = vrot.slane %v1065, 4
      %v1464 = vsel %vm1436, %v1462, %v1463
      %v1465 = vrot.slane %v1168, 4
      %v1466 = vsel %vm1436, %v1463, %v1465
      %v1467 = vrot.slane %v1152, 4
      %v1468 = vrot.slane %v1068, 4
      %v1469 = vsel %vm1436, %v1467, %v1468
      %v1470 = vrot.slane %v1169, 4
      %v1471 = vsel %vm1436, %v1468, %v1470
      %v1472 = vrot.slane %v1153, 4
      %v1473 = vrot.slane %v1071, 4
      %v1474 = vsel %vm1436, %v1472, %v1473
      %v1475 = vrot.slane %v1170, 4
      %v1476 = vsel %vm1436, %v1473, %v1475
      %v1477 = vrot.slane %v1154, 4
      %v1478 = vrot.slane %v1074, 4
      %v1479 = vsel %vm1436, %v1477, %v1478
      %v1480 = vrot.slane %v1171, 4
      %v1481 = vsel %vm1436, %v1478, %v1480
      %v1482 = vrot.slane %v1155, 4
      %v1483 = vrot.slane %v1077, 4
      %v1484 = vsel %vm1436, %v1482, %v1483
      %v1485 = vrot.slane %v1172, 4
      %v1486 = vsel %vm1436, %v1483, %v1485
      %v1487 = vrot.slane %v1156, 4
      %v1488 = vrot.slane %v1080, 4
      %v1489 = vsel %vm1436, %v1487, %v1488
      %v1490 = vrot.slane %v1173, 4
      %v1491 = vsel %vm1436, %v1488, %v1490
      %v1492 = vrot.slane %v1157, 4
      %v1493 = vrot.slane %v1083, 4
      %v1494 = vsel %vm1436, %v1492, %v1493
      %v1495 = vrot.slane %v1174, 4
      %v1496 = vsel %vm1436, %v1493, %v1495
      %v1497 = vrot.slane %v1158, 4
      %v1498 = vrot.slane %v1086, 4
      %v1499 = vsel %vm1436, %v1497, %v1498
      %v1500 = vrot.slane %v1175, 4
      %v1501 = vsel %vm1436, %v1498, %v1500
      %v1502 = vrot.slane %v1159, 4
      %v1503 = vrot.slane %v1089, 4
      %v1504 = vsel %vm1436, %v1502, %v1503
      %v1505 = vrot.slane %v1176, 4
      %v1506 = vsel %vm1436, %v1503, %v1505
      %v1507 = vrot.slane %v1160, 4
      %v1508 = vrot.slane %v1092, 4
      %v1509 = vsel %vm1436, %v1507, %v1508
      %v1510 = vrot.slane %v1177, 4
      %v1511 = vsel %vm1436, %v1508, %v1510
      %v1544 = vrot.slane %v1161, 1
      %v1545 = vrot.slane %v1095, 1
      %v1546 = vsel %vm1209, %v1544, %v1545
      %v1547 = vrot.slane %v1178, 1
      %v1548 = vsel %vm1209, %v1545, %v1547
      %v1549 = vrot.slane %v1161, 2
      %v1550 = vrot.slane %v1095, 2
      %v1551 = vsel %vm654, %v1549, %v1550
      %v1552 = vrot.slane %v1178, 2
      %v1553 = vsel %vm654, %v1550, %v1552
      %v1554 = vrot.slane %v1161, 3
      %v1555 = vrot.slane %v1095, 3
      %v1556 = vsel %vm1360, %v1554, %v1555
      %v1557 = vrot.slane %v1178, 3
      %v1558 = vsel %vm1360, %v1555, %v1557
      %v1591 = vrot.slane %v1161, 4
      %v1592 = vrot.slane %v1095, 4
      %v1593 = vsel %vm1436, %v1591, %v1592
      %v1594 = vrot.slane %v1178, 4
      %v1595 = vsel %vm1436, %v1592, %v1594
      %v1598 = vrot.slane %v1162, 1
      %v1599 = vrot.slane %v1098, 1
      %v1600 = vsel %vm1209, %v1598, %v1599
      %v1601 = vrot.slane %v1179, 1
      %v1602 = vsel %vm1209, %v1599, %v1601
      %v1603 = vrot.slane %v1162, 2
      %v1604 = vrot.slane %v1098, 2
      %v1605 = vsel %vm654, %v1603, %v1604
      %v1606 = vrot.slane %v1179, 2
      %v1607 = vsel %vm654, %v1604, %v1606
      %v1640 = vrot.slane %v1162, 3
      %v1641 = vrot.slane %v1098, 3
      %v1642 = vsel %vm1360, %v1640, %v1641
      %v1643 = vrot.slane %v1179, 3
      %v1644 = vsel %vm1360, %v1641, %v1643
      %v1645 = vrot.slane %v1162, 4
      %v1646 = vrot.slane %v1098, 4
      %v1647 = vsel %vm1436, %v1645, %v1646
      %v1648 = vrot.slane %v1179, 4
      %v1649 = vsel %vm1436, %v1646, %v1648
      %1682 = vrot.lane.b32.xlu0 %v1212, 32
      %v1683 = vpop.permute.xlu0 %1682
      %1684 = vrot.lane.b32.xlu0 %v1214, 32
      %v1685 = vpop.permute.xlu0 %1684
      %1686 = vrot.lane.b32.xlu0 %v1217, 32
      %v1687 = vpop.permute.xlu0 %1686
      %1688 = vrot.lane.b32.xlu0 %v1219, 32
      %v1689 = vpop.permute.xlu0 %1688
      %1690 = vrot.lane.b32.xlu0 %v1222, 32
      %v1691 = vpop.permute.xlu0 %1690
      %1692 = vrot.lane.b32.xlu0 %v1224, 32
      %v1693 = vpop.permute.xlu0 %1692
      %1694 = vrot.lane.b32.xlu0 %v1227, 32
      %v1695 = vpop.permute.xlu0 %1694
      %1696 = vrot.lane.b32.xlu0 %v1229, 32
      %v1697 = vpop.permute.xlu0 %1696
      %1698 = vrot.lane.b32.xlu0 %v1232, 32
      %v1699 = vpop.permute.xlu0 %1698
      %1700 = vrot.lane.b32.xlu0 %v1234, 32
      %v1701 = vpop.permute.xlu0 %1700
      %1702 = vrot.lane.b32.xlu0 %v1237, 32
      %v1703 = vpop.permute.xlu0 %1702
      %1704 = vrot.lane.b32.xlu0 %v1239, 32
      %v1705 = vpop.permute.xlu0 %1704
      %1706 = vrot.lane.b32.xlu0 %v1242, 32
      %v1707 = vpop.permute.xlu0 %1706
      %1708 = vrot.lane.b32.xlu0 %v1244, 32
      %v1709 = vpop.permute.xlu0 %1708
      %1710 = vrot.lane.b32.xlu0 %v1247, 32
      %v1711 = vpop.permute.xlu0 %1710
      %1712 = vrot.lane.b32.xlu0 %v1249, 32
      %v1713 = vpop.permute.xlu0 %1712
      %1714 = vrot.lane.b32.xlu0 %v1252, 32
      %v1715 = vpop.permute.xlu0 %1714
      %1716 = vrot.lane.b32.xlu0 %v1254, 32
      %v1717 = vpop.permute.xlu0 %1716
      %1718 = vrot.lane.b32.xlu0 %v1257, 32
      %v1719 = vpop.permute.xlu0 %1718
      %1720 = vrot.lane.b32.xlu0 %v1259, 32
      %v1721 = vpop.permute.xlu0 %1720
      %1722 = vrot.lane.b32.xlu0 %v1262, 32
      %v1723 = vpop.permute.xlu0 %1722
      %1724 = vrot.lane.b32.xlu0 %v1264, 32
      %v1725 = vpop.permute.xlu0 %1724
      %1726 = vrot.lane.b32.xlu0 %v1267, 32
      %v1727 = vpop.permute.xlu0 %1726
      %1728 = vrot.lane.b32.xlu0 %v1269, 32
      %v1729 = vpop.permute.xlu0 %1728
      %1730 = vrot.lane.b32.xlu0 %v1272, 32
      %v1731 = vpop.permute.xlu0 %1730
      %1732 = vrot.lane.b32.xlu0 %v1274, 32
      %v1733 = vpop.permute.xlu0 %1732
      %1734 = vrot.lane.b32.xlu0 %v1277, 32
      %v1735 = vpop.permute.xlu0 %1734
      %1736 = vrot.lane.b32.xlu0 %v1279, 32
      %v1737 = vpop.permute.xlu0 %1736
      %1738 = vrot.lane.b32.xlu0 %v1282, 32
      %v1739 = vpop.permute.xlu0 %1738
      %1740 = vrot.lane.b32.xlu0 %v1284, 32
      %v1741 = vpop.permute.xlu0 %1740
      %1772 = vrot.lane.b32.xlu0 %v1287, 64
      %v1773 = vpop.permute.xlu0 %1772
      %1774 = vrot.lane.b32.xlu0 %v1289, 64
      %v1775 = vpop.permute.xlu0 %1774
      %1776 = vrot.lane.b32.xlu0 %v1292, 64
      %v1777 = vpop.permute.xlu0 %1776
      %1778 = vrot.lane.b32.xlu0 %v1294, 64
      %v1779 = vpop.permute.xlu0 %1778
      %1780 = vrot.lane.b32.xlu0 %v1297, 64
      %v1781 = vpop.permute.xlu0 %1780
      %1782 = vrot.lane.b32.xlu0 %v1299, 64
      %v1783 = vpop.permute.xlu0 %1782
      %1784 = vrot.lane.b32.xlu0 %v1302, 64
      %v1785 = vpop.permute.xlu0 %1784
      %1786 = vrot.lane.b32.xlu0 %v1304, 64
      %v1787 = vpop.permute.xlu0 %1786
      %1788 = vrot.lane.b32.xlu0 %v1307, 64
      %v1789 = vpop.permute.xlu0 %1788
      %1790 = vrot.lane.b32.xlu0 %v1309, 64
      %v1791 = vpop.permute.xlu0 %1790
      %1792 = vrot.lane.b32.xlu0 %v1312, 64
      %v1793 = vpop.permute.xlu0 %1792
      %1794 = vrot.lane.b32.xlu0 %v1314, 64
      %v1795 = vpop.permute.xlu0 %1794
      %1796 = vrot.lane.b32.xlu0 %v1317, 64
      %v1797 = vpop.permute.xlu0 %1796
      %1798 = vrot.lane.b32.xlu0 %v1319, 64
      %v1799 = vpop.permute.xlu0 %1798
      %1800 = vrot.lane.b32.xlu0 %v1322, 64
      %v1801 = vpop.permute.xlu0 %1800
      %1802 = vrot.lane.b32.xlu0 %v1324, 64
      %v1803 = vpop.permute.xlu0 %1802
      %1804 = vrot.lane.b32.xlu0 %v1327, 64
      %v1805 = vpop.permute.xlu0 %1804
      %1806 = vrot.lane.b32.xlu0 %v1329, 64
      %v1807 = vpop.permute.xlu0 %1806
      %1808 = vrot.lane.b32.xlu0 %v1332, 64
      %v1809 = vpop.permute.xlu0 %1808
      %1810 = vrot.lane.b32.xlu0 %v1334, 64
      %v1811 = vpop.permute.xlu0 %1810
      %1812 = vrot.lane.b32.xlu0 %v1337, 64
      %v1813 = vpop.permute.xlu0 %1812
      %1814 = vrot.lane.b32.xlu0 %v1339, 64
      %v1815 = vpop.permute.xlu0 %1814
      %1816 = vrot.lane.b32.xlu0 %v1342, 64
      %v1817 = vpop.permute.xlu0 %1816
      %1818 = vrot.lane.b32.xlu0 %v1344, 64
      %v1819 = vpop.permute.xlu0 %1818
      %1820 = vrot.lane.b32.xlu0 %v1347, 64
      %v1821 = vpop.permute.xlu0 %1820
      %1822 = vrot.lane.b32.xlu0 %v1349, 64
      %v1823 = vpop.permute.xlu0 %1822
      %1824 = vrot.lane.b32.xlu0 %v1352, 64
      %v1825 = vpop.permute.xlu0 %1824
      %1826 = vrot.lane.b32.xlu0 %v1354, 64
      %v1827 = vpop.permute.xlu0 %1826
      %1828 = vrot.lane.b32.xlu0 %v1357, 64
      %v1829 = vpop.permute.xlu0 %1828
      %1830 = vrot.lane.b32.xlu0 %v1359, 64
      %v1831 = vpop.permute.xlu0 %1830
      %1862 = vrot.lane.b32.xlu0 %v1363, 96
      %v1863 = vpop.permute.xlu0 %1862
      %1864 = vrot.lane.b32.xlu0 %v1365, 96
      %v1865 = vpop.permute.xlu0 %1864
      %1866 = vrot.lane.b32.xlu0 %v1368, 96
      %v1867 = vpop.permute.xlu0 %1866
      %1868 = vrot.lane.b32.xlu0 %v1370, 96
      %v1869 = vpop.permute.xlu0 %1868
      %1870 = vrot.lane.b32.xlu0 %v1373, 96
      %v1871 = vpop.permute.xlu0 %1870
      %1872 = vrot.lane.b32.xlu0 %v1375, 96
      %v1873 = vpop.permute.xlu0 %1872
      %1874 = vrot.lane.b32.xlu0 %v1378, 96
      %v1875 = vpop.permute.xlu0 %1874
      %1876 = vrot.lane.b32.xlu0 %v1380, 96
      %v1877 = vpop.permute.xlu0 %1876
      %1878 = vrot.lane.b32.xlu0 %v1383, 96
      %v1879 = vpop.permute.xlu0 %1878
      %1880 = vrot.lane.b32.xlu0 %v1385, 96
      %v1881 = vpop.permute.xlu0 %1880
      %1882 = vrot.lane.b32.xlu0 %v1388, 96
      %v1883 = vpop.permute.xlu0 %1882
      %1884 = vrot.lane.b32.xlu0 %v1390, 96
      %v1885 = vpop.permute.xlu0 %1884
      %1886 = vrot.lane.b32.xlu0 %v1393, 96
      %v1887 = vpop.permute.xlu0 %1886
      %1888 = vrot.lane.b32.xlu0 %v1395, 96
      %v1889 = vpop.permute.xlu0 %1888
      %1890 = vrot.lane.b32.xlu0 %v1398, 96
      %v1891 = vpop.permute.xlu0 %1890
      %1892 = vrot.lane.b32.xlu0 %v1400, 96
      %v1893 = vpop.permute.xlu0 %1892
      %1894 = vrot.lane.b32.xlu0 %v1403, 96
      %v1895 = vpop.permute.xlu0 %1894
      %1896 = vrot.lane.b32.xlu0 %v1405, 96
      %v1897 = vpop.permute.xlu0 %1896
      %1898 = vrot.lane.b32.xlu0 %v1408, 96
      %v1899 = vpop.permute.xlu0 %1898
      %1900 = vrot.lane.b32.xlu0 %v1410, 96
      %v1901 = vpop.permute.xlu0 %1900
      %1902 = vrot.lane.b32.xlu0 %v1413, 96
      %v1903 = vpop.permute.xlu0 %1902
      %1904 = vrot.lane.b32.xlu0 %v1415, 96
      %v1905 = vpop.permute.xlu0 %1904
      %1906 = vrot.lane.b32.xlu0 %v1418, 96
      %v1907 = vpop.permute.xlu0 %1906
      %1908 = vrot.lane.b32.xlu0 %v1420, 96
      %v1909 = vpop.permute.xlu0 %1908
      %1910 = vrot.lane.b32.xlu0 %v1423, 96
      %v1911 = vpop.permute.xlu0 %1910
      %1912 = vrot.lane.b32.xlu0 %v1425, 96
      %v1913 = vpop.permute.xlu0 %1912
      %1914 = vrot.lane.b32.xlu0 %v1428, 96
      %v1915 = vpop.permute.xlu0 %1914
      %1916 = vrot.lane.b32.xlu0 %v1430, 96
      %v1917 = vpop.permute.xlu0 %1916
      %1918 = vrot.lane.b32.xlu0 %v1433, 96
      %v1919 = vpop.permute.xlu0 %1918
      %1920 = vrot.lane.b32.xlu0 %v1435, 96
      %v1921 = vpop.permute.xlu0 %1920
      %1952 = vrot.lane.b32.xlu0 %v641, 32
      %v1953 = vpop.permute.xlu0 %1952
      %1954 = vrot.lane.b32.xlu0 %v578, 32
      %v1955 = vpop.permute.xlu0 %1954
      %1956 = vrot.lane.b32.xlu0 %v1147, 32
      %v1957 = vpop.permute.xlu0 %1956
      %1958 = vrot.lane.b32.xlu0 %v1053, 32
      %v1959 = vpop.permute.xlu0 %1958
      %1960 = vrot.lane.b32.xlu0 %v1148, 32
      %v1961 = vpop.permute.xlu0 %1960
      %1962 = vrot.lane.b32.xlu0 %v1056, 32
      %v1963 = vpop.permute.xlu0 %1962
      %1964 = vrot.lane.b32.xlu0 %v1149, 32
      %v1965 = vpop.permute.xlu0 %1964
      %1966 = vrot.lane.b32.xlu0 %v1059, 32
      %v1967 = vpop.permute.xlu0 %1966
      %1968 = vrot.lane.b32.xlu0 %v1150, 32
      %v1969 = vpop.permute.xlu0 %1968
      %1970 = vrot.lane.b32.xlu0 %v1062, 32
      %v1971 = vpop.permute.xlu0 %1970
      %1972 = vrot.lane.b32.xlu0 %v1151, 32
      %v1973 = vpop.permute.xlu0 %1972
      %1974 = vrot.lane.b32.xlu0 %v1065, 32
      %v1975 = vpop.permute.xlu0 %1974
      %1976 = vrot.lane.b32.xlu0 %v1152, 32
      %v1977 = vpop.permute.xlu0 %1976
      %1978 = vrot.lane.b32.xlu0 %v1068, 32
      %v1979 = vpop.permute.xlu0 %1978
      %1980 = vrot.lane.b32.xlu0 %v1153, 32
      %v1981 = vpop.permute.xlu0 %1980
      %1982 = vrot.lane.b32.xlu0 %v1071, 32
      %v1983 = vpop.permute.xlu0 %1982
      %1984 = vrot.lane.b32.xlu0 %v1154, 32
      %v1985 = vpop.permute.xlu0 %1984
      %1986 = vrot.lane.b32.xlu0 %v1074, 32
      %v1987 = vpop.permute.xlu0 %1986
      %1988 = vrot.lane.b32.xlu0 %v1155, 32
      %v1989 = vpop.permute.xlu0 %1988
      %1990 = vrot.lane.b32.xlu0 %v1077, 32
      %v1991 = vpop.permute.xlu0 %1990
      %1992 = vrot.lane.b32.xlu0 %v1156, 32
      %v1993 = vpop.permute.xlu0 %1992
      %1994 = vrot.lane.b32.xlu0 %v1080, 32
      %v1995 = vpop.permute.xlu0 %1994
      %1996 = vrot.lane.b32.xlu0 %v1157, 32
      %v1997 = vpop.permute.xlu0 %1996
      %1998 = vrot.lane.b32.xlu0 %v1083, 32
      %v1999 = vpop.permute.xlu0 %1998
      %2000 = vrot.lane.b32.xlu0 %v1158, 32
      %v2001 = vpop.permute.xlu0 %2000
      %2002 = vrot.lane.b32.xlu0 %v1086, 32
      %v2003 = vpop.permute.xlu0 %2002
      %2004 = vrot.lane.b32.xlu0 %v1159, 32
      %v2005 = vpop.permute.xlu0 %2004
      %2006 = vrot.lane.b32.xlu0 %v1089, 32
      %v2007 = vpop.permute.xlu0 %2006
      %2008 = vrot.lane.b32.xlu0 %v1160, 32
      %v2009 = vpop.permute.xlu0 %2008
      %2010 = vrot.lane.b32.xlu0 %v1092, 32
      %v2011 = vpop.permute.xlu0 %2010
      %2012 = vrot.lane.b32.xlu0 %v1161, 32
      %v2013 = vpop.permute.xlu0 %2012
      %2014 = vrot.lane.b32.xlu0 %v1095, 32
      %v2015 = vpop.permute.xlu0 %2014
      %2048 = vrot.lane.b32.xlu0 %v1212, 64
      %v2049 = vpop.permute.xlu0 %2048
      %2050 = vrot.lane.b32.xlu0 %v1214, 64
      %v2051 = vpop.permute.xlu0 %2050
      %2052 = vrot.lane.b32.xlu0 %v1217, 64
      %v2053 = vpop.permute.xlu0 %2052
      %2054 = vrot.lane.b32.xlu0 %v1219, 64
      %v2055 = vpop.permute.xlu0 %2054
      %2056 = vrot.lane.b32.xlu0 %v1222, 64
      %v2057 = vpop.permute.xlu0 %2056
      %2058 = vrot.lane.b32.xlu0 %v1224, 64
      %v2059 = vpop.permute.xlu0 %2058
      %2060 = vrot.lane.b32.xlu0 %v1227, 64
      %v2061 = vpop.permute.xlu0 %2060
      %2062 = vrot.lane.b32.xlu0 %v1229, 64
      %v2063 = vpop.permute.xlu0 %2062
      %2064 = vrot.lane.b32.xlu0 %v1232, 64
      %v2065 = vpop.permute.xlu0 %2064
      %2066 = vrot.lane.b32.xlu0 %v1234, 64
      %v2067 = vpop.permute.xlu0 %2066
      %2068 = vrot.lane.b32.xlu0 %v1237, 64
      %v2069 = vpop.permute.xlu0 %2068
      %2070 = vrot.lane.b32.xlu0 %v1239, 64
      %v2071 = vpop.permute.xlu0 %2070
      %2072 = vrot.lane.b32.xlu0 %v1242, 64
      %v2073 = vpop.permute.xlu0 %2072
      %2074 = vrot.lane.b32.xlu0 %v1244, 64
      %v2075 = vpop.permute.xlu0 %2074
      %2076 = vrot.lane.b32.xlu0 %v1247, 64
      %v2077 = vpop.permute.xlu0 %2076
      %2078 = vrot.lane.b32.xlu0 %v1249, 64
      %v2079 = vpop.permute.xlu0 %2078
      %2080 = vrot.lane.b32.xlu0 %v1252, 64
      %v2081 = vpop.permute.xlu0 %2080
      %2082 = vrot.lane.b32.xlu0 %v1254, 64
      %v2083 = vpop.permute.xlu0 %2082
      %2084 = vrot.lane.b32.xlu0 %v1257, 64
      %v2085 = vpop.permute.xlu0 %2084
      %2086 = vrot.lane.b32.xlu0 %v1259, 64
      %v2087 = vpop.permute.xlu0 %2086
      %2088 = vrot.lane.b32.xlu0 %v1262, 64
      %v2089 = vpop.permute.xlu0 %2088
      %2090 = vrot.lane.b32.xlu0 %v1264, 64
      %v2091 = vpop.permute.xlu0 %2090
      %2092 = vrot.lane.b32.xlu0 %v1267, 64
      %v2093 = vpop.permute.xlu0 %2092
      %2094 = vrot.lane.b32.xlu0 %v1269, 64
      %v2095 = vpop.permute.xlu0 %2094
      %2096 = vrot.lane.b32.xlu0 %v1272, 64
      %v2097 = vpop.permute.xlu0 %2096
      %2098 = vrot.lane.b32.xlu0 %v1274, 64
      %v2099 = vpop.permute.xlu0 %2098
      %2100 = vrot.lane.b32.xlu0 %v1277, 64
      %v2101 = vpop.permute.xlu0 %2100
      %2102 = vrot.lane.b32.xlu0 %v1279, 64
      %v2103 = vpop.permute.xlu0 %2102
      %2104 = vrot.lane.b32.xlu0 %v1282, 64
      %v2105 = vpop.permute.xlu0 %2104
      %2106 = vrot.lane.b32.xlu0 %v1284, 64
      %v2107 = vpop.permute.xlu0 %2106
      %2108 = vrot.lane.b32.xlu0 %v1546, 64
      %v2109 = vpop.permute.xlu0 %2108
      %2110 = vrot.lane.b32.xlu0 %v1548, 64
      %v2111 = vpop.permute.xlu0 %2110
      %2144 = vrot.lane.b32.xlu0 %v1287, 96
      %v2145 = vpop.permute.xlu0 %2144
      %2146 = vrot.lane.b32.xlu0 %v1289, 96
      %v2147 = vpop.permute.xlu0 %2146
      %2148 = vrot.lane.b32.xlu0 %v1292, 96
      %v2149 = vpop.permute.xlu0 %2148
      %2150 = vrot.lane.b32.xlu0 %v1294, 96
      %v2151 = vpop.permute.xlu0 %2150
      %2152 = vrot.lane.b32.xlu0 %v1297, 96
      %v2153 = vpop.permute.xlu0 %2152
      %2154 = vrot.lane.b32.xlu0 %v1299, 96
      %v2155 = vpop.permute.xlu0 %2154
      %2156 = vrot.lane.b32.xlu0 %v1302, 96
      %v2157 = vpop.permute.xlu0 %2156
      %2158 = vrot.lane.b32.xlu0 %v1304, 96
      %v2159 = vpop.permute.xlu0 %2158
      %2160 = vrot.lane.b32.xlu0 %v1307, 96
      %v2161 = vpop.permute.xlu0 %2160
      %2162 = vrot.lane.b32.xlu0 %v1309, 96
      %v2163 = vpop.permute.xlu0 %2162
      %2164 = vrot.lane.b32.xlu0 %v1312, 96
      %v2165 = vpop.permute.xlu0 %2164
      %2166 = vrot.lane.b32.xlu0 %v1314, 96
      %v2167 = vpop.permute.xlu0 %2166
      %2168 = vrot.lane.b32.xlu0 %v1317, 96
      %v2169 = vpop.permute.xlu0 %2168
      %2170 = vrot.lane.b32.xlu0 %v1319, 96
      %v2171 = vpop.permute.xlu0 %2170
      %2172 = vrot.lane.b32.xlu0 %v1322, 96
      %v2173 = vpop.permute.xlu0 %2172
      %2174 = vrot.lane.b32.xlu0 %v1324, 96
      %v2175 = vpop.permute.xlu0 %2174
      %2176 = vrot.lane.b32.xlu0 %v1327, 96
      %v2177 = vpop.permute.xlu0 %2176
      %2178 = vrot.lane.b32.xlu0 %v1329, 96
      %v2179 = vpop.permute.xlu0 %2178
      %2180 = vrot.lane.b32.xlu0 %v1332, 96
      %v2181 = vpop.permute.xlu0 %2180
      %2182 = vrot.lane.b32.xlu0 %v1334, 96
      %v2183 = vpop.permute.xlu0 %2182
      %2184 = vrot.lane.b32.xlu0 %v1337, 96
      %v2185 = vpop.permute.xlu0 %2184
      %2186 = vrot.lane.b32.xlu0 %v1339, 96
      %v2187 = vpop.permute.xlu0 %2186
      %2188 = vrot.lane.b32.xlu0 %v1342, 96
      %v2189 = vpop.permute.xlu0 %2188
      %2190 = vrot.lane.b32.xlu0 %v1344, 96
      %v2191 = vpop.permute.xlu0 %2190
      %2192 = vrot.lane.b32.xlu0 %v1347, 96
      %v2193 = vpop.permute.xlu0 %2192
      %2194 = vrot.lane.b32.xlu0 %v1349, 96
      %v2195 = vpop.permute.xlu0 %2194
      %2196 = vrot.lane.b32.xlu0 %v1352, 96
      %v2197 = vpop.permute.xlu0 %2196
      %2198 = vrot.lane.b32.xlu0 %v1354, 96
      %v2199 = vpop.permute.xlu0 %2198
      %2200 = vrot.lane.b32.xlu0 %v1357, 96
      %v2201 = vpop.permute.xlu0 %2200
      %2202 = vrot.lane.b32.xlu0 %v1359, 96
      %v2203 = vpop.permute.xlu0 %2202
      %2204 = vrot.lane.b32.xlu0 %v1551, 96
      %v2205 = vpop.permute.xlu0 %2204
      %2206 = vrot.lane.b32.xlu0 %v1553, 96
      %v2207 = vpop.permute.xlu0 %2206
      %2240 = vrot.lane.b32.xlu0 %v1439, 32
      %v2241 = vpop.permute.xlu0 %2240
      %2242 = vrot.lane.b32.xlu0 %v1441, 32
      %v2243 = vpop.permute.xlu0 %2242
      %2244 = vrot.lane.b32.xlu0 %v1444, 32
      %v2245 = vpop.permute.xlu0 %2244
      %2246 = vrot.lane.b32.xlu0 %v1446, 32
      %v2247 = vpop.permute.xlu0 %2246
      %2248 = vrot.lane.b32.xlu0 %v1449, 32
      %v2249 = vpop.permute.xlu0 %2248
      %2250 = vrot.lane.b32.xlu0 %v1451, 32
      %v2251 = vpop.permute.xlu0 %2250
      %2252 = vrot.lane.b32.xlu0 %v1454, 32
      %v2253 = vpop.permute.xlu0 %2252
      %2254 = vrot.lane.b32.xlu0 %v1456, 32
      %v2255 = vpop.permute.xlu0 %2254
      %2256 = vrot.lane.b32.xlu0 %v1459, 32
      %v2257 = vpop.permute.xlu0 %2256
      %2258 = vrot.lane.b32.xlu0 %v1461, 32
      %v2259 = vpop.permute.xlu0 %2258
      %2260 = vrot.lane.b32.xlu0 %v1464, 32
      %v2261 = vpop.permute.xlu0 %2260
      %2262 = vrot.lane.b32.xlu0 %v1466, 32
      %v2263 = vpop.permute.xlu0 %2262
      %2264 = vrot.lane.b32.xlu0 %v1469, 32
      %v2265 = vpop.permute.xlu0 %2264
      %2266 = vrot.lane.b32.xlu0 %v1471, 32
      %v2267 = vpop.permute.xlu0 %2266
      %2268 = vrot.lane.b32.xlu0 %v1474, 32
      %v2269 = vpop.permute.xlu0 %2268
      %2270 = vrot.lane.b32.xlu0 %v1476, 32
      %v2271 = vpop.permute.xlu0 %2270
      %2272 = vrot.lane.b32.xlu0 %v1479, 32
      %v2273 = vpop.permute.xlu0 %2272
      %2274 = vrot.lane.b32.xlu0 %v1481, 32
      %v2275 = vpop.permute.xlu0 %2274
      %2276 = vrot.lane.b32.xlu0 %v1484, 32
      %v2277 = vpop.permute.xlu0 %2276
      %2278 = vrot.lane.b32.xlu0 %v1486, 32
      %v2279 = vpop.permute.xlu0 %2278
      %2280 = vrot.lane.b32.xlu0 %v1489, 32
      %v2281 = vpop.permute.xlu0 %2280
      %2282 = vrot.lane.b32.xlu0 %v1491, 32
      %v2283 = vpop.permute.xlu0 %2282
      %2284 = vrot.lane.b32.xlu0 %v1494, 32
      %v2285 = vpop.permute.xlu0 %2284
      %2286 = vrot.lane.b32.xlu0 %v1496, 32
      %v2287 = vpop.permute.xlu0 %2286
      %2288 = vrot.lane.b32.xlu0 %v1499, 32
      %v2289 = vpop.permute.xlu0 %2288
      %2290 = vrot.lane.b32.xlu0 %v1501, 32
      %v2291 = vpop.permute.xlu0 %2290
      %2292 = vrot.lane.b32.xlu0 %v1504, 32
      %v2293 = vpop.permute.xlu0 %2292
      %2294 = vrot.lane.b32.xlu0 %v1506, 32
      %v2295 = vpop.permute.xlu0 %2294
      %2296 = vrot.lane.b32.xlu0 %v1509, 32
      %v2297 = vpop.permute.xlu0 %2296
      %2298 = vrot.lane.b32.xlu0 %v1511, 32
      %v2299 = vpop.permute.xlu0 %2298
      %2300 = vrot.lane.b32.xlu0 %v1593, 32
      %v2301 = vpop.permute.xlu0 %2300
      %2302 = vrot.lane.b32.xlu0 %v1595, 32
      %v2303 = vpop.permute.xlu0 %2302
      %2336 = vrot.lane.b32.xlu0 %v1147, 64
      %v2337 = vpop.permute.xlu0 %2336
      %2338 = vrot.lane.b32.xlu0 %v1053, 64
      %v2339 = vpop.permute.xlu0 %2338
      %2340 = vrot.lane.b32.xlu0 %v1148, 64
      %v2341 = vpop.permute.xlu0 %2340
      %2342 = vrot.lane.b32.xlu0 %v1056, 64
      %v2343 = vpop.permute.xlu0 %2342
      %2344 = vrot.lane.b32.xlu0 %v1149, 64
      %v2345 = vpop.permute.xlu0 %2344
      %2346 = vrot.lane.b32.xlu0 %v1059, 64
      %v2347 = vpop.permute.xlu0 %2346
      %2348 = vrot.lane.b32.xlu0 %v1150, 64
      %v2349 = vpop.permute.xlu0 %2348
      %2350 = vrot.lane.b32.xlu0 %v1062, 64
      %v2351 = vpop.permute.xlu0 %2350
      %2352 = vrot.lane.b32.xlu0 %v1151, 64
      %v2353 = vpop.permute.xlu0 %2352
      %2354 = vrot.lane.b32.xlu0 %v1065, 64
      %v2355 = vpop.permute.xlu0 %2354
      %2356 = vrot.lane.b32.xlu0 %v1152, 64
      %v2357 = vpop.permute.xlu0 %2356
      %2358 = vrot.lane.b32.xlu0 %v1068, 64
      %v2359 = vpop.permute.xlu0 %2358
      %2360 = vrot.lane.b32.xlu0 %v1153, 64
      %v2361 = vpop.permute.xlu0 %2360
      %2362 = vrot.lane.b32.xlu0 %v1071, 64
      %v2363 = vpop.permute.xlu0 %2362
      %2364 = vrot.lane.b32.xlu0 %v1154, 64
      %v2365 = vpop.permute.xlu0 %2364
      %2366 = vrot.lane.b32.xlu0 %v1074, 64
      %v2367 = vpop.permute.xlu0 %2366
      %2368 = vrot.lane.b32.xlu0 %v1155, 64
      %v2369 = vpop.permute.xlu0 %2368
      %2370 = vrot.lane.b32.xlu0 %v1077, 64
      %v2371 = vpop.permute.xlu0 %2370
      %2372 = vrot.lane.b32.xlu0 %v1156, 64
      %v2373 = vpop.permute.xlu0 %2372
      %2374 = vrot.lane.b32.xlu0 %v1080, 64
      %v2375 = vpop.permute.xlu0 %2374
      %2376 = vrot.lane.b32.xlu0 %v1157, 64
      %v2377 = vpop.permute.xlu0 %2376
      %2378 = vrot.lane.b32.xlu0 %v1083, 64
      %v2379 = vpop.permute.xlu0 %2378
      %2380 = vrot.lane.b32.xlu0 %v1158, 64
      %v2381 = vpop.permute.xlu0 %2380
      %2382 = vrot.lane.b32.xlu0 %v1086, 64
      %v2383 = vpop.permute.xlu0 %2382
      %2384 = vrot.lane.b32.xlu0 %v1159, 64
      %v2385 = vpop.permute.xlu0 %2384
      %2386 = vrot.lane.b32.xlu0 %v1089, 64
      %v2387 = vpop.permute.xlu0 %2386
      %2388 = vrot.lane.b32.xlu0 %v1160, 64
      %v2389 = vpop.permute.xlu0 %2388
      %2390 = vrot.lane.b32.xlu0 %v1092, 64
      %v2391 = vpop.permute.xlu0 %2390
      %2392 = vrot.lane.b32.xlu0 %v1161, 64
      %v2393 = vpop.permute.xlu0 %2392
      %2394 = vrot.lane.b32.xlu0 %v1095, 64
      %v2395 = vpop.permute.xlu0 %2394
      %2396 = vrot.lane.b32.xlu0 %v1162, 64
      %v2397 = vpop.permute.xlu0 %2396
      %2398 = vrot.lane.b32.xlu0 %v1098, 64
      %v2399 = vpop.permute.xlu0 %2398
      %2432 = vrot.lane.b32.xlu0 %v1217, 96
      %v2433 = vpop.permute.xlu0 %2432
      %2434 = vrot.lane.b32.xlu0 %v1219, 96
      %v2435 = vpop.permute.xlu0 %2434
      %2436 = vrot.lane.b32.xlu0 %v1222, 96
      %v2437 = vpop.permute.xlu0 %2436
      %2438 = vrot.lane.b32.xlu0 %v1224, 96
      %v2439 = vpop.permute.xlu0 %2438
      %2440 = vrot.lane.b32.xlu0 %v1227, 96
      %v2441 = vpop.permute.xlu0 %2440
      %2442 = vrot.lane.b32.xlu0 %v1229, 96
      %v2443 = vpop.permute.xlu0 %2442
      %2444 = vrot.lane.b32.xlu0 %v1232, 96
      %v2445 = vpop.permute.xlu0 %2444
      %2446 = vrot.lane.b32.xlu0 %v1234, 96
      %v2447 = vpop.permute.xlu0 %2446
      %2448 = vrot.lane.b32.xlu0 %v1237, 96
      %v2449 = vpop.permute.xlu0 %2448
      %2450 = vrot.lane.b32.xlu0 %v1239, 96
      %v2451 = vpop.permute.xlu0 %2450
      %2452 = vrot.lane.b32.xlu0 %v1242, 96
      %v2453 = vpop.permute.xlu0 %2452
      %2454 = vrot.lane.b32.xlu0 %v1244, 96
      %v2455 = vpop.permute.xlu0 %2454
      %2456 = vrot.lane.b32.xlu0 %v1247, 96
      %v2457 = vpop.permute.xlu0 %2456
      %2458 = vrot.lane.b32.xlu0 %v1249, 96
      %v2459 = vpop.permute.xlu0 %2458
      %2460 = vrot.lane.b32.xlu0 %v1252, 96
      %v2461 = vpop.permute.xlu0 %2460
      %2462 = vrot.lane.b32.xlu0 %v1254, 96
      %v2463 = vpop.permute.xlu0 %2462
      %2464 = vrot.lane.b32.xlu0 %v1257, 96
      %v2465 = vpop.permute.xlu0 %2464
      %2466 = vrot.lane.b32.xlu0 %v1259, 96
      %v2467 = vpop.permute.xlu0 %2466
      %2468 = vrot.lane.b32.xlu0 %v1262, 96
      %v2469 = vpop.permute.xlu0 %2468
      %2470 = vrot.lane.b32.xlu0 %v1264, 96
      %v2471 = vpop.permute.xlu0 %2470
      %2472 = vrot.lane.b32.xlu0 %v1267, 96
      %v2473 = vpop.permute.xlu0 %2472
      %2474 = vrot.lane.b32.xlu0 %v1269, 96
      %v2475 = vpop.permute.xlu0 %2474
      %2476 = vrot.lane.b32.xlu0 %v1272, 96
      %v2477 = vpop.permute.xlu0 %2476
      %2478 = vrot.lane.b32.xlu0 %v1274, 96
      %v2479 = vpop.permute.xlu0 %2478
      %2480 = vrot.lane.b32.xlu0 %v1277, 96
      %v2481 = vpop.permute.xlu0 %2480
      %2482 = vrot.lane.b32.xlu0 %v1279, 96
      %v2483 = vpop.permute.xlu0 %2482
      %2484 = vrot.lane.b32.xlu0 %v1282, 96
      %v2485 = vpop.permute.xlu0 %2484
      %2486 = vrot.lane.b32.xlu0 %v1284, 96
      %v2487 = vpop.permute.xlu0 %2486
      %2488 = vrot.lane.b32.xlu0 %v1546, 96
      %v2489 = vpop.permute.xlu0 %2488
      %2490 = vrot.lane.b32.xlu0 %v1548, 96
      %v2491 = vpop.permute.xlu0 %2490
      %2492 = vrot.lane.b32.xlu0 %v1600, 96
      %v2493 = vpop.permute.xlu0 %2492
      %2494 = vrot.lane.b32.xlu0 %v1602, 96
      %v2495 = vpop.permute.xlu0 %2494
      %2528 = vrot.lane.b32.xlu0 %v1368, 32
      %v2529 = vpop.permute.xlu0 %2528
      %2530 = vrot.lane.b32.xlu0 %v1370, 32
      %v2531 = vpop.permute.xlu0 %2530
      %2532 = vrot.lane.b32.xlu0 %v1373, 32
      %v2533 = vpop.permute.xlu0 %2532
      %2534 = vrot.lane.b32.xlu0 %v1375, 32
      %v2535 = vpop.permute.xlu0 %2534
      %2536 = vrot.lane.b32.xlu0 %v1378, 32
      %v2537 = vpop.permute.xlu0 %2536
      %2538 = vrot.lane.b32.xlu0 %v1380, 32
      %v2539 = vpop.permute.xlu0 %2538
      %2540 = vrot.lane.b32.xlu0 %v1383, 32
      %v2541 = vpop.permute.xlu0 %2540
      %2542 = vrot.lane.b32.xlu0 %v1385, 32
      %v2543 = vpop.permute.xlu0 %2542
      %2544 = vrot.lane.b32.xlu0 %v1388, 32
      %v2545 = vpop.permute.xlu0 %2544
      %2546 = vrot.lane.b32.xlu0 %v1390, 32
      %v2547 = vpop.permute.xlu0 %2546
      %2548 = vrot.lane.b32.xlu0 %v1393, 32
      %v2549 = vpop.permute.xlu0 %2548
      %2550 = vrot.lane.b32.xlu0 %v1395, 32
      %v2551 = vpop.permute.xlu0 %2550
      %2552 = vrot.lane.b32.xlu0 %v1398, 32
      %v2553 = vpop.permute.xlu0 %2552
      %2554 = vrot.lane.b32.xlu0 %v1400, 32
      %v2555 = vpop.permute.xlu0 %2554
      %2556 = vrot.lane.b32.xlu0 %v1403, 32
      %v2557 = vpop.permute.xlu0 %2556
      %2558 = vrot.lane.b32.xlu0 %v1405, 32
      %v2559 = vpop.permute.xlu0 %2558
      %2560 = vrot.lane.b32.xlu0 %v1408, 32
      %v2561 = vpop.permute.xlu0 %2560
      %2562 = vrot.lane.b32.xlu0 %v1410, 32
      %v2563 = vpop.permute.xlu0 %2562
      %2564 = vrot.lane.b32.xlu0 %v1413, 32
      %v2565 = vpop.permute.xlu0 %2564
      %2566 = vrot.lane.b32.xlu0 %v1415, 32
      %v2567 = vpop.permute.xlu0 %2566
      %2568 = vrot.lane.b32.xlu0 %v1418, 32
      %v2569 = vpop.permute.xlu0 %2568
      %2570 = vrot.lane.b32.xlu0 %v1420, 32
      %v2571 = vpop.permute.xlu0 %2570
      %2572 = vrot.lane.b32.xlu0 %v1423, 32
      %v2573 = vpop.permute.xlu0 %2572
      %2574 = vrot.lane.b32.xlu0 %v1425, 32
      %v2575 = vpop.permute.xlu0 %2574
      %2576 = vrot.lane.b32.xlu0 %v1428, 32
      %v2577 = vpop.permute.xlu0 %2576
      %2578 = vrot.lane.b32.xlu0 %v1430, 32
      %v2579 = vpop.permute.xlu0 %2578
      %2580 = vrot.lane.b32.xlu0 %v1433, 32
      %v2581 = vpop.permute.xlu0 %2580
      %2582 = vrot.lane.b32.xlu0 %v1435, 32
      %v2583 = vpop.permute.xlu0 %2582
      %2584 = vrot.lane.b32.xlu0 %v1556, 32
      %v2585 = vpop.permute.xlu0 %2584
      %2586 = vrot.lane.b32.xlu0 %v1558, 32
      %v2587 = vpop.permute.xlu0 %2586
      %2588 = vrot.lane.b32.xlu0 %v1642, 32
      %v2589 = vpop.permute.xlu0 %2588
      %2590 = vrot.lane.b32.xlu0 %v1644, 32
      %v2591 = vpop.permute.xlu0 %2590
      %2624 = vrot.lane.b32.xlu0 %v1444, 64
      %v2625 = vpop.permute.xlu0 %2624
      %2626 = vrot.lane.b32.xlu0 %v1446, 64
      %v2627 = vpop.permute.xlu0 %2626
      %2628 = vrot.lane.b32.xlu0 %v1449, 64
      %v2629 = vpop.permute.xlu0 %2628
      %2630 = vrot.lane.b32.xlu0 %v1451, 64
      %v2631 = vpop.permute.xlu0 %2630
      %2632 = vrot.lane.b32.xlu0 %v1454, 64
      %v2633 = vpop.permute.xlu0 %2632
      %2634 = vrot.lane.b32.xlu0 %v1456, 64
      %v2635 = vpop.permute.xlu0 %2634
      %2636 = vrot.lane.b32.xlu0 %v1459, 64
      %v2637 = vpop.permute.xlu0 %2636
      %2638 = vrot.lane.b32.xlu0 %v1461, 64
      %v2639 = vpop.permute.xlu0 %2638
      %2640 = vrot.lane.b32.xlu0 %v1464, 64
      %v2641 = vpop.permute.xlu0 %2640
      %2642 = vrot.lane.b32.xlu0 %v1466, 64
      %v2643 = vpop.permute.xlu0 %2642
      %2644 = vrot.lane.b32.xlu0 %v1469, 64
      %v2645 = vpop.permute.xlu0 %2644
      %2646 = vrot.lane.b32.xlu0 %v1471, 64
      %v2647 = vpop.permute.xlu0 %2646
      %2648 = vrot.lane.b32.xlu0 %v1474, 64
      %v2649 = vpop.permute.xlu0 %2648
      %2650 = vrot.lane.b32.xlu0 %v1476, 64
      %v2651 = vpop.permute.xlu0 %2650
      %2652 = vrot.lane.b32.xlu0 %v1479, 64
      %v2653 = vpop.permute.xlu0 %2652
      %2654 = vrot.lane.b32.xlu0 %v1481, 64
      %v2655 = vpop.permute.xlu0 %2654
      %2656 = vrot.lane.b32.xlu0 %v1484, 64
      %v2657 = vpop.permute.xlu0 %2656
      %2658 = vrot.lane.b32.xlu0 %v1486, 64
      %v2659 = vpop.permute.xlu0 %2658
      %2660 = vrot.lane.b32.xlu0 %v1489, 64
      %v2661 = vpop.permute.xlu0 %2660
      %2662 = vrot.lane.b32.xlu0 %v1491, 64
      %v2663 = vpop.permute.xlu0 %2662
      %2664 = vrot.lane.b32.xlu0 %v1494, 64
      %v2665 = vpop.permute.xlu0 %2664
      %2666 = vrot.lane.b32.xlu0 %v1496, 64
      %v2667 = vpop.permute.xlu0 %2666
      %2668 = vrot.lane.b32.xlu0 %v1499, 64
      %v2669 = vpop.permute.xlu0 %2668
      %2670 = vrot.lane.b32.xlu0 %v1501, 64
      %v2671 = vpop.permute.xlu0 %2670
      %2672 = vrot.lane.b32.xlu0 %v1504, 64
      %v2673 = vpop.permute.xlu0 %2672
      %2674 = vrot.lane.b32.xlu0 %v1506, 64
      %v2675 = vpop.permute.xlu0 %2674
      %2676 = vrot.lane.b32.xlu0 %v1509, 64
      %v2677 = vpop.permute.xlu0 %2676
      %2678 = vrot.lane.b32.xlu0 %v1511, 64
      %v2679 = vpop.permute.xlu0 %2678
      %2680 = vrot.lane.b32.xlu0 %v1593, 64
      %v2681 = vpop.permute.xlu0 %2680
      %2682 = vrot.lane.b32.xlu0 %v1595, 64
      %v2683 = vpop.permute.xlu0 %2682
      %2684 = vrot.lane.b32.xlu0 %v1647, 64
      %v2685 = vpop.permute.xlu0 %2684
      %2686 = vrot.lane.b32.xlu0 %v1649, 64
      %v2687 = vpop.permute.xlu0 %2686
      %2720 = vrot.lane.b32.xlu0 %v1148, 96
      %v2721 = vpop.permute.xlu0 %2720
      %2722 = vrot.lane.b32.xlu0 %v1056, 96
      %v2723 = vpop.permute.xlu0 %2722
      %2724 = vrot.lane.b32.xlu0 %v1149, 96
      %v2725 = vpop.permute.xlu0 %2724
      %2726 = vrot.lane.b32.xlu0 %v1059, 96
      %v2727 = vpop.permute.xlu0 %2726
      %2728 = vrot.lane.b32.xlu0 %v1150, 96
      %v2729 = vpop.permute.xlu0 %2728
      %2730 = vrot.lane.b32.xlu0 %v1062, 96
      %v2731 = vpop.permute.xlu0 %2730
      %2732 = vrot.lane.b32.xlu0 %v1151, 96
      %v2733 = vpop.permute.xlu0 %2732
      %2734 = vrot.lane.b32.xlu0 %v1065, 96
      %v2735 = vpop.permute.xlu0 %2734
      %2736 = vrot.lane.b32.xlu0 %v1152, 96
      %v2737 = vpop.permute.xlu0 %2736
      %2738 = vrot.lane.b32.xlu0 %v1068, 96
      %v2739 = vpop.permute.xlu0 %2738
      %2740 = vrot.lane.b32.xlu0 %v1153, 96
      %v2741 = vpop.permute.xlu0 %2740
      %2742 = vrot.lane.b32.xlu0 %v1071, 96
      %v2743 = vpop.permute.xlu0 %2742
      %2744 = vrot.lane.b32.xlu0 %v1154, 96
      %v2745 = vpop.permute.xlu0 %2744
      %2746 = vrot.lane.b32.xlu0 %v1074, 96
      %v2747 = vpop.permute.xlu0 %2746
      %2748 = vrot.lane.b32.xlu0 %v1155, 96
      %v2749 = vpop.permute.xlu0 %2748
      %2750 = vrot.lane.b32.xlu0 %v1077, 96
      %v2751 = vpop.permute.xlu0 %2750
      %2752 = vrot.lane.b32.xlu0 %v1156, 96
      %v2753 = vpop.permute.xlu0 %2752
      %2754 = vrot.lane.b32.xlu0 %v1080, 96
      %v2755 = vpop.permute.xlu0 %2754
      %2756 = vrot.lane.b32.xlu0 %v1157, 96
      %v2757 = vpop.permute.xlu0 %2756
      %2758 = vrot.lane.b32.xlu0 %v1083, 96
      %v2759 = vpop.permute.xlu0 %2758
      %2760 = vrot.lane.b32.xlu0 %v1158, 96
      %v2761 = vpop.permute.xlu0 %2760
      %2762 = vrot.lane.b32.xlu0 %v1086, 96
      %v2763 = vpop.permute.xlu0 %2762
      %2764 = vrot.lane.b32.xlu0 %v1159, 96
      %v2765 = vpop.permute.xlu0 %2764
      %2766 = vrot.lane.b32.xlu0 %v1089, 96
      %v2767 = vpop.permute.xlu0 %2766
      %2768 = vrot.lane.b32.xlu0 %v1160, 96
      %v2769 = vpop.permute.xlu0 %2768
      %2770 = vrot.lane.b32.xlu0 %v1092, 96
      %v2771 = vpop.permute.xlu0 %2770
      %2772 = vrot.lane.b32.xlu0 %v1161, 96
      %v2773 = vpop.permute.xlu0 %2772
      %2774 = vrot.lane.b32.xlu0 %v1095, 96
      %v2775 = vpop.permute.xlu0 %2774
      %2776 = vrot.lane.b32.xlu0 %v1162, 96
      %v2777 = vpop.permute.xlu0 %2776
      %2778 = vrot.lane.b32.xlu0 %v1098, 96
      %v2779 = vpop.permute.xlu0 %2778
      %2780 = vrot.lane.b32.xlu0 %v641, 96
      %v2781 = vpop.permute.xlu0 %2780
      %2782 = vrot.lane.b32.xlu0 %v578, 96
      %v2783 = vpop.permute.xlu0 %2782
      %vm2816 = vcmask 261120
      %v2817 = vsel %vm2816, %v641, %v1683
      %v2818 = vsel %vm2816, %v578, %v1685
      %v2819 = vsel %vm2816, %v1147, %v1687
      %v2820 = vsel %vm2816, %v1053, %v1689
      %v2821 = vsel %vm2816, %v1148, %v1691
      %v2822 = vsel %vm2816, %v1056, %v1693
      %v2823 = vsel %vm2816, %v1149, %v1695
      %v2824 = vsel %vm2816, %v1059, %v1697
      %v2825 = vsel %vm2816, %v1150, %v1699
      %v2826 = vsel %vm2816, %v1062, %v1701
      %v2827 = vsel %vm2816, %v1151, %v1703
      %v2828 = vsel %vm2816, %v1065, %v1705
      %v2829 = vsel %vm2816, %v1152, %v1707
      %v2830 = vsel %vm2816, %v1068, %v1709
      %v2831 = vsel %vm2816, %v1153, %v1711
      %v2832 = vsel %vm2816, %v1071, %v1713
      %v2833 = vsel %vm2816, %v1154, %v1715
      %v2834 = vsel %vm2816, %v1074, %v1717
      %v2835 = vsel %vm2816, %v1155, %v1719
      %v2836 = vsel %vm2816, %v1077, %v1721
      %v2837 = vsel %vm2816, %v1156, %v1723
      %v2838 = vsel %vm2816, %v1080, %v1725
      %v2839 = vsel %vm2816, %v1157, %v1727
      %v2840 = vsel %vm2816, %v1083, %v1729
      %v2841 = vsel %vm2816, %v1158, %v1731
      %v2842 = vsel %vm2816, %v1086, %v1733
      %v2843 = vsel %vm2816, %v1159, %v1735
      %v2844 = vsel %vm2816, %v1089, %v1737
      %v2845 = vsel %vm2816, %v1160, %v1739
      %v2846 = vsel %vm2816, %v1092, %v1741
      %v2847 = vsel %vm683, %v2817, %v1773
      %v2848 = vsel %vm683, %v2818, %v1775
      %v2849 = vsel %vm683, %v2819, %v1777
      %v2850 = vsel %vm683, %v2820, %v1779
      %v2851 = vsel %vm683, %v2821, %v1781
      %v2852 = vsel %vm683, %v2822, %v1783
      %v2853 = vsel %vm683, %v2823, %v1785
      %v2854 = vsel %vm683, %v2824, %v1787
      %v2855 = vsel %vm683, %v2825, %v1789
      %v2856 = vsel %vm683, %v2826, %v1791
      %v2857 = vsel %vm683, %v2827, %v1793
      %v2858 = vsel %vm683, %v2828, %v1795
      %v2859 = vsel %vm683, %v2829, %v1797
      %v2860 = vsel %vm683, %v2830, %v1799
      %v2861 = vsel %vm683, %v2831, %v1801
      %v2862 = vsel %vm683, %v2832, %v1803
      %v2863 = vsel %vm683, %v2833, %v1805
      %v2864 = vsel %vm683, %v2834, %v1807
      %v2865 = vsel %vm683, %v2835, %v1809
      %v2866 = vsel %vm683, %v2836, %v1811
      %v2867 = vsel %vm683, %v2837, %v1813
      %v2868 = vsel %vm683, %v2838, %v1815
      %v2869 = vsel %vm683, %v2839, %v1817
      %v2870 = vsel %vm683, %v2840, %v1819
      %v2871 = vsel %vm683, %v2841, %v1821
      %v2872 = vsel %vm683, %v2842, %v1823
      %v2873 = vsel %vm683, %v2843, %v1825
      %v2874 = vsel %vm683, %v2844, %v1827
      %v2875 = vsel %vm683, %v2845, %v1829
      %v2876 = vsel %vm683, %v2846, %v1831
      %vm2877 = vcmask 785408
      %v2878 = vsel %vm2877, %v2847, %v1863
      %v2879 = vsel %vm2877, %v2848, %v1865
      %v2880 = vsel %vm2877, %v2849, %v1867
      %v2881 = vsel %vm2877, %v2850, %v1869
      %v2882 = vsel %vm2877, %v2851, %v1871
      %v2883 = vsel %vm2877, %v2852, %v1873
      %v2884 = vsel %vm2877, %v2853, %v1875
      %v2885 = vsel %vm2877, %v2854, %v1877
      %v2886 = vsel %vm2877, %v2855, %v1879
      %v2887 = vsel %vm2877, %v2856, %v1881
      %v2888 = vsel %vm2877, %v2857, %v1883
      %v2889 = vsel %vm2877, %v2858, %v1885
      %v2890 = vsel %vm2877, %v2859, %v1887
      %v2891 = vsel %vm2877, %v2860, %v1889
      %v2892 = vsel %vm2877, %v2861, %v1891
      %v2893 = vsel %vm2877, %v2862, %v1893
      %v2894 = vsel %vm2877, %v2863, %v1895
      %v2895 = vsel %vm2877, %v2864, %v1897
      %v2896 = vsel %vm2877, %v2865, %v1899
      %v2897 = vsel %vm2877, %v2866, %v1901
      %v2898 = vsel %vm2877, %v2867, %v1903
      %v2899 = vsel %vm2877, %v2868, %v1905
      %v2900 = vsel %vm2877, %v2869, %v1907
      %v2901 = vsel %vm2877, %v2870, %v1909
      %v2902 = vsel %vm2877, %v2871, %v1911
      %v2903 = vsel %vm2877, %v2872, %v1913
      %v2904 = vsel %vm2877, %v2873, %v1915
      %v2905 = vsel %vm2877, %v2874, %v1917
      %v2906 = vsel %vm2877, %v2875, %v1919
      %v2907 = vsel %vm2877, %v2876, %v1921
      %v2908 = vsel %vm2816, %v1439, %v1953
      %v2909 = vsel %vm2816, %v1441, %v1955
      %v2910 = vsel %vm2816, %v1439, %v1957
      %v2911 = vsel %vm2816, %v1441, %v1959
      %v2912 = vsel %vm2816, %v1444, %v1961
      %v2913 = vsel %vm2816, %v1446, %v1963
      %v2914 = vsel %vm2816, %v1449, %v1965
      %v2915 = vsel %vm2816, %v1451, %v1967
      %v2916 = vsel %vm2816, %v1454, %v1969
      %v2917 = vsel %vm2816, %v1456, %v1971
      %v2918 = vsel %vm2816, %v1459, %v1973
      %v2919 = vsel %vm2816, %v1461, %v1975
      %v2920 = vsel %vm2816, %v1464, %v1977
      %v2921 = vsel %vm2816, %v1466, %v1979
      %v2922 = vsel %vm2816, %v1469, %v1981
      %v2923 = vsel %vm2816, %v1471, %v1983
      %v2924 = vsel %vm2816, %v1474, %v1985
      %v2925 = vsel %vm2816, %v1476, %v1987
      %v2926 = vsel %vm2816, %v1479, %v1989
      %v2927 = vsel %vm2816, %v1481, %v1991
      %v2928 = vsel %vm2816, %v1484, %v1993
      %v2929 = vsel %vm2816, %v1486, %v1995
      %v2930 = vsel %vm2816, %v1489, %v1997
      %v2931 = vsel %vm2816, %v1491, %v1999
      %v2932 = vsel %vm2816, %v1494, %v2001
      %v2933 = vsel %vm2816, %v1496, %v2003
      %v2934 = vsel %vm2816, %v1499, %v2005
      %v2935 = vsel %vm2816, %v1501, %v2007
      %v2936 = vsel %vm2816, %v1504, %v2009
      %v2937 = vsel %vm2816, %v1506, %v2011
      %v2938 = vsel %vm2816, %v1509, %v2013
      %v2939 = vsel %vm2816, %v1511, %v2015
      %v2940 = vsel %vm683, %v2908, %v2049
      %v2941 = vsel %vm683, %v2909, %v2051
      %v2942 = vsel %vm683, %v2910, %v2053
      %v2943 = vsel %vm683, %v2911, %v2055
      %v2944 = vsel %vm683, %v2912, %v2057
      %v2945 = vsel %vm683, %v2913, %v2059
      %v2946 = vsel %vm683, %v2914, %v2061
      %v2947 = vsel %vm683, %v2915, %v2063
      %v2948 = vsel %vm683, %v2916, %v2065
      %v2949 = vsel %vm683, %v2917, %v2067
      %v2950 = vsel %vm683, %v2918, %v2069
      %v2951 = vsel %vm683, %v2919, %v2071
      %v2952 = vsel %vm683, %v2920, %v2073
      %v2953 = vsel %vm683, %v2921, %v2075
      %v2954 = vsel %vm683, %v2922, %v2077
      %v2955 = vsel %vm683, %v2923, %v2079
      %v2956 = vsel %vm683, %v2924, %v2081
      %v2957 = vsel %vm683, %v2925, %v2083
      %v2958 = vsel %vm683, %v2926, %v2085
      %v2959 = vsel %vm683, %v2927, %v2087
      %v2960 = vsel %vm683, %v2928, %v2089
      %v2961 = vsel %vm683, %v2929, %v2091
      %v2962 = vsel %vm683, %v2930, %v2093
      %v2963 = vsel %vm683, %v2931, %v2095
      %v2964 = vsel %vm683, %v2932, %v2097
      %v2965 = vsel %vm683, %v2933, %v2099
      %v2966 = vsel %vm683, %v2934, %v2101
      %v2967 = vsel %vm683, %v2935, %v2103
      %v2968 = vsel %vm683, %v2936, %v2105
      %v2969 = vsel %vm683, %v2937, %v2107
      %v2970 = vsel %vm683, %v2938, %v2109
      %v2971 = vsel %vm683, %v2939, %v2111
      %v2972 = vsel %vm2877, %v2940, %v2145
      %v2973 = vsel %vm2877, %v2941, %v2147
      %v2974 = vsel %vm2877, %v2942, %v2149
      %v2975 = vsel %vm2877, %v2943, %v2151
      %v2976 = vsel %vm2877, %v2944, %v2153
      %v2977 = vsel %vm2877, %v2945, %v2155
      %v2978 = vsel %vm2877, %v2946, %v2157
      %v2979 = vsel %vm2877, %v2947, %v2159
      %v2980 = vsel %vm2877, %v2948, %v2161
      %v2981 = vsel %vm2877, %v2949, %v2163
      %v2982 = vsel %vm2877, %v2950, %v2165
      %v2983 = vsel %vm2877, %v2951, %v2167
      %v2984 = vsel %vm2877, %v2952, %v2169
      %v2985 = vsel %vm2877, %v2953, %v2171
      %v2986 = vsel %vm2877, %v2954, %v2173
      %v2987 = vsel %vm2877, %v2955, %v2175
      %v2988 = vsel %vm2877, %v2956, %v2177
      %v2989 = vsel %vm2877, %v2957, %v2179
      %v2990 = vsel %vm2877, %v2958, %v2181
      %v2991 = vsel %vm2877, %v2959, %v2183
      %v2992 = vsel %vm2877, %v2960, %v2185
      %v2993 = vsel %vm2877, %v2961, %v2187
      %v2994 = vsel %vm2877, %v2962, %v2189
      %v2995 = vsel %vm2877, %v2963, %v2191
      %v2996 = vsel %vm2877, %v2964, %v2193
      %v2997 = vsel %vm2877, %v2965, %v2195
      %v2998 = vsel %vm2877, %v2966, %v2197
      %v2999 = vsel %vm2877, %v2967, %v2199
      %v3000 = vsel %vm2877, %v2968, %v2201
      %v3001 = vsel %vm2877, %v2969, %v2203
      %v3002 = vsel %vm2877, %v2970, %v2205
      %v3003 = vsel %vm2877, %v2971, %v2207
      %v3004 = vsel %vm2816, %v1363, %v2241
      %v3005 = vsel %vm2816, %v1365, %v2243
      %v3006 = vsel %vm2816, %v1368, %v2245
      %v3007 = vsel %vm2816, %v1370, %v2247
      %v3008 = vsel %vm2816, %v1373, %v2249
      %v3009 = vsel %vm2816, %v1375, %v2251
      %v3010 = vsel %vm2816, %v1378, %v2253
      %v3011 = vsel %vm2816, %v1380, %v2255
      %v3012 = vsel %vm2816, %v1383, %v2257
      %v3013 = vsel %vm2816, %v1385, %v2259
      %v3014 = vsel %vm2816, %v1388, %v2261
      %v3015 = vsel %vm2816, %v1390, %v2263
      %v3016 = vsel %vm2816, %v1393, %v2265
      %v3017 = vsel %vm2816, %v1395, %v2267
      %v3018 = vsel %vm2816, %v1398, %v2269
      %v3019 = vsel %vm2816, %v1400, %v2271
      %v3020 = vsel %vm2816, %v1403, %v2273
      %v3021 = vsel %vm2816, %v1405, %v2275
      %v3022 = vsel %vm2816, %v1408, %v2277
      %v3023 = vsel %vm2816, %v1410, %v2279
      %v3024 = vsel %vm2816, %v1413, %v2281
      %v3025 = vsel %vm2816, %v1415, %v2283
      %v3026 = vsel %vm2816, %v1418, %v2285
      %v3027 = vsel %vm2816, %v1420, %v2287
      %v3028 = vsel %vm2816, %v1423, %v2289
      %v3029 = vsel %vm2816, %v1425, %v2291
      %v3030 = vsel %vm2816, %v1428, %v2293
      %v3031 = vsel %vm2816, %v1430, %v2295
      %v3032 = vsel %vm2816, %v1433, %v2297
      %v3033 = vsel %vm2816, %v1435, %v2299
      %v3034 = vsel %vm2816, %v1556, %v2301
      %v3035 = vsel %vm2816, %v1558, %v2303
      %v3036 = vsel %vm683, %v3004, %v2337
      %v3037 = vsel %vm683, %v3005, %v2339
      %v3038 = vsel %vm683, %v3006, %v2341
      %v3039 = vsel %vm683, %v3007, %v2343
      %v3040 = vsel %vm683, %v3008, %v2345
      %v3041 = vsel %vm683, %v3009, %v2347
      %v3042 = vsel %vm683, %v3010, %v2349
      %v3043 = vsel %vm683, %v3011, %v2351
      %v3044 = vsel %vm683, %v3012, %v2353
      %v3045 = vsel %vm683, %v3013, %v2355
      %v3046 = vsel %vm683, %v3014, %v2357
      %v3047 = vsel %vm683, %v3015, %v2359
      %v3048 = vsel %vm683, %v3016, %v2361
      %v3049 = vsel %vm683, %v3017, %v2363
      %v3050 = vsel %vm683, %v3018, %v2365
      %v3051 = vsel %vm683, %v3019, %v2367
      %v3052 = vsel %vm683, %v3020, %v2369
      %v3053 = vsel %vm683, %v3021, %v2371
      %v3054 = vsel %vm683, %v3022, %v2373
      %v3055 = vsel %vm683, %v3023, %v2375
      %v3056 = vsel %vm683, %v3024, %v2377
      %v3057 = vsel %vm683, %v3025, %v2379
      %v3058 = vsel %vm683, %v3026, %v2381
      %v3059 = vsel %vm683, %v3027, %v2383
      %v3060 = vsel %vm683, %v3028, %v2385
      %v3061 = vsel %vm683, %v3029, %v2387
      %v3062 = vsel %vm683, %v3030, %v2389
      %v3063 = vsel %vm683, %v3031, %v2391
      %v3064 = vsel %vm683, %v3032, %v2393
      %v3065 = vsel %vm683, %v3033, %v2395
      %v3066 = vsel %vm683, %v3034, %v2397
      %v3067 = vsel %vm683, %v3035, %v2399
      %v3068 = vsel %vm2877, %v3036, %v2433
      %v3069 = vsel %vm2877, %v3037, %v2435
      %v3070 = vsel %vm2877, %v3038, %v2437
      %v3071 = vsel %vm2877, %v3039, %v2439
      %v3072 = vsel %vm2877, %v3040, %v2441
      %v3073 = vsel %vm2877, %v3041, %v2443
      %v3074 = vsel %vm2877, %v3042, %v2445
      %v3075 = vsel %vm2877, %v3043, %v2447
      %v3076 = vsel %vm2877, %v3044, %v2449
      %v3077 = vsel %vm2877, %v3045, %v2451
      %v3078 = vsel %vm2877, %v3046, %v2453
      %v3079 = vsel %vm2877, %v3047, %v2455
      %v3080 = vsel %vm2877, %v3048, %v2457
      %v3081 = vsel %vm2877, %v3049, %v2459
      %v3082 = vsel %vm2877, %v3050, %v2461
      %v3083 = vsel %vm2877, %v3051, %v2463
      %v3084 = vsel %vm2877, %v3052, %v2465
      %v3085 = vsel %vm2877, %v3053, %v2467
      %v3086 = vsel %vm2877, %v3054, %v2469
      %v3087 = vsel %vm2877, %v3055, %v2471
      %v3088 = vsel %vm2877, %v3056, %v2473
      %v3089 = vsel %vm2877, %v3057, %v2475
      %v3090 = vsel %vm2877, %v3058, %v2477
      %v3091 = vsel %vm2877, %v3059, %v2479
      %v3092 = vsel %vm2877, %v3060, %v2481
      %v3093 = vsel %vm2877, %v3061, %v2483
      %v3094 = vsel %vm2877, %v3062, %v2485
      %v3095 = vsel %vm2877, %v3063, %v2487
      %v3096 = vsel %vm2877, %v3064, %v2489
      %v3097 = vsel %vm2877, %v3065, %v2491
      %v3098 = vsel %vm2877, %v3066, %v2493
      %v3099 = vsel %vm2877, %v3067, %v2495
      %v3100 = vsel %vm2816, %v1292, %v2529
      %v3101 = vsel %vm2816, %v1294, %v2531
      %v3102 = vsel %vm2816, %v1297, %v2533
      %v3103 = vsel %vm2816, %v1299, %v2535
      %v3104 = vsel %vm2816, %v1302, %v2537
      %v3105 = vsel %vm2816, %v1304, %v2539
      %v3106 = vsel %vm2816, %v1307, %v2541
      %v3107 = vsel %vm2816, %v1309, %v2543
      %v3108 = vsel %vm2816, %v1312, %v2545
      %v3109 = vsel %vm2816, %v1314, %v2547
      %v3110 = vsel %vm2816, %v1317, %v2549
      %v3111 = vsel %vm2816, %v1319, %v2551
      %v3112 = vsel %vm2816, %v1322, %v2553
      %v3113 = vsel %vm2816, %v1324, %v2555
      %v3114 = vsel %vm2816, %v1327, %v2557
      %v3115 = vsel %vm2816, %v1329, %v2559
      %v3116 = vsel %vm2816, %v1332, %v2561
      %v3117 = vsel %vm2816, %v1334, %v2563
      %v3118 = vsel %vm2816, %v1337, %v2565
      %v3119 = vsel %vm2816, %v1339, %v2567
      %v3120 = vsel %vm2816, %v1342, %v2569
      %v3121 = vsel %vm2816, %v1344, %v2571
      %v3122 = vsel %vm2816, %v1347, %v2573
      %v3123 = vsel %vm2816, %v1349, %v2575
      %v3124 = vsel %vm2816, %v1352, %v2577
      %v3125 = vsel %vm2816, %v1354, %v2579
      %v3126 = vsel %vm2816, %v1357, %v2581
      %v3127 = vsel %vm2816, %v1359, %v2583
      %v3128 = vsel %vm2816, %v1551, %v2585
      %v3129 = vsel %vm2816, %v1553, %v2587
      %v3130 = vsel %vm2816, %v1605, %v2589
      %v3131 = vsel %vm2816, %v1607, %v2591
      %v3132 = vsel %vm683, %v3100, %v2625
      %v3133 = vsel %vm683, %v3101, %v2627
      %v3134 = vsel %vm683, %v3102, %v2629
      %v3135 = vsel %vm683, %v3103, %v2631
      %v3136 = vsel %vm683, %v3104, %v2633
      %v3137 = vsel %vm683, %v3105, %v2635
      %v3138 = vsel %vm683, %v3106, %v2637
      %v3139 = vsel %vm683, %v3107, %v2639
      %v3140 = vsel %vm683, %v3108, %v2641
      %v3141 = vsel %vm683, %v3109, %v2643
      %v3142 = vsel %vm683, %v3110, %v2645
      %v3143 = vsel %vm683, %v3111, %v2647
      %v3144 = vsel %vm683, %v3112, %v2649
      %v3145 = vsel %vm683, %v3113, %v2651
      %v3146 = vsel %vm683, %v3114, %v2653
      %v3147 = vsel %vm683, %v3115, %v2655
      %v3148 = vsel %vm683, %v3116, %v2657
      %v3149 = vsel %vm683, %v3117, %v2659
      %v3150 = vsel %vm683, %v3118, %v2661
      %v3151 = vsel %vm683, %v3119, %v2663
      %v3152 = vsel %vm683, %v3120, %v2665
      %v3153 = vsel %vm683, %v3121, %v2667
      %v3154 = vsel %vm683, %v3122, %v2669
      %v3155 = vsel %vm683, %v3123, %v2671
      %v3156 = vsel %vm683, %v3124, %v2673
      %v3157 = vsel %vm683, %v3125, %v2675
      %v3158 = vsel %vm683, %v3126, %v2677
      %v3159 = vsel %vm683, %v3127, %v2679
      %v3160 = vsel %vm683, %v3128, %v2681
      %v3161 = vsel %vm683, %v3129, %v2683
      %v3162 = vsel %vm683, %v3130, %v2685
      %v3163 = vsel %vm683, %v3131, %v2687
      %v3164 = vsel %vm2877, %v3132, %v2721
      %v3165 = vsel %vm2877, %v3133, %v2723
      %v3166 = vsel %vm2877, %v3134, %v2725
      %v3167 = vsel %vm2877, %v3135, %v2727
      %v3168 = vsel %vm2877, %v3136, %v2729
      %v3169 = vsel %vm2877, %v3137, %v2731
      %v3170 = vsel %vm2877, %v3138, %v2733
      %v3171 = vsel %vm2877, %v3139, %v2735
      %v3172 = vsel %vm2877, %v3140, %v2737
      %v3173 = vsel %vm2877, %v3141, %v2739
      %v3174 = vsel %vm2877, %v3142, %v2741
      %v3175 = vsel %vm2877, %v3143, %v2743
      %v3176 = vsel %vm2877, %v3144, %v2745
      %v3177 = vsel %vm2877, %v3145, %v2747
      %v3178 = vsel %vm2877, %v3146, %v2749
      %v3179 = vsel %vm2877, %v3147, %v2751
      %v3180 = vsel %vm2877, %v3148, %v2753
      %v3181 = vsel %vm2877, %v3149, %v2755
      %v3182 = vsel %vm2877, %v3150, %v2757
      %v3183 = vsel %vm2877, %v3151, %v2759
      %v3184 = vsel %vm2877, %v3152, %v2761
      %v3185 = vsel %vm2877, %v3153, %v2763
      %v3186 = vsel %vm2877, %v3154, %v2765
      %v3187 = vsel %vm2877, %v3155, %v2767
      %v3188 = vsel %vm2877, %v3156, %v2769
      %v3189 = vsel %vm2877, %v3157, %v2771
      %v3190 = vsel %vm2877, %v3158, %v2773
      %v3191 = vsel %vm2877, %v3159, %v2775
      %v3192 = vsel %vm2877, %v3160, %v2777
      %v3193 = vsel %vm2877, %v3161, %v2779
      %v3194 = vsel %vm2877, %v3162, %v2781
      %v3195 = vsel %vm2877, %v3163, %v2783
      %3196 = vrot.lane.b32.xlu0 %v1297, 32
      %v3197 = vpop.permute.xlu0 %3196
      %3198 = vrot.lane.b32.xlu0 %v1299, 32
      %v3199 = vpop.permute.xlu0 %3198
      %3200 = vrot.lane.b32.xlu0 %v1302, 32
      %v3201 = vpop.permute.xlu0 %3200
      %3202 = vrot.lane.b32.xlu0 %v1304, 32
      %v3203 = vpop.permute.xlu0 %3202
      %3204 = vrot.lane.b32.xlu0 %v1307, 32
      %v3205 = vpop.permute.xlu0 %3204
      %3206 = vrot.lane.b32.xlu0 %v1309, 32
      %v3207 = vpop.permute.xlu0 %3206
      %3208 = vrot.lane.b32.xlu0 %v1312, 32
      %v3209 = vpop.permute.xlu0 %3208
      %3210 = vrot.lane.b32.xlu0 %v1314, 32
      %v3211 = vpop.permute.xlu0 %3210
      %3212 = vrot.lane.b32.xlu0 %v1317, 32
      %v3213 = vpop.permute.xlu0 %3212
      %3214 = vrot.lane.b32.xlu0 %v1319, 32
      %v3215 = vpop.permute.xlu0 %3214
      %3216 = vrot.lane.b32.xlu0 %v1322, 32
      %v3217 = vpop.permute.xlu0 %3216
      %3218 = vrot.lane.b32.xlu0 %v1324, 32
      %v3219 = vpop.permute.xlu0 %3218
      %3220 = vrot.lane.b32.xlu0 %v1327, 32
      %v3221 = vpop.permute.xlu0 %3220
      %3222 = vrot.lane.b32.xlu0 %v1329, 32
      %v3223 = vpop.permute.xlu0 %3222
      %3224 = vrot.lane.b32.xlu0 %v1332, 32
      %v3225 = vpop.permute.xlu0 %3224
      %3226 = vrot.lane.b32.xlu0 %v1334, 32
      %v3227 = vpop.permute.xlu0 %3226
      %3228 = vrot.lane.b32.xlu0 %v1337, 32
      %v3229 = vpop.permute.xlu0 %3228
      %3230 = vrot.lane.b32.xlu0 %v1339, 32
      %v3231 = vpop.permute.xlu0 %3230
      %3232 = vrot.lane.b32.xlu0 %v1342, 32
      %v3233 = vpop.permute.xlu0 %3232
      %3234 = vrot.lane.b32.xlu0 %v1344, 32
      %v3235 = vpop.permute.xlu0 %3234
      %3236 = vrot.lane.b32.xlu0 %v1347, 32
      %v3237 = vpop.permute.xlu0 %3236
      %3238 = vrot.lane.b32.xlu0 %v1349, 32
      %v3239 = vpop.permute.xlu0 %3238
      %3240 = vrot.lane.b32.xlu0 %v1352, 32
      %v3241 = vpop.permute.xlu0 %3240
      %3242 = vrot.lane.b32.xlu0 %v1354, 32
      %v3243 = vpop.permute.xlu0 %3242
      %3244 = vrot.lane.b32.xlu0 %v1357, 32
      %v3245 = vpop.permute.xlu0 %3244
      %3246 = vrot.lane.b32.xlu0 %v1359, 32
      %v3247 = vpop.permute.xlu0 %3246
      %3248 = vrot.lane.b32.xlu0 %v1551, 32
      %v3249 = vpop.permute.xlu0 %3248
      %3250 = vrot.lane.b32.xlu0 %v1553, 32
      %v3251 = vpop.permute.xlu0 %3250
      %3252 = vrot.lane.b32.xlu0 %v1605, 32
      %v3253 = vpop.permute.xlu0 %3252
      %3254 = vrot.lane.b32.xlu0 %v1607, 32
      %v3255 = vpop.permute.xlu0 %3254
      %3256 = vrot.lane.b32.xlu0 %v1287, 32
      %v3257 = vpop.permute.xlu0 %3256
      %3258 = vrot.lane.b32.xlu0 %v1289, 32
      %v3259 = vpop.permute.xlu0 %3258
      %3292 = vrot.lane.b32.xlu0 %v1373, 64
      %v3293 = vpop.permute.xlu0 %3292
      %3294 = vrot.lane.b32.xlu0 %v1375, 64
      %v3295 = vpop.permute.xlu0 %3294
      %3296 = vrot.lane.b32.xlu0 %v1378, 64
      %v3297 = vpop.permute.xlu0 %3296
      %3298 = vrot.lane.b32.xlu0 %v1380, 64
      %v3299 = vpop.permute.xlu0 %3298
      %3300 = vrot.lane.b32.xlu0 %v1383, 64
      %v3301 = vpop.permute.xlu0 %3300
      %3302 = vrot.lane.b32.xlu0 %v1385, 64
      %v3303 = vpop.permute.xlu0 %3302
      %3304 = vrot.lane.b32.xlu0 %v1388, 64
      %v3305 = vpop.permute.xlu0 %3304
      %3306 = vrot.lane.b32.xlu0 %v1390, 64
      %v3307 = vpop.permute.xlu0 %3306
      %3308 = vrot.lane.b32.xlu0 %v1393, 64
      %v3309 = vpop.permute.xlu0 %3308
      %3310 = vrot.lane.b32.xlu0 %v1395, 64
      %v3311 = vpop.permute.xlu0 %3310
      %3312 = vrot.lane.b32.xlu0 %v1398, 64
      %v3313 = vpop.permute.xlu0 %3312
      %3314 = vrot.lane.b32.xlu0 %v1400, 64
      %v3315 = vpop.permute.xlu0 %3314
      %3316 = vrot.lane.b32.xlu0 %v1403, 64
      %v3317 = vpop.permute.xlu0 %3316
      %3318 = vrot.lane.b32.xlu0 %v1405, 64
      %v3319 = vpop.permute.xlu0 %3318
      %3320 = vrot.lane.b32.xlu0 %v1408, 64
      %v3321 = vpop.permute.xlu0 %3320
      %3322 = vrot.lane.b32.xlu0 %v1410, 64
      %v3323 = vpop.permute.xlu0 %3322
      %3324 = vrot.lane.b32.xlu0 %v1413, 64
      %v3325 = vpop.permute.xlu0 %3324
      %3326 = vrot.lane.b32.xlu0 %v1415, 64
      %v3327 = vpop.permute.xlu0 %3326
      %3328 = vrot.lane.b32.xlu0 %v1418, 64
      %v3329 = vpop.permute.xlu0 %3328
      %3330 = vrot.lane.b32.xlu0 %v1420, 64
      %v3331 = vpop.permute.xlu0 %3330
      %3332 = vrot.lane.b32.xlu0 %v1423, 64
      %v3333 = vpop.permute.xlu0 %3332
      %3334 = vrot.lane.b32.xlu0 %v1425, 64
      %v3335 = vpop.permute.xlu0 %3334
      %3336 = vrot.lane.b32.xlu0 %v1428, 64
      %v3337 = vpop.permute.xlu0 %3336
      %3338 = vrot.lane.b32.xlu0 %v1430, 64
      %v3339 = vpop.permute.xlu0 %3338
      %3340 = vrot.lane.b32.xlu0 %v1433, 64
      %v3341 = vpop.permute.xlu0 %3340
      %3342 = vrot.lane.b32.xlu0 %v1435, 64
      %v3343 = vpop.permute.xlu0 %3342
      %3344 = vrot.lane.b32.xlu0 %v1556, 64
      %v3345 = vpop.permute.xlu0 %3344
      %3346 = vrot.lane.b32.xlu0 %v1558, 64
      %v3347 = vpop.permute.xlu0 %3346
      %3348 = vrot.lane.b32.xlu0 %v1642, 64
      %v3349 = vpop.permute.xlu0 %3348
      %3350 = vrot.lane.b32.xlu0 %v1644, 64
      %v3351 = vpop.permute.xlu0 %3350
      %3352 = vrot.lane.b32.xlu0 %v1363, 64
      %v3353 = vpop.permute.xlu0 %3352
      %3354 = vrot.lane.b32.xlu0 %v1365, 64
      %v3355 = vpop.permute.xlu0 %3354
      %3388 = vrot.lane.b32.xlu0 %v1449, 96
      %v3389 = vpop.permute.xlu0 %3388
      %3390 = vrot.lane.b32.xlu0 %v1451, 96
      %v3391 = vpop.permute.xlu0 %3390
      %3392 = vrot.lane.b32.xlu0 %v1454, 96
      %v3393 = vpop.permute.xlu0 %3392
      %3394 = vrot.lane.b32.xlu0 %v1456, 96
      %v3395 = vpop.permute.xlu0 %3394
      %3396 = vrot.lane.b32.xlu0 %v1459, 96
      %v3397 = vpop.permute.xlu0 %3396
      %3398 = vrot.lane.b32.xlu0 %v1461, 96
      %v3399 = vpop.permute.xlu0 %3398
      %3400 = vrot.lane.b32.xlu0 %v1464, 96
      %v3401 = vpop.permute.xlu0 %3400
      %3402 = vrot.lane.b32.xlu0 %v1466, 96
      %v3403 = vpop.permute.xlu0 %3402
      %3404 = vrot.lane.b32.xlu0 %v1469, 96
      %v3405 = vpop.permute.xlu0 %3404
      %3406 = vrot.lane.b32.xlu0 %v1471, 96
      %v3407 = vpop.permute.xlu0 %3406
      %3408 = vrot.lane.b32.xlu0 %v1474, 96
      %v3409 = vpop.permute.xlu0 %3408
      %3410 = vrot.lane.b32.xlu0 %v1476, 96
      %v3411 = vpop.permute.xlu0 %3410
      %3412 = vrot.lane.b32.xlu0 %v1479, 96
      %v3413 = vpop.permute.xlu0 %3412
      %3414 = vrot.lane.b32.xlu0 %v1481, 96
      %v3415 = vpop.permute.xlu0 %3414
      %3416 = vrot.lane.b32.xlu0 %v1484, 96
      %v3417 = vpop.permute.xlu0 %3416
      %3418 = vrot.lane.b32.xlu0 %v1486, 96
      %v3419 = vpop.permute.xlu0 %3418
      %3420 = vrot.lane.b32.xlu0 %v1489, 96
      %v3421 = vpop.permute.xlu0 %3420
      %3422 = vrot.lane.b32.xlu0 %v1491, 96
      %v3423 = vpop.permute.xlu0 %3422
      %3424 = vrot.lane.b32.xlu0 %v1494, 96
      %v3425 = vpop.permute.xlu0 %3424
      %3426 = vrot.lane.b32.xlu0 %v1496, 96
      %v3427 = vpop.permute.xlu0 %3426
      %3428 = vrot.lane.b32.xlu0 %v1499, 96
      %v3429 = vpop.permute.xlu0 %3428
      %3430 = vrot.lane.b32.xlu0 %v1501, 96
      %v3431 = vpop.permute.xlu0 %3430
      %3432 = vrot.lane.b32.xlu0 %v1504, 96
      %v3433 = vpop.permute.xlu0 %3432
      %3434 = vrot.lane.b32.xlu0 %v1506, 96
      %v3435 = vpop.permute.xlu0 %3434
      %3436 = vrot.lane.b32.xlu0 %v1509, 96
      %v3437 = vpop.permute.xlu0 %3436
      %3438 = vrot.lane.b32.xlu0 %v1511, 96
      %v3439 = vpop.permute.xlu0 %3438
      %3440 = vrot.lane.b32.xlu0 %v1593, 96
      %v3441 = vpop.permute.xlu0 %3440
      %3442 = vrot.lane.b32.xlu0 %v1595, 96
      %v3443 = vpop.permute.xlu0 %3442
      %3444 = vrot.lane.b32.xlu0 %v1647, 96
      %v3445 = vpop.permute.xlu0 %3444
      %3446 = vrot.lane.b32.xlu0 %v1649, 96
      %v3447 = vpop.permute.xlu0 %3446
      %3448 = vrot.lane.b32.xlu0 %v1439, 96
      %v3449 = vpop.permute.xlu0 %3448
      %3450 = vrot.lane.b32.xlu0 %v1441, 96
      %v3451 = vpop.permute.xlu0 %3450
      %3484 = vrot.lane.b32.xlu0 %v1546, 32
      %v3485 = vpop.permute.xlu0 %3484
      %3486 = vrot.lane.b32.xlu0 %v1548, 32
      %v3487 = vpop.permute.xlu0 %3486
      %3488 = vrot.lane.b32.xlu0 %v1600, 32
      %v3489 = vpop.permute.xlu0 %3488
      %3490 = vrot.lane.b32.xlu0 %v1602, 32
      %v3491 = vpop.permute.xlu0 %3490
      %3496 = vrot.lane.b32.xlu0 %v1551, 64
      %v3497 = vpop.permute.xlu0 %3496
      %3498 = vrot.lane.b32.xlu0 %v1553, 64
      %v3499 = vpop.permute.xlu0 %3498
      %3500 = vrot.lane.b32.xlu0 %v1605, 64
      %v3501 = vpop.permute.xlu0 %3500
      %3502 = vrot.lane.b32.xlu0 %v1607, 64
      %v3503 = vpop.permute.xlu0 %3502
      %3508 = vrot.lane.b32.xlu0 %v1556, 96
      %v3509 = vpop.permute.xlu0 %3508
      %3510 = vrot.lane.b32.xlu0 %v1558, 96
      %v3511 = vpop.permute.xlu0 %3510
      %3512 = vrot.lane.b32.xlu0 %v1642, 96
      %v3513 = vpop.permute.xlu0 %3512
      %3514 = vrot.lane.b32.xlu0 %v1644, 96
      %v3515 = vpop.permute.xlu0 %3514
      %v3520 = vsel %vm2816, %v1222, %v3197
      %v3521 = vsel %vm2816, %v1224, %v3199
      %v3522 = vsel %vm2816, %v1227, %v3201
      %v3523 = vsel %vm2816, %v1229, %v3203
      %v3524 = vsel %vm2816, %v1232, %v3205
      %v3525 = vsel %vm2816, %v1234, %v3207
      %v3526 = vsel %vm2816, %v1237, %v3209
      %v3527 = vsel %vm2816, %v1239, %v3211
      %v3528 = vsel %vm2816, %v1242, %v3213
      %v3529 = vsel %vm2816, %v1244, %v3215
      %v3530 = vsel %vm2816, %v1247, %v3217
      %v3531 = vsel %vm2816, %v1249, %v3219
      %v3532 = vsel %vm2816, %v1252, %v3221
      %v3533 = vsel %vm2816, %v1254, %v3223
      %v3534 = vsel %vm2816, %v1257, %v3225
      %v3535 = vsel %vm2816, %v1259, %v3227
      %v3536 = vsel %vm2816, %v1262, %v3229
      %v3537 = vsel %vm2816, %v1264, %v3231
      %v3538 = vsel %vm2816, %v1267, %v3233
      %v3539 = vsel %vm2816, %v1269, %v3235
      %v3540 = vsel %vm2816, %v1272, %v3237
      %v3541 = vsel %vm2816, %v1274, %v3239
      %v3542 = vsel %vm2816, %v1277, %v3241
      %v3543 = vsel %vm2816, %v1279, %v3243
      %v3544 = vsel %vm2816, %v1282, %v3245
      %v3545 = vsel %vm2816, %v1284, %v3247
      %v3546 = vsel %vm2816, %v1546, %v3249
      %v3547 = vsel %vm2816, %v1548, %v3251
      %v3548 = vsel %vm2816, %v1600, %v3253
      %v3549 = vsel %vm2816, %v1602, %v3255
      %v3550 = vsel %vm2816, %v1212, %v3257
      %v3551 = vsel %vm2816, %v1214, %v3259
      %v3552 = vsel %vm683, %v3520, %v3293
      %v3553 = vsel %vm683, %v3521, %v3295
      %v3554 = vsel %vm683, %v3522, %v3297
      %v3555 = vsel %vm683, %v3523, %v3299
      %v3556 = vsel %vm683, %v3524, %v3301
      %v3557 = vsel %vm683, %v3525, %v3303
      %v3558 = vsel %vm683, %v3526, %v3305
      %v3559 = vsel %vm683, %v3527, %v3307
      %v3560 = vsel %vm683, %v3528, %v3309
      %v3561 = vsel %vm683, %v3529, %v3311
      %v3562 = vsel %vm683, %v3530, %v3313
      %v3563 = vsel %vm683, %v3531, %v3315
      %v3564 = vsel %vm683, %v3532, %v3317
      %v3565 = vsel %vm683, %v3533, %v3319
      %v3566 = vsel %vm683, %v3534, %v3321
      %v3567 = vsel %vm683, %v3535, %v3323
      %v3568 = vsel %vm683, %v3536, %v3325
      %v3569 = vsel %vm683, %v3537, %v3327
      %v3570 = vsel %vm683, %v3538, %v3329
      %v3571 = vsel %vm683, %v3539, %v3331
      %v3572 = vsel %vm683, %v3540, %v3333
      %v3573 = vsel %vm683, %v3541, %v3335
      %v3574 = vsel %vm683, %v3542, %v3337
      %v3575 = vsel %vm683, %v3543, %v3339
      %v3576 = vsel %vm683, %v3544, %v3341
      %v3577 = vsel %vm683, %v3545, %v3343
      %v3578 = vsel %vm683, %v3546, %v3345
      %v3579 = vsel %vm683, %v3547, %v3347
      %v3580 = vsel %vm683, %v3548, %v3349
      %v3581 = vsel %vm683, %v3549, %v3351
      %v3582 = vsel %vm683, %v3550, %v3353
      %v3583 = vsel %vm683, %v3551, %v3355
      %v3584 = vsel %vm2877, %v3552, %v3389
      %v3585 = vsel %vm2877, %v3553, %v3391
      %v3586 = vsel %vm2877, %v3554, %v3393
      %v3587 = vsel %vm2877, %v3555, %v3395
      %v3588 = vsel %vm2877, %v3556, %v3397
      %v3589 = vsel %vm2877, %v3557, %v3399
      %v3590 = vsel %vm2877, %v3558, %v3401
      %v3591 = vsel %vm2877, %v3559, %v3403
      %v3592 = vsel %vm2877, %v3560, %v3405
      %v3593 = vsel %vm2877, %v3561, %v3407
      %v3594 = vsel %vm2877, %v3562, %v3409
      %v3595 = vsel %vm2877, %v3563, %v3411
      %v3596 = vsel %vm2877, %v3564, %v3413
      %v3597 = vsel %vm2877, %v3565, %v3415
      %v3598 = vsel %vm2877, %v3566, %v3417
      %v3599 = vsel %vm2877, %v3567, %v3419
      %v3600 = vsel %vm2877, %v3568, %v3421
      %v3601 = vsel %vm2877, %v3569, %v3423
      %v3602 = vsel %vm2877, %v3570, %v3425
      %v3603 = vsel %vm2877, %v3571, %v3427
      %v3604 = vsel %vm2877, %v3572, %v3429
      %v3605 = vsel %vm2877, %v3573, %v3431
      %v3606 = vsel %vm2877, %v3574, %v3433
      %v3607 = vsel %vm2877, %v3575, %v3435
      %v3608 = vsel %vm2877, %v3576, %v3437
      %v3609 = vsel %vm2877, %v3577, %v3439
      %v3610 = vsel %vm2877, %v3578, %v3441
      %v3611 = vsel %vm2877, %v3579, %v3443
      %v3612 = vsel %vm2877, %v3580, %v3445
      %v3613 = vsel %vm2877, %v3581, %v3447
      %v3614 = vsel %vm2877, %v3582, %v3449
      %v3615 = vsel %vm2877, %v3583, %v3451
      %v3616 = vsel %vm2816, %v1161, %v3485
      %v3617 = vsel %vm2816, %v1095, %v3487
      %v3618 = vsel %vm2816, %v1162, %v3489
      %v3619 = vsel %vm2816, %v1098, %v3491
      %v3620 = vsel %vm683, %v3616, %v3497
      %v3621 = vsel %vm683, %v3617, %v3499
      %v3622 = vsel %vm683, %v3618, %v3501
      %v3623 = vsel %vm683, %v3619, %v3503
      %v3624 = vsel %vm2877, %v3620, %v3509
      %v3625 = vsel %vm2877, %v3621, %v3511
      %v3626 = vsel %vm2877, %v3622, %v3513
      %v3627 = vsel %vm2877, %v3623, %v3515
      %v3628 = vld [vmem:[%s5] sm:$0xff]
      %v3629 = vld [vmem:[%s5 + $0x8] sm:$0xff]
      %v3630 = vld [vmem:[%s5 + $0x10] sm:$0xff]
      %v3631 = vld [vmem:[%s5 + $0x18] sm:$0xff]
      %v3632 = vld [vmem:[%s5 + $0x20] sm:$0xff]
      %v3633 = vld [vmem:[%s5 + $0x28] sm:$0xff]
      %v3634 = vld [vmem:[%s5 + $0x30] sm:$0xff]
      %v3635 = vld [vmem:[%s5 + $0x38] sm:$0xff]
      %v3636 = vld [vmem:[%s5 + $0x40] sm:$0xff]
      %v3637 = vld [vmem:[%s5 + $0x48] sm:$0xff]
      %v3638 = vld [vmem:[%s5 + $0x50] sm:$0xff]
      %v3639 = vld [vmem:[%s5 + $0x58] sm:$0xff]
      %v3640 = vld [vmem:[%s5 + $0x60] sm:$0xff]
      %v3641 = vld [vmem:[%s5 + $0x68] sm:$0xff]
      %v3642 = vld [vmem:[%s5 + $0x70] sm:$0xff]
      %v3643 = vld [vmem:[%s5 + $0x78] sm:$0xff]
      %v3644 = vld [vmem:[%s5 + $0x80] sm:$0xff]
      %v3645 = vld [vmem:[%s5 + $0x88] sm:$0xff]
      %v3646 = vld [vmem:[%s5 + $0x90] sm:$0xff]
      %v3647 = vld [vmem:[%s5 + $0x98] sm:$0xff]
      %v3648 = vld [vmem:[%s5 + $0xa0] sm:$0xff]
      %v3649 = vld [vmem:[%s5 + $0xa8] sm:$0xff]
      %v3650 = vld [vmem:[%s5 + $0xb0] sm:$0xff]
      %v3651 = vld [vmem:[%s5 + $0xb8] sm:$0xff]
      %v3652 = vld [vmem:[%s5 + $0xc0] sm:$0xff]
      %v3653 = vld [vmem:[%s5 + $0xc8] sm:$0xff]
      %v3654 = vld [vmem:[%s5 + $0xd0] sm:$0xff]
      %v3655 = vld [vmem:[%s5 + $0xd8] sm:$0xff]
      %v3656 = vld [vmem:[%s5 + $0xe0] sm:$0xff]
      %v3657 = vld [vmem:[%s5 + $0xe8] sm:$0xff]
      %v3658 = vld [vmem:[%s5 + $0xf0] sm:$0xff]
      %v3659 = vld [vmem:[%s5 + $0xf8] sm:$0xff]
      %v3660 = vld [vmem:[%s5 + $0x100] sm:$0xff]
      %v3661 = vld [vmem:[%s5 + $0x108] sm:$0xff]
      %v3662 = vld [vmem:[%s5 + $0x110] sm:$0xff]
      %v3663 = vld [vmem:[%s5 + $0x118] sm:$0xff]
      %v3664 = vld [vmem:[%s5 + $0x120] sm:$0xff]
      %v3665 = vld [vmem:[%s5 + $0x128] sm:$0xff]
      %v3666 = vld [vmem:[%s5 + $0x130] sm:$0xff]
      %v3667 = vld [vmem:[%s5 + $0x138] sm:$0xff]
      %v3668 = vld [vmem:[%s5 + $0x140] sm:$0xff]
      %v3669 = vld [vmem:[%s5 + $0x148] sm:$0xff]
      %v3670 = vld [vmem:[%s5 + $0x150] sm:$0xff]
      %v3671 = vld [vmem:[%s5 + $0x158] sm:$0xff]
      %v3672 = vld [vmem:[%s5 + $0x160] sm:$0xff]
      %v3673 = vld [vmem:[%s5 + $0x168] sm:$0xff]
      %v3674 = vld [vmem:[%s5 + $0x170] sm:$0xff]
      %v3675 = vld [vmem:[%s5 + $0x178] sm:$0xff]
      %v3676 = vld [vmem:[%s5 + $0x180] sm:$0xff]
      %v3677 = vld [vmem:[%s5 + $0x188] sm:$0xff]
      %v3678 = vld [vmem:[%s5 + $0x190] sm:$0xff]
      %v3679 = vld [vmem:[%s5 + $0x198] sm:$0xff]
      %v3680 = vld [vmem:[%s5 + $0x1a0] sm:$0xff]
      %v3681 = vld [vmem:[%s5 + $0x1a8] sm:$0xff]
      %v3682 = vld [vmem:[%s5 + $0x1b0] sm:$0xff]
      %v3683 = vld [vmem:[%s5 + $0x1b8] sm:$0xff]
      %v3684 = vld [vmem:[%s5 + $0x1c0] sm:$0xff]
      %v3685 = vld [vmem:[%s5 + $0x1c8] sm:$0xff]
      %v3686 = vld [vmem:[%s5 + $0x1d0] sm:$0xff]
      %v3687 = vld [vmem:[%s5 + $0x1d8] sm:$0xff]
      %v3688 = vld [vmem:[%s5 + $0x1e0] sm:$0xff]
      %v3689 = vld [vmem:[%s5 + $0x1e8] sm:$0xff]
      %v3690 = vld [vmem:[%s5 + $0x1f0] sm:$0xff]
      %v3691 = vld [vmem:[%s5 + $0x1f8] sm:$0xff]
      %v3692 = vld [vmem:[%s5 + $0x200] sm:$0xff]
      %v3693 = vld [vmem:[%s5 + $0x208] sm:$0xff]
      %v3694 = vld [vmem:[%s5 + $0x210] sm:$0xff]
      %v3695 = vld [vmem:[%s5 + $0x218] sm:$0xff]
      %v3696 = vld [vmem:[%s5 + $0x220] sm:$0xff]
      %v3697 = vld [vmem:[%s5 + $0x228] sm:$0xff]
      %v3698 = vld [vmem:[%s5 + $0x230] sm:$0xff]
      %v3699 = vld [vmem:[%s5 + $0x238] sm:$0xff]
      %v3700 = vld [vmem:[%s5 + $0x240] sm:$0xff]
      %v3701 = vld [vmem:[%s5 + $0x248] sm:$0xff]
      %v3702 = vld [vmem:[%s5 + $0x250] sm:$0xff]
      %v3703 = vld [vmem:[%s5 + $0x258] sm:$0xff]
      %v3704 = vld [vmem:[%s5 + $0x260] sm:$0xff]
      %v3705 = vld [vmem:[%s5 + $0x268] sm:$0xff]
      %v3706 = vld [vmem:[%s5 + $0x270] sm:$0xff]
      %v3707 = vld [vmem:[%s5 + $0x278] sm:$0xff]
      %v3708 = vld [vmem:[%s5 + $0x280] sm:$0xff]
      %v3709 = vld [vmem:[%s5 + $0x288] sm:$0xff]
      %v3710 = vld [vmem:[%s5 + $0x290] sm:$0xff]
      %v3711 = vld [vmem:[%s5 + $0x298] sm:$0xff]
      %v3712 = vld [vmem:[%s5 + $0x2a0] sm:$0xff]
      %v3713 = vld [vmem:[%s5 + $0x2a8] sm:$0xff]
      %v3714 = vld [vmem:[%s5 + $0x2b0] sm:$0xff]
      %v3715 = vld [vmem:[%s5 + $0x2b8] sm:$0xff]
      %v3716 = vld [vmem:[%s5 + $0x2c0] sm:$0xff]
      %v3717 = vld [vmem:[%s5 + $0x2c8] sm:$0xff]
      %v3718 = vld [vmem:[%s5 + $0x2d0] sm:$0xff]
      %v3719 = vld [vmem:[%s5 + $0x2d8] sm:$0xff]
      %v3720 = vld [vmem:[%s5 + $0x2e0] sm:$0xff]
      %v3721 = vld [vmem:[%s5 + $0x2e8] sm:$0xff]
      %v3722 = vld [vmem:[%s5 + $0x2f0] sm:$0xff]
      %v3723 = vld [vmem:[%s5 + $0x2f8] sm:$0xff]
      %v3724 = vld [vmem:[%s5 + $0x300] sm:$0xff]
      %v3725 = vld [vmem:[%s5 + $0x308] sm:$0xff]
      %v3726 = vld [vmem:[%s5 + $0x310] sm:$0xff]
      %v3727 = vld [vmem:[%s5 + $0x318] sm:$0xff]
      %v3728 = vld [vmem:[%s6] sm:$0x1]
      %v3730 = vlaneseq
      %v3731 = vshrl.u32 %v3730, 7
      %v3732 = vsub.s32 0, %v3731
      %v3733 = vrot.slane %v3728, %v3732
      %v3735 = vsel %vm2816, %v1454, 0
      %v3737 = vsel %vm2816, %v1456, 0
      %v3739 = vsel %vm2816, %v1459, 0
      %v3741 = vsel %vm2816, %v1461, 0
      %v3743 = vsel %vm2816, %v1464, 0
      %v3745 = vsel %vm2816, %v1466, 0
      %v3747 = vsel %vm2816, %v1469, 0
      %v3749 = vsel %vm2816, %v1471, 0
      %v3751 = vsel %vm2816, %v1474, 0
      %v3753 = vsel %vm2816, %v1476, 0
      %v3755 = vsel %vm2816, %v1479, 0
      %v3757 = vsel %vm2816, %v1481, 0
      %v3759 = vsel %vm2816, %v1484, 0
      %v3761 = vsel %vm2816, %v1486, 0
      %v3763 = vsel %vm2816, %v1489, 0
      %v3765 = vsel %vm2816, %v1491, 0
      %v3767 = vsel %vm2816, %v1494, 0
      %v3769 = vsel %vm2816, %v1496, 0
      %v3771 = vsel %vm2816, %v1499, 0
      %v3773 = vsel %vm2816, %v1501, 0
      %v3775 = vsel %vm2816, %v1504, 0
      %v3777 = vsel %vm2816, %v1506, 0
      %v3779 = vsel %vm2816, %v1509, 0
      %v3781 = vsel %vm2816, %v1511, 0
      %v3783 = vsel %vm2816, %v1593, 0
      %v3785 = vsel %vm2816, %v1595, 0
      %v3787 = vsel %vm2816, %v1647, 0
      %v3789 = vsel %vm2816, %v1649, 0
      %v3791 = vsel %vm2816, %v1439, 0
      %v3793 = vsel %vm2816, %v1441, 0
      %3795 = vmatprep.subr.mxu0 0.0
      %3796 = vmatpush1.msra.mxu0 %v3628
      %3797 = vmatprep.subr.mxu0 0.0
      %3798 = vmatpush1.msra.mxu0 %v3629
      %3799 = vmatprep.subr.mxu0 0.0
      %3800 = vmatpush1.msra.mxu0 %v3630
      %3801 = vmatprep.subr.mxu0 0.0
      %3802 = vmatpush1.msra.mxu0 %v3631
      %3803 = vmatprep.subr.mxu0 0.0
      %3804 = vmatpush1.msra.mxu0 %v3632
      %3805 = vmatprep.subr.mxu0 0.0
      %3806 = vmatpush1.msra.mxu0 %v3633
      %3807 = vmatprep.subr.mxu0 0.0
      %3808 = vmatpush1.msra.mxu0 %v3634
      %3809 = vmatprep.subr.mxu0 0.0
      %3810 = vmatpush1.msra.mxu0 %v3635
      %3811 = vmatprep.subr.mxu0 0.0
      %3812 = vmatpush1.msra.mxu0 %v3636
      %3813 = vmatprep.subr.mxu0 0.0
      %3814 = vmatpush1.msra.mxu0 %v3637
      %3815 = vmatprep.subr.mxu0 0.0
      %3816 = vmatpush1.msra.mxu0 %v3638
      %3817 = vmatprep.subr.mxu0 0.0
      %3818 = vmatpush1.msra.mxu0 %v3639
      %3819 = vmatprep.subr.mxu0 0.0
      %3820 = vmatpush1.msra.mxu0 %v3640
      %3821 = vmatprep.subr.mxu0 0.0
      %3822 = vmatpush1.msra.mxu0 %v3641
      %3823 = vmatprep.subr.mxu0 0.0
      %3824 = vmatpush1.msra.mxu0 %v3642
      %3825 = vmatprep.subr.mxu0 0.0
      %3826 = vmatpush1.msra.mxu0 %v3643
      %3827 = vmatprep.subr.mxu0 0.0
      %3828 = vmatpush1.msra.mxu0 %v3644
      %3829 = vmatprep.subr.mxu0 0.0
      %3830 = vmatpush1.msra.mxu0 %v3645
      %3831 = vmatprep.subr.mxu0 0.0
      %3832 = vmatpush1.msra.mxu0 %v3646
      %3833 = vmatprep.subr.mxu0 0.0
      %3834 = vmatpush1.msra.mxu0 %v3647
      %3835 = vmatprep.subr.mxu0 0.0
      %3836 = vmatpush1.msra.mxu0 %v3648
      %3837 = vmatprep.subr.mxu0 0.0
      %3838 = vmatpush1.msra.mxu0 %v3649
      %3839 = vmatprep.subr.mxu0 0.0
      %3840 = vmatpush1.msra.mxu0 %v3650
      %3841 = vmatprep.subr.mxu0 0.0
      %3842 = vmatpush1.msra.mxu0 %v3651
      %3843 = vmatprep.subr.mxu0 0.0
      %3844 = vmatpush1.msra.mxu0 %v3652
      %3845 = vmatprep.subr.mxu0 0.0
      %3846 = vmatpush1.msra.mxu0 %v3653
      %3847 = vmatprep.subr.mxu0 0.0
      %3848 = vmatpush1.msra.mxu0 %v3654
      %3849 = vmatprep.subr.mxu0 0.0
      %3850 = vmatpush1.msra.mxu0 %v3655
      %3851 = vmatprep.subr.mxu0 0.0
      %3852 = vmatpush1.msra.mxu0 %v3656
      %3853 = vmatprep.subr.mxu0 0.0
      %3854 = vmatpush1.msra.mxu0 %v3657
      %3855 = vmatprep.subr.mxu0 0.0
      %3856 = vmatpush1.msra.mxu0 %v3658
      %3857 = vmatprep.subr.mxu0 0.0
      %3858 = vmatpush1.msra.mxu0 %v3659
      %3859 = vmatprep.mubr.f32.mxu0 %v2972
      %3860 = vmatmul.mubr.f32.gmra.mrb[0].mxu0 %v2878
      %v3861 = vpop.f32.mrb[0].mxu0
      %v3862 = vadd.f32 %v3733, %v3861
      %v3863 = vpop.f32.mrb[0].mxu0
      %3864 = vmatprep.mubr.f32.mxu0 %v2973
      %3865 = vmatmul.mubr.f32.gmra.mrb[0].mxu0 %v2879
      %v3866 = vpop.f32.mrb[0].mxu0
      %v3867 = vadd.f32 %v3733, %v3866
      %v3868 = vpop.f32.mrb[0].mxu0
      %3869 = vmatprep.mubr.f32.mxu0 %v2974
      %3870 = vmatmul.mubr.f32.gmra.mrb[0].mxu0 %v2878
      %v3871 = vpop.f32.mrb[0].mxu0
      %v3872 = vadd.f32 %v3733, %v3871
      %v3873 = vpop.f32.mrb[0].mxu0
      %3874 = vmatprep.mubr.f32.mxu0 %v2975
      %3875 = vmatmul.mubr.f32.gmra.mrb[0].mxu0 %v2879
      %v3876 = vpop.f32.mrb[0].mxu0
      %v3877 = vadd.f32 %v3733, %v3876
      %v3878 = vpop.f32.mrb[0].mxu0
      %3879 = vmatprep.mubr.f32.mxu0 %v2976
      %3880 = vmatmul.mubr.f32.gmra.mrb[0].mxu0 %v2880
      %v3881 = vpop.f32.mrb[0].mxu0
      %v3882 = vadd.f32 %v3733, %v3881
      %v3883 = vpop.f32.mrb[0].mxu0
      %3884 = vmatprep.mubr.f32.mxu0 %v2977
      %3885 = vmatmul.mubr.f32.gmra.mrb[0].mxu0 %v2881
      %v3886 = vpop.f32.mrb[0].mxu0
      %v3887 = vadd.f32 %v3733, %v3886
      %v3888 = vpop.f32.mrb[0].mxu0
      %3889 = vmatprep.mubr.f32.mxu0 %v2978
      %3890 = vmatmul.mubr.f32.gmra.mrb[0].mxu0 %v2882
      %v3891 = vpop.f32.mrb[0].mxu0
      %v3892 = vadd.f32 %v3733, %v3891
      %v3893 = vpop.f32.mrb[0].mxu0
      %3894 = vmatprep.mubr.f32.mxu0 %v2979
      %3895 = vmatmul.mubr.f32.gmra.mrb[0].mxu0 %v2883
      %v3896 = vpop.f32.mrb[0].mxu0
      %v3897 = vadd.f32 %v3733, %v3896
      %v3898 = vpop.f32.mrb[0].mxu0
      %3899 = vmatprep.mubr.f32.mxu0 %v2980
      %3900 = vmatmul.mubr.f32.gmra.mrb[0].mxu0 %v2884
      %v3901 = vpop.f32.mrb[0].mxu0
      %v3902 = vadd.f32 %v3733, %v3901
      %v3903 = vpop.f32.mrb[0].mxu0
      %3904 = vmatprep.mubr.f32.mxu0 %v2981
      %3905 = vmatmul.mubr.f32.gmra.mrb[0].mxu0 %v2885
      %v3906 = vpop.f32.mrb[0].mxu0
      %v3907 = vadd.f32 %v3733, %v3906
      %v3908 = vpop.f32.mrb[0].mxu0
      %3909 = vmatprep.mubr.f32.mxu0 %v2982
      %3910 = vmatmul.mubr.f32.gmra.mrb[0].mxu0 %v2886
      %v3911 = vpop.f32.mrb[0].mxu0
      %v3912 = vadd.f32 %v3733, %v3911
      %v3913 = vpop.f32.mrb[0].mxu0
      %3914 = vmatprep.mubr.f32.mxu0 %v2983
      %3915 = vmatmul.mubr.f32.gmra.mrb[0].mxu0 %v2887
      %v3916 = vpop.f32.mrb[0].mxu0
      %v3917 = vadd.f32 %v3733, %v3916
      %v3918 = vpop.f32.mrb[0].mxu0
      %3919 = vmatprep.mubr.f32.mxu0 %v2984
      %3920 = vmatmul.mubr.f32.gmra.mrb[0].mxu0 %v2888
      %v3921 = vpop.f32.mrb[0].mxu0
      %v3922 = vadd.f32 %v3733, %v3921
      %v3923 = vpop.f32.mrb[0].mxu0
      %3924 = vmatprep.mubr.f32.mxu0 %v2985
      %3925 = vmatmul.mubr.f32.gmra.mrb[0].mxu0 %v2889
      %v3926 = vpop.f32.mrb[0].mxu0
      %v3927 = vadd.f32 %v3733, %v3926
      %v3928 = vpop.f32.mrb[0].mxu0
      %3929 = vmatprep.mubr.f32.mxu0 %v2986
      %3930 = vmatmul.mubr.f32.gmra.mrb[0].mxu0 %v2890
      %v3931 = vpop.f32.mrb[0].mxu0
      %v3932 = vadd.f32 %v3733, %v3931
      %v3933 = vpop.f32.mrb[0].mxu0
      %3934 = vmatprep.mubr.f32.mxu0 %v2987
      %3935 = vmatmul.mubr.f32.gmra.mrb[0].mxu0 %v2891
      %v3936 = vpop.f32.mrb[0].mxu0
      %v3937 = vadd.f32 %v3733, %v3936
      %v3938 = vpop.f32.mrb[0].mxu0
      %3939 = vmatprep.mubr.f32.mxu0 %v2988
      %3940 = vmatmul.mubr.f32.gmra.mrb[0].mxu0 %v2892
      %v3941 = vpop.f32.mrb[0].mxu0
      %v3942 = vadd.f32 %v3733, %v3941
      %v3943 = vpop.f32.mrb[0].mxu0
      %3944 = vmatprep.mubr.f32.mxu0 %v2989
      %3945 = vmatmul.mubr.f32.gmra.mrb[0].mxu0 %v2893
      %v3946 = vpop.f32.mrb[0].mxu0
      %v3947 = vadd.f32 %v3733, %v3946
      %v3948 = vpop.f32.mrb[0].mxu0
      %3949 = vmatprep.mubr.f32.mxu0 %v2990
      %3950 = vmatmul.mubr.f32.gmra.mrb[0].mxu0 %v2894
      %v3951 = vpop.f32.mrb[0].mxu0
      %v3952 = vadd.f32 %v3733, %v3951
      %v3953 = vpop.f32.mrb[0].mxu0
      %3954 = vmatprep.mubr.f32.mxu0 %v2991
      %3955 = vmatmul.mubr.f32.gmra.mrb[0].mxu0 %v2895
      %v3956 = vpop.f32.mrb[0].mxu0
      %v3957 = vadd.f32 %v3733, %v3956
      %v3958 = vpop.f32.mrb[0].mxu0
      %3959 = vmatprep.mubr.f32.mxu0 %v2992
      %3960 = vmatmul.mubr.f32.gmra.mrb[0].mxu0 %v2896
      %v3961 = vpop.f32.mrb[0].mxu0
      %v3962 = vadd.f32 %v3733, %v3961
      %v3963 = vpop.f32.mrb[0].mxu0
      %3964 = vmatprep.mubr.f32.mxu0 %v2993
      %3965 = vmatmul.mubr.f32.gmra.mrb[0].mxu0 %v2897
      %v3966 = vpop.f32.mrb[0].mxu0
      %v3967 = vadd.f32 %v3733, %v3966
      %v3968 = vpop.f32.mrb[0].mxu0
      %3969 = vmatprep.mubr.f32.mxu0 %v2994
      %3970 = vmatmul.mubr.f32.gmra.mrb[0].mxu0 %v2898
      %v3971 = vpop.f32.mrb[0].mxu0
      %v3972 = vadd.f32 %v3733, %v3971
      %v3973 = vpop.f32.mrb[0].mxu0
      %3974 = vmatprep.mubr.f32.mxu0 %v2995
      %3975 = vmatmul.mubr.f32.gmra.mrb[0].mxu0 %v2899
      %v3976 = vpop.f32.mrb[0].mxu0
      %v3977 = vadd.f32 %v3733, %v3976
      %v3978 = vpop.f32.mrb[0].mxu0
      %3979 = vmatprep.mubr.f32.mxu0 %v2996
      %3980 = vmatmul.mubr.f32.gmra.mrb[0].mxu0 %v2900
      %v3981 = vpop.f32.mrb[0].mxu0
      %v3982 = vadd.f32 %v3733, %v3981
      %v3983 = vpop.f32.mrb[0].mxu0
      %3984 = vmatprep.mubr.f32.mxu0 %v2997
      %3985 = vmatmul.mubr.f32.gmra.mrb[0].mxu0 %v2901
      %v3986 = vpop.f32.mrb[0].mxu0
      %v3987 = vadd.f32 %v3733, %v3986
      %v3988 = vpop.f32.mrb[0].mxu0
      %3989 = vmatprep.mubr.f32.mxu0 %v2998
      %3990 = vmatmul.mubr.f32.gmra.mrb[0].mxu0 %v2902
      %v3991 = vpop.f32.mrb[0].mxu0
      %v3992 = vadd.f32 %v3733, %v3991
      %v3993 = vpop.f32.mrb[0].mxu0
      %3994 = vmatprep.mubr.f32.mxu0 %v2999
      %3995 = vmatmul.mubr.f32.gmra.mrb[0].mxu0 %v2903
      %v3996 = vpop.f32.mrb[0].mxu0
      %v3997 = vadd.f32 %v3733, %v3996
      %v3998 = vpop.f32.mrb[0].mxu0
      %3999 = vmatprep.mubr.f32.mxu0 %v3000
      %4000 = vmatmul.mubr.f32.gmra.mrb[0].mxu0 %v2904
      %v4001 = vpop.f32.mrb[0].mxu0
      %v4002 = vadd.f32 %v3733, %v4001
      %v4003 = vpop.f32.mrb[0].mxu0
      %4004 = vmatprep.mubr.f32.mxu0 %v3001
      %4005 = vmatmul.mubr.f32.gmra.mrb[0].mxu0 %v2905
      %v4006 = vpop.f32.mrb[0].mxu0
      %v4007 = vadd.f32 %v3733, %v4006
      %v4008 = vpop.f32.mrb[0].mxu0
      %4009 = vmatprep.mubr.f32.mxu0 %v3002
      %4010 = vmatmul.mubr.f32.gmra.mrb[0].mxu0 %v2906
      %v4011 = vpop.f32.mrb[0].mxu0
      %v4012 = vadd.f32 %v3733, %v4011
      %v4013 = vpop.f32.mrb[0].mxu0
      %4014 = vmatprep.mubr.f32.mxu0 %v3003
      %4015 = vmatmul.mubr.f32.gmra.mrb[0].mxu0 %v2907
      %v4016 = vpop.f32.mrb[0].mxu0
      %v4017 = vadd.f32 %v3733, %v4016
      %v4018 = vpop.f32.mrb[0].mxu0
      %4019 = vdwg.mxu0
      %4020 = vmatprep.subr.mxu0 0.0
      %4021 = vmatpush1.msra.mxu0 %v3660
      %4022 = vmatprep.subr.mxu0 0.0
      %4023 = vmatpush1.msra.mxu0 %v3661
      %4024 = vmatprep.subr.mxu0 0.0
      %4025 = vmatpush1.msra.mxu0 %v3662
      %4026 = vmatprep.subr.mxu0 0.0
      %4027 = vmatpush1.msra.mxu0 %v3663
      %4028 = vmatprep.subr.mxu0 0.0
      %4029 = vmatpush1.msra.mxu0 %v3664
      %4030 = vmatprep.subr.mxu0 0.0
      %4031 = vmatpush1.msra.mxu0 %v3665
      %4032 = vmatprep.subr.mxu0 0.0
      %4033 = vmatpush1.msra.mxu0 %v3666
      %4034 = vmatprep.subr.mxu0 0.0
      %4035 = vmatpush1.msra.mxu0 %v3667
      %4036 = vmatprep.subr.mxu0 0.0
      %4037 = vmatpush1.msra.mxu0 %v3668
      %4038 = vmatprep.subr.mxu0 0.0
      %4039 = vmatpush1.msra.mxu0 %v3669
      %4040 = vmatprep.subr.mxu0 0.0
      %4041 = vmatpush1.msra.mxu0 %v3670
      %4042 = vmatprep.subr.mxu0 0.0
      %4043 = vmatpush1.msra.mxu0 %v3671
      %4044 = vmatprep.subr.mxu0 0.0
      %4045 = vmatpush1.msra.mxu0 %v3672
      %4046 = vmatprep.subr.mxu0 0.0
      %4047 = vmatpush1.msra.mxu0 %v3673
      %4048 = vmatprep.subr.mxu0 0.0
      %4049 = vmatpush1.msra.mxu0 %v3674
      %4050 = vmatprep.subr.mxu0 0.0
      %4051 = vmatpush1.msra.mxu0 %v3675
      %4052 = vmatprep.subr.mxu0 0.0
      %4053 = vmatpush1.msra.mxu0 %v3676
      %4054 = vmatprep.subr.mxu0 0.0
      %4055 = vmatpush1.msra.mxu0 %v3677
      %4056 = vmatprep.subr.mxu0 0.0
      %4057 = vmatpush1.msra.mxu0 %v3678
      %4058 = vmatprep.subr.mxu0 0.0
      %4059 = vmatpush1.msra.mxu0 %v3679
      %4060 = vmatprep.subr.mxu0 0.0
      %4061 = vmatpush1.msra.mxu0 %v3680
      %4062 = vmatprep.subr.mxu0 0.0
      %4063 = vmatpush1.msra.mxu0 %v3681
      %4064 = vmatprep.subr.mxu0 0.0
      %4065 = vmatpush1.msra.mxu0 %v3682
      %4066 = vmatprep.subr.mxu0 0.0
      %4067 = vmatpush1.msra.mxu0 %v3683
      %4068 = vmatprep.subr.mxu0 0.0
      %4069 = vmatpush1.msra.mxu0 %v3684
      %4070 = vmatprep.subr.mxu0 0.0
      %4071 = vmatpush1.msra.mxu0 %v3685
      %4072 = vmatprep.subr.mxu0 0.0
      %4073 = vmatpush1.msra.mxu0 %v3686
      %4074 = vmatprep.subr.mxu0 0.0
      %4075 = vmatpush1.msra.mxu0 %v3687
      %4076 = vmatprep.subr.mxu0 0.0
      %4077 = vmatpush1.msra.mxu0 %v3688
      %4078 = vmatprep.subr.mxu0 0.0
      %4079 = vmatpush1.msra.mxu0 %v3689
      %4080 = vmatprep.subr.mxu0 0.0
      %4081 = vmatpush1.msra.mxu0 %v3690
      %4082 = vmatprep.subr.mxu0 0.0
      %4083 = vmatpush1.msra.mxu0 %v3691
      %4084 = vmatprep.mubr.f32.mxu0 %v3164
      %4085 = vmatmul.mubr.f32.gmra.mrb[0].mxu0 %v3068
      %v4086 = vpop.f32.mrb[0].mxu0
      %v4087 = vadd.f32 %v3862, %v4086
      %v4088 = vpop.f32.mrb[0].mxu0
      %4089 = vmatprep.mubr.f32.mxu0 %v3165
      %4090 = vmatmul.mubr.f32.gmra.mrb[0].mxu0 %v3069
      %v4091 = vpop.f32.mrb[0].mxu0
      %v4092 = vadd.f32 %v3867, %v4091
      %v4093 = vpop.f32.mrb[0].mxu0
      %4094 = vmatprep.mubr.f32.mxu0 %v3166
      %4095 = vmatmul.mubr.f32.gmra.mrb[0].mxu0 %v3070
      %v4096 = vpop.f32.mrb[0].mxu0
      %v4097 = vadd.f32 %v3872, %v4096
      %v4098 = vpop.f32.mrb[0].mxu0
      %4099 = vmatprep.mubr.f32.mxu0 %v3167
      %4100 = vmatmul.mubr.f32.gmra.mrb[0].mxu0 %v3071
      %v4101 = vpop.f32.mrb[0].mxu0
      %v4102 = vadd.f32 %v3877, %v4101
      %v4103 = vpop.f32.mrb[0].mxu0
      %4104 = vmatprep.mubr.f32.mxu0 %v3168
      %4105 = vmatmul.mubr.f32.gmra.mrb[0].mxu0 %v3072
      %v4106 = vpop.f32.mrb[0].mxu0
      %v4107 = vadd.f32 %v3882, %v4106
      %v4108 = vpop.f32.mrb[0].mxu0
      %4109 = vmatprep.mubr.f32.mxu0 %v3169
      %4110 = vmatmul.mubr.f32.gmra.mrb[0].mxu0 %v3073
      %v4111 = vpop.f32.mrb[0].mxu0
      %v4112 = vadd.f32 %v3887, %v4111
      %v4113 = vpop.f32.mrb[0].mxu0
      %4114 = vmatprep.mubr.f32.mxu0 %v3170
      %4115 = vmatmul.mubr.f32.gmra.mrb[0].mxu0 %v3074
      %v4116 = vpop.f32.mrb[0].mxu0
      %v4117 = vadd.f32 %v3892, %v4116
      %v4118 = vpop.f32.mrb[0].mxu0
      %4119 = vmatprep.mubr.f32.mxu0 %v3171
      %4120 = vmatmul.mubr.f32.gmra.mrb[0].mxu0 %v3075
      %v4121 = vpop.f32.mrb[0].mxu0
      %v4122 = vadd.f32 %v3897, %v4121
      %v4123 = vpop.f32.mrb[0].mxu0
      %4124 = vmatprep.mubr.f32.mxu0 %v3172
      %4125 = vmatmul.mubr.f32.gmra.mrb[0].mxu0 %v3076
      %v4126 = vpop.f32.mrb[0].mxu0
      %v4127 = vadd.f32 %v3902, %v4126
      %v4128 = vpop.f32.mrb[0].mxu0
      %4129 = vmatprep.mubr.f32.mxu0 %v3173
      %4130 = vmatmul.mubr.f32.gmra.mrb[0].mxu0 %v3077
      %v4131 = vpop.f32.mrb[0].mxu0
      %v4132 = vadd.f32 %v3907, %v4131
      %v4133 = vpop.f32.mrb[0].mxu0
      %4134 = vmatprep.mubr.f32.mxu0 %v3174
      %4135 = vmatmul.mubr.f32.gmra.mrb[0].mxu0 %v3078
      %v4136 = vpop.f32.mrb[0].mxu0
      %v4137 = vadd.f32 %v3912, %v4136
      %v4138 = vpop.f32.mrb[0].mxu0
      %4139 = vmatprep.mubr.f32.mxu0 %v3175
      %4140 = vmatmul.mubr.f32.gmra.mrb[0].mxu0 %v3079
      %v4141 = vpop.f32.mrb[0].mxu0
      %v4142 = vadd.f32 %v3917, %v4141
      %v4143 = vpop.f32.mrb[0].mxu0
      %4144 = vmatprep.mubr.f32.mxu0 %v3176
      %4145 = vmatmul.mubr.f32.gmra.mrb[0].mxu0 %v3080
      %v4146 = vpop.f32.mrb[0].mxu0
      %v4147 = vadd.f32 %v3922, %v4146
      %v4148 = vpop.f32.mrb[0].mxu0
      %4149 = vmatprep.mubr.f32.mxu0 %v3177
      %4150 = vmatmul.mubr.f32.gmra.mrb[0].mxu0 %v3081
      %v4151 = vpop.f32.mrb[0].mxu0
      %v4152 = vadd.f32 %v3927, %v4151
      %v4153 = vpop.f32.mrb[0].mxu0
      %4154 = vmatprep.mubr.f32.mxu0 %v3178
      %4155 = vmatmul.mubr.f32.gmra.mrb[0].mxu0 %v3082
      %v4156 = vpop.f32.mrb[0].mxu0
      %v4157 = vadd.f32 %v3932, %v4156
      %v4158 = vpop.f32.mrb[0].mxu0
      %4159 = vmatprep.mubr.f32.mxu0 %v3179
      %4160 = vmatmul.mubr.f32.gmra.mrb[0].mxu0 %v3083
      %v4161 = vpop.f32.mrb[0].mxu0
      %v4162 = vadd.f32 %v3937, %v4161
      %v4163 = vpop.f32.mrb[0].mxu0
      %4164 = vmatprep.mubr.f32.mxu0 %v3180
      %4165 = vmatmul.mubr.f32.gmra.mrb[0].mxu0 %v3084
      %v4166 = vpop.f32.mrb[0].mxu0
      %v4167 = vadd.f32 %v3942, %v4166
      %v4168 = vpop.f32.mrb[0].mxu0
      %4169 = vmatprep.mubr.f32.mxu0 %v3181
      %4170 = vmatmul.mubr.f32.gmra.mrb[0].mxu0 %v3085
      %v4171 = vpop.f32.mrb[0].mxu0
      %v4172 = vadd.f32 %v3947, %v4171
      %v4173 = vpop.f32.mrb[0].mxu0
      %4174 = vmatprep.mubr.f32.mxu0 %v3182
      %4175 = vmatmul.mubr.f32.gmra.mrb[0].mxu0 %v3086
      %v4176 = vpop.f32.mrb[0].mxu0
      %v4177 = vadd.f32 %v3952, %v4176
      %v4178 = vpop.f32.mrb[0].mxu0
      %4179 = vmatprep.mubr.f32.mxu0 %v3183
      %4180 = vmatmul.mubr.f32.gmra.mrb[0].mxu0 %v3087
      %v4181 = vpop.f32.mrb[0].mxu0
      %v4182 = vadd.f32 %v3957, %v4181
      %v4183 = vpop.f32.mrb[0].mxu0
      %4184 = vmatprep.mubr.f32.mxu0 %v3184
      %4185 = vmatmul.mubr.f32.gmra.mrb[0].mxu0 %v3088
      %v4186 = vpop.f32.mrb[0].mxu0
      %v4187 = vadd.f32 %v3962, %v4186
      %v4188 = vpop.f32.mrb[0].mxu0
      %4189 = vmatprep.mubr.f32.mxu0 %v3185
      %4190 = vmatmul.mubr.f32.gmra.mrb[0].mxu0 %v3089
      %v4191 = vpop.f32.mrb[0].mxu0
      %v4192 = vadd.f32 %v3967, %v4191
      %v4193 = vpop.f32.mrb[0].mxu0
      %4194 = vmatprep.mubr.f32.mxu0 %v3186
      %4195 = vmatmul.mubr.f32.gmra.mrb[0].mxu0 %v3090
      %v4196 = vpop.f32.mrb[0].mxu0
      %v4197 = vadd.f32 %v3972, %v4196
      %v4198 = vpop.f32.mrb[0].mxu0
      %4199 = vmatprep.mubr.f32.mxu0 %v3187
      %4200 = vmatmul.mubr.f32.gmra.mrb[0].mxu0 %v3091
      %v4201 = vpop.f32.mrb[0].mxu0
      %v4202 = vadd.f32 %v3977, %v4201
      %v4203 = vpop.f32.mrb[0].mxu0
      %4204 = vmatprep.mubr.f32.mxu0 %v3188
      %4205 = vmatmul.mubr.f32.gmra.mrb[0].mxu0 %v3092
      %v4206 = vpop.f32.mrb[0].mxu0
      %v4207 = vadd.f32 %v3982, %v4206
      %v4208 = vpop.f32.mrb[0].mxu0
      %4209 = vmatprep.mubr.f32.mxu0 %v3189
      %4210 = vmatmul.mubr.f32.gmra.mrb[0].mxu0 %v3093
      %v4211 = vpop.f32.mrb[0].mxu0
      %v4212 = vadd.f32 %v3987, %v4211
      %v4213 = vpop.f32.mrb[0].mxu0
      %4214 = vmatprep.mubr.f32.mxu0 %v3190
      %4215 = vmatmul.mubr.f32.gmra.mrb[0].mxu0 %v3094
      %v4216 = vpop.f32.mrb[0].mxu0
      %v4217 = vadd.f32 %v3992, %v4216
      %v4218 = vpop.f32.mrb[0].mxu0
      %4219 = vmatprep.mubr.f32.mxu0 %v3191
      %4220 = vmatmul.mubr.f32.gmra.mrb[0].mxu0 %v3095
      %v4221 = vpop.f32.mrb[0].mxu0
      %v4222 = vadd.f32 %v3997, %v4221
      %v4223 = vpop.f32.mrb[0].mxu0
      %4224 = vmatprep.mubr.f32.mxu0 %v3192
      %4225 = vmatmul.mubr.f32.gmra.mrb[0].mxu0 %v3096
      %v4226 = vpop.f32.mrb[0].mxu0
      %v4227 = vadd.f32 %v4002, %v4226
      %v4228 = vpop.f32.mrb[0].mxu0
      %4229 = vmatprep.mubr.f32.mxu0 %v3193
      %4230 = vmatmul.mubr.f32.gmra.mrb[0].mxu0 %v3097
      %v4231 = vpop.f32.mrb[0].mxu0
      %v4232 = vadd.f32 %v4007, %v4231
      %v4233 = vpop.f32.mrb[0].mxu0
      %4234 = vmatprep.mubr.f32.mxu0 %v3194
      %4235 = vmatmul.mubr.f32.gmra.mrb[0].mxu0 %v3098
      %v4236 = vpop.f32.mrb[0].mxu0
      %v4237 = vadd.f32 %v4012, %v4236
      %v4238 = vpop.f32.mrb[0].mxu0
      %4239 = vmatprep.mubr.f32.mxu0 %v3195
      %4240 = vmatmul.mubr.f32.gmra.mrb[0].mxu0 %v3099
      %v4241 = vpop.f32.mrb[0].mxu0
      %v4242 = vadd.f32 %v4017, %v4241
      %v4243 = vpop.f32.mrb[0].mxu0
      %4244 = vdwg.mxu0
      %4245 = vmatprep.subr.mxu0 0.0
      %4246 = vmatpush1.msra.mxu0 %v3692
      %4247 = vmatprep.subr.mxu0 0.0
      %4248 = vmatpush1.msra.mxu0 %v3693
      %4249 = vmatprep.subr.mxu0 0.0
      %4250 = vmatpush1.msra.mxu0 %v3694
      %4251 = vmatprep.subr.mxu0 0.0
      %4252 = vmatpush1.msra.mxu0 %v3695
      %4253 = vmatprep.subr.mxu0 0.0
      %4254 = vmatpush1.msra.mxu0 %v3696
      %4255 = vmatprep.subr.mxu0 0.0
      %4256 = vmatpush1.msra.mxu0 %v3697
      %4257 = vmatprep.subr.mxu0 0.0
      %4258 = vmatpush1.msra.mxu0 %v3698
      %4259 = vmatprep.subr.mxu0 0.0
      %4260 = vmatpush1.msra.mxu0 %v3699
      %4261 = vmatprep.subr.mxu0 0.0
      %4262 = vmatpush1.msra.mxu0 %v3700
      %4263 = vmatprep.subr.mxu0 0.0
      %4264 = vmatpush1.msra.mxu0 %v3701
      %4265 = vmatprep.subr.mxu0 0.0
      %4266 = vmatpush1.msra.mxu0 %v3702
      %4267 = vmatprep.subr.mxu0 0.0
      %4268 = vmatpush1.msra.mxu0 %v3703
      %4269 = vmatprep.subr.mxu0 0.0
      %4270 = vmatpush1.msra.mxu0 %v3704
      %4271 = vmatprep.subr.mxu0 0.0
      %4272 = vmatpush1.msra.mxu0 %v3705
      %4273 = vmatprep.subr.mxu0 0.0
      %4274 = vmatpush1.msra.mxu0 %v3706
      %4275 = vmatprep.subr.mxu0 0.0
      %4276 = vmatpush1.msra.mxu0 %v3707
      %4277 = vmatprep.subr.mxu0 0.0
      %4278 = vmatpush1.msra.mxu0 %v3708
      %4279 = vmatprep.subr.mxu0 0.0
      %4280 = vmatpush1.msra.mxu0 %v3709
      %4281 = vmatprep.subr.mxu0 0.0
      %4282 = vmatpush1.msra.mxu0 %v3710
      %4283 = vmatprep.subr.mxu0 0.0
      %4284 = vmatpush1.msra.mxu0 %v3711
      %4285 = vmatprep.subr.mxu0 0.0
      %4286 = vmatpush1.msra.mxu0 %v3712
      %4287 = vmatprep.subr.mxu0 0.0
      %4288 = vmatpush1.msra.mxu0 %v3713
      %4289 = vmatprep.subr.mxu0 0.0
      %4290 = vmatpush1.msra.mxu0 %v3714
      %4291 = vmatprep.subr.mxu0 0.0
      %4292 = vmatpush1.msra.mxu0 %v3715
      %4293 = vmatprep.subr.mxu0 0.0
      %4294 = vmatpush1.msra.mxu0 %v3716
      %4295 = vmatprep.subr.mxu0 0.0
      %4296 = vmatpush1.msra.mxu0 %v3717
      %4297 = vmatprep.subr.mxu0 0.0
      %4298 = vmatpush1.msra.mxu0 %v3718
      %4299 = vmatprep.subr.mxu0 0.0
      %4300 = vmatpush1.msra.mxu0 %v3719
      %4301 = vmatprep.subr.mxu0 0.0
      %4302 = vmatpush1.msra.mxu0 %v3720
      %4303 = vmatprep.subr.mxu0 0.0
      %4304 = vmatpush1.msra.mxu0 %v3721
      %4305 = vmatprep.subr.mxu0 0.0
      %4306 = vmatpush1.msra.mxu0 %v3722
      %4307 = vmatprep.subr.mxu0 0.0
      %4308 = vmatpush1.msra.mxu0 %v3723
      %4309 = vmatprep.mubr.f32.mxu0 %v2884
      %4310 = vmatmul.mubr.f32.gmra.mrb[0].mxu0 %v3584
      %v4311 = vpop.f32.mrb[0].mxu0
      %v4312 = vadd.f32 %v4087, %v4311
      %v4313 = vpop.f32.mrb[0].mxu0
      %4314 = vmatprep.mubr.f32.mxu0 %v2885
      %4315 = vmatmul.mubr.f32.gmra.mrb[0].mxu0 %v3585
      %v4316 = vpop.f32.mrb[0].mxu0
      %v4317 = vadd.f32 %v4092, %v4316
      %v4318 = vpop.f32.mrb[0].mxu0
      %4319 = vmatprep.mubr.f32.mxu0 %v2886
      %4320 = vmatmul.mubr.f32.gmra.mrb[0].mxu0 %v3586
      %v4321 = vpop.f32.mrb[0].mxu0
      %v4322 = vadd.f32 %v4097, %v4321
      %v4323 = vpop.f32.mrb[0].mxu0
      %4324 = vmatprep.mubr.f32.mxu0 %v2887
      %4325 = vmatmul.mubr.f32.gmra.mrb[0].mxu0 %v3587
      %v4326 = vpop.f32.mrb[0].mxu0
      %v4327 = vadd.f32 %v4102, %v4326
      %v4328 = vpop.f32.mrb[0].mxu0
      %4329 = vmatprep.mubr.f32.mxu0 %v2888
      %4330 = vmatmul.mubr.f32.gmra.mrb[0].mxu0 %v3588
      %v4331 = vpop.f32.mrb[0].mxu0
      %v4332 = vadd.f32 %v4107, %v4331
      %v4333 = vpop.f32.mrb[0].mxu0
      %4334 = vmatprep.mubr.f32.mxu0 %v2889
      %4335 = vmatmul.mubr.f32.gmra.mrb[0].mxu0 %v3589
      %v4336 = vpop.f32.mrb[0].mxu0
      %v4337 = vadd.f32 %v4112, %v4336
      %v4338 = vpop.f32.mrb[0].mxu0
      %4339 = vmatprep.mubr.f32.mxu0 %v2890
      %4340 = vmatmul.mubr.f32.gmra.mrb[0].mxu0 %v3590
      %v4341 = vpop.f32.mrb[0].mxu0
      %v4342 = vadd.f32 %v4117, %v4341
      %v4343 = vpop.f32.mrb[0].mxu0
      %4344 = vmatprep.mubr.f32.mxu0 %v2891
      %4345 = vmatmul.mubr.f32.gmra.mrb[0].mxu0 %v3591
      %v4346 = vpop.f32.mrb[0].mxu0
      %v4347 = vadd.f32 %v4122, %v4346
      %v4348 = vpop.f32.mrb[0].mxu0
      %4349 = vmatprep.mubr.f32.mxu0 %v2892
      %4350 = vmatmul.mubr.f32.gmra.mrb[0].mxu0 %v3592
      %v4351 = vpop.f32.mrb[0].mxu0
      %v4352 = vadd.f32 %v4127, %v4351
      %v4353 = vpop.f32.mrb[0].mxu0
      %4354 = vmatprep.mubr.f32.mxu0 %v2893
      %4355 = vmatmul.mubr.f32.gmra.mrb[0].mxu0 %v3593
      %v4356 = vpop.f32.mrb[0].mxu0
      %v4357 = vadd.f32 %v4132, %v4356
      %v4358 = vpop.f32.mrb[0].mxu0
      %4359 = vmatprep.mubr.f32.mxu0 %v2894
      %4360 = vmatmul.mubr.f32.gmra.mrb[0].mxu0 %v3594
      %v4361 = vpop.f32.mrb[0].mxu0
      %v4362 = vadd.f32 %v4137, %v4361
      %v4363 = vpop.f32.mrb[0].mxu0
      %4364 = vmatprep.mubr.f32.mxu0 %v2895
      %4365 = vmatmul.mubr.f32.gmra.mrb[0].mxu0 %v3595
      %v4366 = vpop.f32.mrb[0].mxu0
      %v4367 = vadd.f32 %v4142, %v4366
      %v4368 = vpop.f32.mrb[0].mxu0
      %4369 = vmatprep.mubr.f32.mxu0 %v2896
      %4370 = vmatmul.mubr.f32.gmra.mrb[0].mxu0 %v3596
      %v4371 = vpop.f32.mrb[0].mxu0
      %v4372 = vadd.f32 %v4147, %v4371
      %v4373 = vpop.f32.mrb[0].mxu0
      %4374 = vmatprep.mubr.f32.mxu0 %v2897
      %4375 = vmatmul.mubr.f32.gmra.mrb[0].mxu0 %v3597
      %v4376 = vpop.f32.mrb[0].mxu0
      %v4377 = vadd.f32 %v4152, %v4376
      %v4378 = vpop.f32.mrb[0].mxu0
      %4379 = vmatprep.mubr.f32.mxu0 %v2898
      %4380 = vmatmul.mubr.f32.gmra.mrb[0].mxu0 %v3598
      %v4381 = vpop.f32.mrb[0].mxu0
      %v4382 = vadd.f32 %v4157, %v4381
      %v4383 = vpop.f32.mrb[0].mxu0
      %4384 = vmatprep.mubr.f32.mxu0 %v2899
      %4385 = vmatmul.mubr.f32.gmra.mrb[0].mxu0 %v3599
      %v4386 = vpop.f32.mrb[0].mxu0
      %v4387 = vadd.f32 %v4162, %v4386
      %v4388 = vpop.f32.mrb[0].mxu0
      %4389 = vmatprep.mubr.f32.mxu0 %v2900
      %4390 = vmatmul.mubr.f32.gmra.mrb[0].mxu0 %v3600
      %v4391 = vpop.f32.mrb[0].mxu0
      %v4392 = vadd.f32 %v4167, %v4391
      %v4393 = vpop.f32.mrb[0].mxu0
      %4394 = vmatprep.mubr.f32.mxu0 %v2901
      %4395 = vmatmul.mubr.f32.gmra.mrb[0].mxu0 %v3601
      %v4396 = vpop.f32.mrb[0].mxu0
      %v4397 = vadd.f32 %v4172, %v4396
      %v4398 = vpop.f32.mrb[0].mxu0
      %4399 = vmatprep.mubr.f32.mxu0 %v2902
      %4400 = vmatmul.mubr.f32.gmra.mrb[0].mxu0 %v3602
      %v4401 = vpop.f32.mrb[0].mxu0
      %v4402 = vadd.f32 %v4177, %v4401
      %v4403 = vpop.f32.mrb[0].mxu0
      %4404 = vmatprep.mubr.f32.mxu0 %v2903
      %4405 = vmatmul.mubr.f32.gmra.mrb[0].mxu0 %v3603
      %v4406 = vpop.f32.mrb[0].mxu0
      %v4407 = vadd.f32 %v4182, %v4406
      %v4408 = vpop.f32.mrb[0].mxu0
      %4409 = vmatprep.mubr.f32.mxu0 %v2904
      %4410 = vmatmul.mubr.f32.gmra.mrb[0].mxu0 %v3604
      %v4411 = vpop.f32.mrb[0].mxu0
      %v4412 = vadd.f32 %v4187, %v4411
      %v4413 = vpop.f32.mrb[0].mxu0
      %4414 = vmatprep.mubr.f32.mxu0 %v2905
      %4415 = vmatmul.mubr.f32.gmra.mrb[0].mxu0 %v3605
      %v4416 = vpop.f32.mrb[0].mxu0
      %v4417 = vadd.f32 %v4192, %v4416
      %v4418 = vpop.f32.mrb[0].mxu0
      %4419 = vmatprep.mubr.f32.mxu0 %v2906
      %4420 = vmatmul.mubr.f32.gmra.mrb[0].mxu0 %v3606
      %v4421 = vpop.f32.mrb[0].mxu0
      %v4422 = vadd.f32 %v4197, %v4421
      %v4423 = vpop.f32.mrb[0].mxu0
      %4424 = vmatprep.mubr.f32.mxu0 %v2907
      %4425 = vmatmul.mubr.f32.gmra.mrb[0].mxu0 %v3607
      %v4426 = vpop.f32.mrb[0].mxu0
      %v4427 = vadd.f32 %v4202, %v4426
      %v4428 = vpop.f32.mrb[0].mxu0
      %4429 = vmatprep.mubr.f32.mxu0 %v3624
      %4430 = vmatmul.mubr.f32.gmra.mrb[0].mxu0 %v3608
      %v4431 = vpop.f32.mrb[0].mxu0
      %v4432 = vadd.f32 %v4207, %v4431
      %v4433 = vpop.f32.mrb[0].mxu0
      %4434 = vmatprep.mubr.f32.mxu0 %v3625
      %4435 = vmatmul.mubr.f32.gmra.mrb[0].mxu0 %v3609
      %v4436 = vpop.f32.mrb[0].mxu0
      %v4437 = vadd.f32 %v4212, %v4436
      %v4438 = vpop.f32.mrb[0].mxu0
      %4439 = vmatprep.mubr.f32.mxu0 %v3626
      %4440 = vmatmul.mubr.f32.gmra.mrb[0].mxu0 %v3610
      %v4441 = vpop.f32.mrb[0].mxu0
      %v4442 = vadd.f32 %v4217, %v4441
      %v4443 = vpop.f32.mrb[0].mxu0
      %4444 = vmatprep.mubr.f32.mxu0 %v3627
      %4445 = vmatmul.mubr.f32.gmra.mrb[0].mxu0 %v3611
      %v4446 = vpop.f32.mrb[0].mxu0
      %v4447 = vadd.f32 %v4222, %v4446
      %v4448 = vpop.f32.mrb[0].mxu0
      %4449 = vmatprep.mubr.f32.mxu0 %v2878
      %4450 = vmatmul.mubr.f32.gmra.mrb[0].mxu0 %v3612
      %v4451 = vpop.f32.mrb[0].mxu0
      %v4452 = vadd.f32 %v4227, %v4451
      %v4453 = vpop.f32.mrb[0].mxu0
      %4454 = vmatprep.mubr.f32.mxu0 %v2879
      %4455 = vmatmul.mubr.f32.gmra.mrb[0].mxu0 %v3613
      %v4456 = vpop.f32.mrb[0].mxu0
      %v4457 = vadd.f32 %v4232, %v4456
      %v4458 = vpop.f32.mrb[0].mxu0
      %4459 = vmatprep.mubr.f32.mxu0 %v2878
      %4460 = vmatmul.mubr.f32.gmra.mrb[0].mxu0 %v3614
      %v4461 = vpop.f32.mrb[0].mxu0
      %v4462 = vadd.f32 %v4237, %v4461
      %v4463 = vpop.f32.mrb[0].mxu0
      %4464 = vmatprep.mubr.f32.mxu0 %v2879
      %4465 = vmatmul.mubr.f32.gmra.mrb[0].mxu0 %v3615
      %v4466 = vpop.f32.mrb[0].mxu0
      %v4467 = vadd.f32 %v4242, %v4466
      %v4468 = vpop.f32.mrb[0].mxu0
      %4469 = vdwg.mxu0
      %4470 = vmatprep.subr.mxu0 0.0
      %4471 = vmatpush1.msra.mxu0 %v3724
      %4472 = vmatprep.subr.mxu0 0.0
      %4473 = vmatpush1.msra.mxu0 %v3725
      %4474 = vmatprep.subr.mxu0 0.0
      %4475 = vmatpush1.msra.mxu0 %v3726
      %4476 = vmatprep.subr.mxu0 0.0
      %4477 = vmatpush1.msra.mxu0 %v3727
      %4478 = vmatprep.subr.mxu0 0.0
      %4479 = vmatpush1.msra.mxu0 0.0
      %4480 = vmatprep.subr.mxu0 0.0
      %4481 = vmatpush1.msra.mxu0 0.0
      %4482 = vmatprep.subr.mxu0 0.0
      %4483 = vmatpush1.msra.mxu0 0.0
      %4484 = vmatprep.subr.mxu0 0.0
      %4485 = vmatpush1.msra.mxu0 0.0
      %4486 = vmatprep.subr.mxu0 0.0
      %4487 = vmatpush1.msra.mxu0 0.0
      %4488 = vmatprep.subr.mxu0 0.0
      %4489 = vmatpush1.msra.mxu0 0.0
      %4490 = vmatprep.subr.mxu0 0.0
      %4491 = vmatpush1.msra.mxu0 0.0
      %4492 = vmatprep.subr.mxu0 0.0
      %4493 = vmatpush1.msra.mxu0 0.0
      %4494 = vmatprep.subr.mxu0 0.0
      %4495 = vmatpush1.msra.mxu0 0.0
      %4496 = vmatprep.subr.mxu0 0.0
      %4497 = vmatpush1.msra.mxu0 0.0
      %4498 = vmatprep.subr.mxu0 0.0
      %4499 = vmatpush1.msra.mxu0 0.0
      %4500 = vmatprep.subr.mxu0 0.0
      %4501 = vmatpush1.msra.mxu0 0.0
      %4502 = vmatprep.subr.mxu0 0.0
      %4503 = vmatpush1.msra.mxu0 0.0
      %4504 = vmatprep.subr.mxu0 0.0
      %4505 = vmatpush1.msra.mxu0 0.0
      %4506 = vmatprep.subr.mxu0 0.0
      %4507 = vmatpush1.msra.mxu0 0.0
      %4508 = vmatprep.subr.mxu0 0.0
      %4509 = vmatpush1.msra.mxu0 0.0
      %4510 = vmatprep.subr.mxu0 0.0
      %4511 = vmatpush1.msra.mxu0 0.0
      %4512 = vmatprep.subr.mxu0 0.0
      %4513 = vmatpush1.msra.mxu0 0.0
      %4514 = vmatprep.subr.mxu0 0.0
      %4515 = vmatpush1.msra.mxu0 0.0
      %4516 = vmatprep.subr.mxu0 0.0
      %4517 = vmatpush1.msra.mxu0 0.0
      %4518 = vmatprep.subr.mxu0 0.0
      %4519 = vmatpush1.msra.mxu0 0.0
      %4520 = vmatprep.subr.mxu0 0.0
      %4521 = vmatpush1.msra.mxu0 0.0
      %4522 = vmatprep.subr.mxu0 0.0
      %4523 = vmatpush1.msra.mxu0 0.0
      %4524 = vmatprep.subr.mxu0 0.0
      %4525 = vmatpush1.msra.mxu0 0.0
      %4526 = vmatprep.subr.mxu0 0.0
      %4527 = vmatpush1.msra.mxu0 0.0
      %4528 = vmatprep.subr.mxu0 0.0
      %4529 = vmatpush1.msra.mxu0 0.0
      %4530 = vmatprep.subr.mxu0 0.0
      %4531 = vmatpush1.msra.mxu0 0.0
      %4532 = vmatprep.subr.mxu0 0.0
      %4533 = vmatpush1.msra.mxu0 0.0
      %4534 = vmatprep.mubr.f32.mxu0 0.0
      %4535 = vmatmul.mubr.f32.gmra.mrb[0].mxu0 %v3735
      %v4536 = vpop.f32.mrb[0].mxu0
      %v4537 = vadd.f32 %v4312, %v4536
      %v4538 = vpop.f32.mrb[0].mxu0
      %4539 = vmatprep.mubr.f32.mxu0 0.0
      %4540 = vmatmul.mubr.f32.gmra.mrb[0].mxu0 %v3737
      %v4541 = vpop.f32.mrb[0].mxu0
      %v4542 = vadd.f32 %v4317, %v4541
      %v4543 = vpop.f32.mrb[0].mxu0
      %4544 = vmatprep.mubr.f32.mxu0 0.0
      %4545 = vmatmul.mubr.f32.gmra.mrb[0].mxu0 %v3739
      %v4546 = vpop.f32.mrb[0].mxu0
      %v4547 = vadd.f32 %v4322, %v4546
      %v4548 = vpop.f32.mrb[0].mxu0
      %4549 = vmatprep.mubr.f32.mxu0 0.0
      %4550 = vmatmul.mubr.f32.gmra.mrb[0].mxu0 %v3741
      %v4551 = vpop.f32.mrb[0].mxu0
      %v4552 = vadd.f32 %v4327, %v4551
      %v4553 = vpop.f32.mrb[0].mxu0
      %4554 = vmatprep.mubr.f32.mxu0 0.0
      %4555 = vmatmul.mubr.f32.gmra.mrb[0].mxu0 %v3743
      %v4556 = vpop.f32.mrb[0].mxu0
      %v4557 = vadd.f32 %v4332, %v4556
      %v4558 = vpop.f32.mrb[0].mxu0
      %4559 = vmatprep.mubr.f32.mxu0 0.0
      %4560 = vmatmul.mubr.f32.gmra.mrb[0].mxu0 %v3745
      %v4561 = vpop.f32.mrb[0].mxu0
      %v4562 = vadd.f32 %v4337, %v4561
      %v4563 = vpop.f32.mrb[0].mxu0
      %4564 = vmatprep.mubr.f32.mxu0 0.0
      %4565 = vmatmul.mubr.f32.gmra.mrb[0].mxu0 %v3747
      %v4566 = vpop.f32.mrb[0].mxu0
      %v4567 = vadd.f32 %v4342, %v4566
      %v4568 = vpop.f32.mrb[0].mxu0
      %4569 = vmatprep.mubr.f32.mxu0 0.0
      %4570 = vmatmul.mubr.f32.gmra.mrb[0].mxu0 %v3749
      %v4571 = vpop.f32.mrb[0].mxu0
      %v4572 = vadd.f32 %v4347, %v4571
      %v4573 = vpop.f32.mrb[0].mxu0
      %4574 = vmatprep.mubr.f32.mxu0 0.0
      %4575 = vmatmul.mubr.f32.gmra.mrb[0].mxu0 %v3751
      %v4576 = vpop.f32.mrb[0].mxu0
      %v4577 = vadd.f32 %v4352, %v4576
      %v4578 = vpop.f32.mrb[0].mxu0
      %4579 = vmatprep.mubr.f32.mxu0 0.0
      %4580 = vmatmul.mubr.f32.gmra.mrb[0].mxu0 %v3753
      %v4581 = vpop.f32.mrb[0].mxu0
      %v4582 = vadd.f32 %v4357, %v4581
      %v4583 = vpop.f32.mrb[0].mxu0
      %4584 = vmatprep.mubr.f32.mxu0 0.0
      %4585 = vmatmul.mubr.f32.gmra.mrb[0].mxu0 %v3755
      %v4586 = vpop.f32.mrb[0].mxu0
      %v4587 = vadd.f32 %v4362, %v4586
      %v4588 = vpop.f32.mrb[0].mxu0
      %4589 = vmatprep.mubr.f32.mxu0 0.0
      %4590 = vmatmul.mubr.f32.gmra.mrb[0].mxu0 %v3757
      %v4591 = vpop.f32.mrb[0].mxu0
      %v4592 = vadd.f32 %v4367, %v4591
      %v4593 = vpop.f32.mrb[0].mxu0
      %4594 = vmatprep.mubr.f32.mxu0 0.0
      %4595 = vmatmul.mubr.f32.gmra.mrb[0].mxu0 %v3759
      %v4596 = vpop.f32.mrb[0].mxu0
      %v4597 = vadd.f32 %v4372, %v4596
      %v4598 = vpop.f32.mrb[0].mxu0
      %4599 = vmatprep.mubr.f32.mxu0 0.0
      %4600 = vmatmul.mubr.f32.gmra.mrb[0].mxu0 %v3761
      %v4601 = vpop.f32.mrb[0].mxu0
      %v4602 = vadd.f32 %v4377, %v4601
      %v4603 = vpop.f32.mrb[0].mxu0
      %4604 = vmatprep.mubr.f32.mxu0 0.0
      %4605 = vmatmul.mubr.f32.gmra.mrb[0].mxu0 %v3763
      %v4606 = vpop.f32.mrb[0].mxu0
      %v4607 = vadd.f32 %v4382, %v4606
      %v4608 = vpop.f32.mrb[0].mxu0
      %4609 = vmatprep.mubr.f32.mxu0 0.0
      %4610 = vmatmul.mubr.f32.gmra.mrb[0].mxu0 %v3765
      %v4611 = vpop.f32.mrb[0].mxu0
      %v4612 = vadd.f32 %v4387, %v4611
      %v4613 = vpop.f32.mrb[0].mxu0
      %4614 = vmatprep.mubr.f32.mxu0 0.0
      %4615 = vmatmul.mubr.f32.gmra.mrb[0].mxu0 %v3767
      %v4616 = vpop.f32.mrb[0].mxu0
      %v4617 = vadd.f32 %v4392, %v4616
      %v4618 = vpop.f32.mrb[0].mxu0
      %4619 = vmatprep.mubr.f32.mxu0 0.0
      %4620 = vmatmul.mubr.f32.gmra.mrb[0].mxu0 %v3769
      %v4621 = vpop.f32.mrb[0].mxu0
      %v4622 = vadd.f32 %v4397, %v4621
      %v4623 = vpop.f32.mrb[0].mxu0
      %4624 = vmatprep.mubr.f32.mxu0 0.0
      %4625 = vmatmul.mubr.f32.gmra.mrb[0].mxu0 %v3771
      %v4626 = vpop.f32.mrb[0].mxu0
      %v4627 = vadd.f32 %v4402, %v4626
      %v4628 = vpop.f32.mrb[0].mxu0
      %4629 = vmatprep.mubr.f32.mxu0 0.0
      %4630 = vmatmul.mubr.f32.gmra.mrb[0].mxu0 %v3773
      %v4631 = vpop.f32.mrb[0].mxu0
      %v4632 = vadd.f32 %v4407, %v4631
      %v4633 = vpop.f32.mrb[0].mxu0
      %4634 = vmatprep.mubr.f32.mxu0 0.0
      %4635 = vmatmul.mubr.f32.gmra.mrb[0].mxu0 %v3775
      %v4636 = vpop.f32.mrb[0].mxu0
      %v4637 = vadd.f32 %v4412, %v4636
      %v4638 = vpop.f32.mrb[0].mxu0
      %4639 = vmatprep.mubr.f32.mxu0 0.0
      %4640 = vmatmul.mubr.f32.gmra.mrb[0].mxu0 %v3777
      %v4641 = vpop.f32.mrb[0].mxu0
      %v4642 = vadd.f32 %v4417, %v4641
      %v4643 = vpop.f32.mrb[0].mxu0
      %4644 = vmatprep.mubr.f32.mxu0 0.0
      %4645 = vmatmul.mubr.f32.gmra.mrb[0].mxu0 %v3779
      %v4646 = vpop.f32.mrb[0].mxu0
      %v4647 = vadd.f32 %v4422, %v4646
      %v4648 = vpop.f32.mrb[0].mxu0
      %4649 = vmatprep.mubr.f32.mxu0 0.0
      %4650 = vmatmul.mubr.f32.gmra.mrb[0].mxu0 %v3781
      %v4651 = vpop.f32.mrb[0].mxu0
      %v4652 = vadd.f32 %v4427, %v4651
      %v4653 = vpop.f32.mrb[0].mxu0
      %4654 = vmatprep.mubr.f32.mxu0 0.0
      %4655 = vmatmul.mubr.f32.gmra.mrb[0].mxu0 %v3783
      %v4656 = vpop.f32.mrb[0].mxu0
      %v4657 = vadd.f32 %v4432, %v4656
      %v4658 = vpop.f32.mrb[0].mxu0
      %4659 = vmatprep.mubr.f32.mxu0 0.0
      %4660 = vmatmul.mubr.f32.gmra.mrb[0].mxu0 %v3785
      %v4661 = vpop.f32.mrb[0].mxu0
      %v4662 = vadd.f32 %v4437, %v4661
      %v4663 = vpop.f32.mrb[0].mxu0
      %4664 = vmatprep.mubr.f32.mxu0 0.0
      %4665 = vmatmul.mubr.f32.gmra.mrb[0].mxu0 %v3787
      %v4666 = vpop.f32.mrb[0].mxu0
      %v4667 = vadd.f32 %v4442, %v4666
      %v4668 = vpop.f32.mrb[0].mxu0
      %4669 = vmatprep.mubr.f32.mxu0 0.0
      %4670 = vmatmul.mubr.f32.gmra.mrb[0].mxu0 %v3789
      %v4671 = vpop.f32.mrb[0].mxu0
      %v4672 = vadd.f32 %v4447, %v4671
      %v4673 = vpop.f32.mrb[0].mxu0
      %4674 = vmatprep.mubr.f32.mxu0 0.0
      %4675 = vmatmul.mubr.f32.gmra.mrb[0].mxu0 %v3791
      %v4676 = vpop.f32.mrb[0].mxu0
      %v4677 = vadd.f32 %v4452, %v4676
      %v4678 = vpop.f32.mrb[0].mxu0
      %4679 = vmatprep.mubr.f32.mxu0 0.0
      %4680 = vmatmul.mubr.f32.gmra.mrb[0].mxu0 %v3793
      %v4681 = vpop.f32.mrb[0].mxu0
      %v4682 = vadd.f32 %v4457, %v4681
      %v4683 = vpop.f32.mrb[0].mxu0
      %4684 = vmatprep.mubr.f32.mxu0 0.0
      %4685 = vmatmul.mubr.f32.gmra.mrb[0].mxu0 %v3791
      %v4686 = vpop.f32.mrb[0].mxu0
      %v4687 = vadd.f32 %v4462, %v4686
      %v4688 = vpop.f32.mrb[0].mxu0
      %4689 = vmatprep.mubr.f32.mxu0 0.0
      %4690 = vmatmul.mubr.f32.gmra.mrb[0].mxu0 %v3793
      %v4691 = vpop.f32.mrb[0].mxu0
      %v4692 = vadd.f32 %v4467, %v4691
      %v4693 = vpop.f32.mrb[0].mxu0
      %4694 = vdwg.mxu0
      %4695 = vxpose.xlu0.b32.start [1/16] %v4537, 128
      %4696 = vxpose.xlu0.b32.cont [2/16] %v4542, 128
      %4697 = vxpose.xlu0.b32.cont [3/16] %v4547, 128
      %4698 = vxpose.xlu0.b32.cont [4/16] %v4552, 128
      %4699 = vxpose.xlu0.b32.cont [5/16] %v4557, 128
      %4700 = vxpose.xlu0.b32.cont [6/16] %v4562, 128
      %4701 = vxpose.xlu0.b32.cont [7/16] %v4567, 128
      %4702 = vxpose.xlu0.b32.cont [8/16] %v4572, 128
      %4703 = vxpose.xlu0.b32.cont [9/16] %v4577, 128
      %4704 = vxpose.xlu0.b32.cont [10/16] %v4582, 128
      %4705 = vxpose.xlu0.b32.cont [11/16] %v4587, 128
      %4706 = vxpose.xlu0.b32.cont [12/16] %v4592, 128
      %4707 = vxpose.xlu0.b32.cont [13/16] %v4597, 128
      %4708 = vxpose.xlu0.b32.cont [14/16] %v4602, 128
      %4709 = vxpose.xlu0.b32.cont [15/16] %v4607, 128
      %4710 = vxpose.xlu0.b32.end [16/16] %v4612, 128
      %v4711 = vpop.trf.xlu0
      %v4712 = vpop.trf.xlu0
      %v4713 = vpop.trf.xlu0
      %v4714 = vpop.trf.xlu0
      %v4715 = vpop.trf.xlu0
      %v4716 = vpop.trf.xlu0
      %v4717 = vpop.trf.xlu0
      %v4718 = vpop.trf.xlu0
      %v4719 = vpop.trf.xlu0
      %v4720 = vpop.trf.xlu0
      %v4721 = vpop.trf.xlu0
      %v4722 = vpop.trf.xlu0
      %v4723 = vpop.trf.xlu0
      %v4724 = vpop.trf.xlu0
      %v4725 = vpop.trf.xlu0
      %v4726 = vpop.trf.xlu0
      %4727 = vxpose.xlu0.b32.start [1/16] %v4617, 128
      %4728 = vxpose.xlu0.b32.cont [2/16] %v4622, 128
      %4729 = vxpose.xlu0.b32.cont [3/16] %v4627, 128
      %4730 = vxpose.xlu0.b32.cont [4/16] %v4632, 128
      %4731 = vxpose.xlu0.b32.cont [5/16] %v4637, 128
      %4732 = vxpose.xlu0.b32.cont [6/16] %v4642, 128
      %4733 = vxpose.xlu0.b32.cont [7/16] %v4647, 128
      %4734 = vxpose.xlu0.b32.cont [8/16] %v4652, 128
      %4735 = vxpose.xlu0.b32.cont [9/16] %v4657, 128
      %4736 = vxpose.xlu0.b32.cont [10/16] %v4662, 128
      %4737 = vxpose.xlu0.b32.cont [11/16] %v4667, 128
      %4738 = vxpose.xlu0.b32.cont [12/16] %v4672, 128
      %4739 = vxpose.xlu0.b32.cont [13/16] %v4677, 128
      %4740 = vxpose.xlu0.b32.cont [14/16] %v4682, 128
      %4741 = vxpose.xlu0.b32.cont [15/16] %v4687, 128
      %4742 = vxpose.xlu0.b32.end [16/16] %v4692, 128
      %v4743 = vpop.trf.xlu0
      %v4744 = vpop.trf.xlu0
      %v4745 = vpop.trf.xlu0
      %v4746 = vpop.trf.xlu0
      %v4747 = vpop.trf.xlu0
      %v4748 = vpop.trf.xlu0
      %v4749 = vpop.trf.xlu0
      %v4750 = vpop.trf.xlu0
      %v4751 = vpop.trf.xlu0
      %v4752 = vpop.trf.xlu0
      %v4753 = vpop.trf.xlu0
      %v4754 = vpop.trf.xlu0
      %v4755 = vpop.trf.xlu0
      %v4756 = vpop.trf.xlu0
      %v4757 = vpop.trf.xlu0
      %v4758 = vpop.trf.xlu0
      %v4761 = vcombine.low %v4711, %v4743
      %4763 = vst [vmem:[%s278] sm:$0x77] %v4761
      %p4764 = scmp.lt.s32.totalorder %s18, 1
      %s4765 = scalar_select %p4764, %s18, 1
      %s4766 = smul.addr %s4765, 2
      %s4767 = smul.addr %s4766, 4
      %s4768 = scalar_lea.vmem %s7, %s4767
      // Predicated region
      $region49: #{tpu_custom_call.1} parent=47 // pred_check
        %p4769 = pneg %p188
      $region50: #{tpu_custom_call.1} parent=47 // pred_check_branch
        %4771 = sbr.rel (%p4769) target = $region52
      $region51: #{tpu_custom_call.1} parent=47 // pred_region
        _
      $region52: #{tpu_custom_call.1} parent=47 // pred_fallthru
        _
    $region48: #{tpu_custom_call.1} parent=5 // pred_fallthru
      _
    %p4772 = scmp.le.s32.totalorder 2, %s13
    // Predicated region
    $region53: #{tpu_custom_call.1} parent=5 // pred_check
      %p4773 = pneg %p4772
    $region54: #{tpu_custom_call.1} parent=5 // pred_check_branch
      %4775 = sbr.rel (%p4773) target = $region56
    $region55: #{tpu_custom_call.1} parent=5 // pred_region
      %s4776 = ssub.s32 %s13, 2
      // Predicated region
      $region57: #{tpu_custom_call.1} parent=55 // pred_check
        %p4777 = pneg %p194
      $region58: #{tpu_custom_call.1} parent=55 // pred_check_branch
        %4779 = sbr.rel (%p4777) target = $region60
      $region59: #{tpu_custom_call.1} parent=55 // pred_region
        %p4780 = scmp.lt.s32.totalorder %s19, 1
        %s4781 = scalar_select %p4780, %s19, 1
        %s4782 = smul.addr %s4781, 2
        %s4783 = smul.addr %s4782, 4
        %s4784 = scalar_lea.vmem %s7, %s4783
      $region60: #{tpu_custom_call.1} parent=55 // pred_fallthru
        _
    $region56: #{tpu_custom_call.1} parent=5 // pred_fallthru
      _
  $region6: #{tpu_custom_call.1} parent=0 // loop_footer
    %s17 = sadd.s32 1, %s13
  $region7: #{tpu_custom_call.1} parent=0 // loop_footer_branch
    %12 = sbr.rel target = $region3
  $region8: #{tpu_custom_call.1} parent=0 // loop_exit
    _

</llo_original>
